<compile_context>
chip_gen: v5e
topology: v5e:2x2
jax: 0.10.0
libtpu: 0.0.40
codegen_flags: <defaults>
</compile_context>

<pallas_src>
import jax
import jax.numpy as jnp
from jax.experimental import pallas as pl
from jax.experimental.pallas import tpu as pltpu


def add_conv1x1_kernel(x1_ref, x2_ref, w_ref, o_ref):
    # x1_ref, x2_ref: (1, Cin, HW) f32   w_ref: (tile_m, Cin) bf16
    # o_ref: (1, tile_m, HW) f32
    s = (x1_ref[0] + x2_ref[0]).astype(jnp.bfloat16)   # f32 VPU add, bf16 cast for MXU
    o_ref[0] = jnp.dot(
        w_ref[...], s, preferred_element_type=jnp.float32
    ).astype(o_ref.dtype)                               # (tile_m, HW) on the MXU


def _default_tile_m(cout):
    """Two weight tiles on v7x (2 TensorCores/chip), one tile otherwise."""
    try:
        kind = jax.devices()[0].device_kind.lower()
    except Exception:
        kind = ""
    if "v7" in kind and cout % 2 == 0:
        return cout // 2
    return cout


def add_conv1x1(x746, x731, weight, *, tile_m=None):
    """x746, x731: (N, Cin, H, W) float32.  weight: (Cout, Cin, 1, 1) float32."""
    N, Cin, H, W = x746.shape
    Cout = weight.shape[0]
    HW = H * W

    if tile_m is None:
        tile_m = _default_tile_m(Cout)

    # Pure views -- no transposes, no extra HBM traffic.
    a = x746.reshape(N, Cin, HW)
    b = x731.reshape(N, Cin, HW)
    # One-time bf16 cast of the weight (dominant HBM traffic), native layout.
    w = weight.reshape(Cout, Cin).astype(jnp.bfloat16)

    assert Cout % tile_m == 0, "tile_m must divide Cout"
    assert tile_m % 16 == 0 and Cin % 128 == 0, "bf16 weight tile must respect (16,128)"

    cost = pl.CostEstimate(
        flops=2 * N * Cout * Cin * HW,
        bytes_accessed=(
            Cout * Cin * 2              # bf16 weight
            + 2 * N * Cin * HW * 4      # two f32 activation inputs
            + N * Cout * HW * 4         # f32 output
        ),
        transcendentals=0,
    )

    out = pl.pallas_call(
        add_conv1x1_kernel,
        out_shape=jax.ShapeDtypeStruct((N, Cout, HW), jnp.float32),
        grid_spec=pltpu.PrefetchScalarGridSpec(
            num_scalar_prefetch=0,
            grid=(N, Cout // tile_m),
            in_specs=[
                # activations: one full (Cin, HW) slab per batch element,
                # re-used for every output-channel tile
                pl.BlockSpec((1, Cin, HW), lambda n, i: (n, 0, 0)),
                pl.BlockSpec((1, Cin, HW), lambda n, i: (n, 0, 0)),
                # weight: tiled along output channels only, native layout, bf16
                pl.BlockSpec((tile_m, Cin), lambda n, i: (i, 0)),
            ],
            out_specs=pl.BlockSpec((1, tile_m, HW), lambda n, i: (n, i, 0)),
        ),
        compiler_params=pltpu.CompilerParams(
            # both axes independent -> megacore can shard weight tiles (v7x)
            dimension_semantics=("parallel", "parallel"),
        ),
        cost_estimate=cost,
    )(a, b, w)

    # (N, Cout, HW) -> (N, Cout, H, W): a free view, no transpose.
    return out.reshape(N, Cout, H, W)


if __name__ == "__main__":
    key = jax.random.PRNGKey(0)
    k1, k2, k3 = jax.random.split(key, 3)

    # Shapes implied by the module's forward pass.
    N, Cin, H, W = 1, 384, 7, 7
    Cout = 2304

    x746 = jax.random.normal(k1, (N, Cin, H, W), dtype=jnp.float32)
    x731 = jax.random.normal(k2, (N, Cin, H, W), dtype=jnp.float32)
    # Deterministic synthetic weight for Conv2d(384, 2304, 1, 1, bias=False).
    weight = jax.random.normal(k3, (Cout, Cin, 1, 1), dtype=jnp.float32) * 0.02

    out = add_conv1x1(x746, x731, weight)
    jax.block_until_ready(out)

    # Cross-check against plain-JAX f32 reference (bf16 weight path -> looser tol).
    s = x746 + x731
    ref = jnp.einsum("nchw,oc->nohw", s, weight.reshape(Cout, Cin))
    assert out.shape == (N, Cout, H, W), out.shape
    assert jnp.allclose(out, ref, atol=5e-2, rtol=5e-2)

    print("KERNEL_OK")
</pallas_src>

<mosaic_0001>
module attributes {stable_mosaic.version = 11 : i64} {
  func.func @add_conv1x1_kernel(%arg0: i32, %arg1: i32, %arg2: memref<1x384x49xf32, #tpu.memory_space<vmem>>, %arg3: memref<1x384x49xf32, #tpu.memory_space<vmem>>, %arg4: memref<2304x384xbf16, #tpu.memory_space<vmem>>, %arg5: memref<1x2304x49xf32, #tpu.memory_space<vmem>>) attributes {dimension_semantics = [#tpu.dimension_semantics<parallel>, #tpu.dimension_semantics<parallel>], iteration_bounds = array<i64: 1, 1>, scalar_prefetch = 0 : i64, scratch_operands = 0 : i64, tpu.core_type = #tpu.core_type<tc>, window_params = [{transform_indices = @transform_0, window_bounds = array<i64: 1, 384, 49>}, {transform_indices = @transform_1, window_bounds = array<i64: 1, 384, 49>}, {transform_indices = @transform_2, window_bounds = array<i64: 2304, 384>}, {transform_indices = @transform_3, window_bounds = array<i64: 1, 2304, 49>}]} {
    %c0 = arith.constant 0 : index
    %c0_0 = arith.constant 0 : index
    %c0_1 = arith.constant 0 : index
    %0 = vector.load %arg2[%c0, %c0_0, %c0_1] : memref<1x384x49xf32, #tpu.memory_space<vmem>>, vector<1x384x49xf32>
    %1 = vector.shape_cast %0 : vector<1x384x49xf32> to vector<384x49xf32>
    %c0_2 = arith.constant 0 : index
    %c0_3 = arith.constant 0 : index
    %c0_4 = arith.constant 0 : index
    %2 = vector.load %arg3[%c0_2, %c0_3, %c0_4] : memref<1x384x49xf32, #tpu.memory_space<vmem>>, vector<1x384x49xf32>
    %3 = vector.shape_cast %2 : vector<1x384x49xf32> to vector<384x49xf32>
    %4 = arith.addf %1, %3 : vector<384x49xf32>
    %5 = arith.truncf %4 : vector<384x49xf32> to vector<384x49xbf16>
    %c0_5 = arith.constant 0 : index
    %c0_6 = arith.constant 0 : index
    %6 = vector.load %arg4[%c0_5, %c0_6] : memref<2304x384xbf16, #tpu.memory_space<vmem>>, vector<2304x384xbf16>
    %cst = arith.constant dense<0.000000e+00> : vector<2304x49xf32>
    %7 = tpu.matmul %6, %5, %cst {dimension_numbers = #tpu.dot_dimension_numbers<[1], [0], [0], [1], [0, 0, 1, 1], [], []>} : vector<2304x384xbf16>, vector<384x49xbf16>, vector<2304x49xf32> -> vector<2304x49xf32>
    %c0_7 = arith.constant 0 : index
    %c0_8 = arith.constant 0 : index
    %c0_9 = arith.constant 0 : index
    %8 = vector.load %arg5[%c0_7, %c0_8, %c0_9] : memref<1x2304x49xf32, #tpu.memory_space<vmem>>, vector<1x2304x49xf32>
    %9 = vector.shape_cast %8 : vector<1x2304x49xf32> to vector<2304x49xf32>
    %10 = vector.shape_cast %7 : vector<2304x49xf32> to vector<1x2304x49xf32>
    tpu.vector_store %arg5[%c0_7, %c0_8, %c0_9], %10 {strides = array<i32>} : memref<1x2304x49xf32, #tpu.memory_space<vmem>>, vector<1x2304x49xf32>,
    return
  }
  func.func @transform_0(%arg0: i32, %arg1: i32) -> (i32, i32, i32) {
    %c0_i32 = arith.constant 0 : i32
    %c0_i32_0 = arith.constant 0 : i32
    %c0_i32_1 = arith.constant 0 : i32
    return %arg0, %c0_i32, %c0_i32_0 : i32, i32, i32
  }
  func.func @transform_1(%arg0: i32, %arg1: i32) -> (i32, i32, i32) {
    %c0_i32 = arith.constant 0 : i32
    %c0_i32_0 = arith.constant 0 : i32
    %c0_i32_1 = arith.constant 0 : i32
    return %arg0, %c0_i32, %c0_i32_0 : i32, i32, i32
  }
  func.func @transform_2(%arg0: i32, %arg1: i32) -> (i32, i32) {
    %c0_i32 = arith.constant 0 : i32
    %c0_i32_0 = arith.constant 0 : i32
    return %arg1, %c0_i32 : i32, i32
  }
  func.func @transform_3(%arg0: i32, %arg1: i32) -> (i32, i32, i32) {
    %c0_i32 = arith.constant 0 : i32
    %c0_i32_0 = arith.constant 0 : i32
    return %arg0, %arg1, %c0_i32 : i32, i32, i32
  }
}

</mosaic_0001>

<llo_original>
// kernel: tpu_custom_call.1
$region0: #{tpu_custom_call.1}
  #allocation0 [shape = 'u32[]', space=smem, size = 0x4, offset = 0x4, fixed_abs, tag = 'smem constant byte address 0x4 - core index']
  #allocation1 [shape = 'u32[72,128]{1,0:T(1,128)}', space=vmem, size = 0x9000, scoped, tag = 'internal scratch']
  %s0 = inlined_call_operand.vmem [shape: f32[1,384,49], index: 0, kind: input, shape index: {}]
  %s1 = inlined_call_operand.vmem [shape: f32[1,384,49], index: 1, kind: input, shape index: {}]
  %s2 = inlined_call_operand.hbm [shape: bf16[2304,384], index: 2, kind: input, shape index: {}]
  %s3 = inlined_call_operand.vmem [shape: f32[1,2304,49], index: 3, kind: output, shape index: {}]
  %s4 = sld [smem:[#allocation0]]
  $region26: #{tpu_custom_call.1} parent=0
    _
  %s6 = ssub.s32 1, %s4
  %s7 = scalar_select 0, %s6, %s4
  $region1: #{tpu_custom_call.1} parent=0
    #allocation2 [shape = 'u8[1769472]{0}', space=vmem, size = 0x1b0000, scoped, tag = 'input window, operand 2, single buffered']
    #allocation3 [shape = 's32[1]{0}', space=sflag, size = 0x4, scoped, tag = 'scoped memory for tpu_custom_call.1']
    %8 = vsyncpa [#allocation3], 0
    // Predicated region
    $region2: #{tpu_custom_call.1} parent=1 // pred_check
      _
    $region3: #{tpu_custom_call.1} parent=1 // pred_check_branch
      %10 = sbr.rel (0) target = $region5
    $region4: #{tpu_custom_call.1} parent=1 // pred_region
      _
    $region5: #{tpu_custom_call.1} parent=1 // pred_fallthru
      _
    // Predicated region
    $region6: #{tpu_custom_call.1} parent=1 // pred_check
      _
    $region7: #{tpu_custom_call.1} parent=1 // pred_check_branch
      %12 = sbr.rel (0) target = $region9
    $region8: #{tpu_custom_call.1} parent=1 // pred_region
      _
    $region9: #{tpu_custom_call.1} parent=1 // pred_fallthru
      _
    // Predicated region
    $region10: #{tpu_custom_call.1} parent=1 // pred_check
      _
    $region11: #{tpu_custom_call.1} parent=1 // pred_check_branch
      %14 = sbr.rel (0) target = $region13
    $region12: #{tpu_custom_call.1} parent=1 // pred_region
      %16 = vsyncadd [#allocation3], 0
      %s17 = sshll.u32 %s2, 4
      %s18 = int_to_ptr.hbm [resolvable:$true] %s17
      %s19 = sshll.u32 [#allocation2], 4
      %s20 = int_to_ptr.vmem [resolvable:$true] %s19
      %25 = dma.hbm_to_vmem [thread:$0]  %s18, 55296, %s20, [#allocation3], 192, 192, 12
    $region13: #{tpu_custom_call.1} parent=1 // pred_fallthru
      _
    // Predicated region
    $region14: #{tpu_custom_call.1} parent=1 // pred_check
      _
    $region15: #{tpu_custom_call.1} parent=1 // pred_check_branch
      %27 = sbr.rel (0) target = $region17
    $region16: #{tpu_custom_call.1} parent=1 // pred_region
      %29 = dma.done [#allocation3], 55296
    $region17: #{tpu_custom_call.1} parent=1 // pred_fallthru
      _
    %v30 = vld [vmem:[%s0] sm:$0xff]
    %v31 = vld [vmem:[%s0 + $0x8] sm:$0xff]
    %v32 = vld [vmem:[%s0 + $0x10] sm:$0xff]
    %v33 = vld [vmem:[%s0 + $0x18] sm:$0xff]
    %v34 = vld [vmem:[%s0 + $0x20] sm:$0xff]
    %v35 = vld [vmem:[%s0 + $0x28] sm:$0xff]
    %v36 = vld [vmem:[%s0 + $0x30] sm:$0xff]
    %v37 = vld [vmem:[%s0 + $0x38] sm:$0xff]
    %v38 = vld [vmem:[%s0 + $0x40] sm:$0xff]
    %v39 = vld [vmem:[%s0 + $0x48] sm:$0xff]
    %v40 = vld [vmem:[%s0 + $0x50] sm:$0xff]
    %v41 = vld [vmem:[%s0 + $0x58] sm:$0xff]
    %v42 = vld [vmem:[%s0 + $0x60] sm:$0xff]
    %v43 = vld [vmem:[%s0 + $0x68] sm:$0xff]
    %v44 = vld [vmem:[%s0 + $0x70] sm:$0xff]
    %v45 = vld [vmem:[%s0 + $0x78] sm:$0xff]
    %v46 = vld [vmem:[%s0 + $0x80] sm:$0xff]
    %v47 = vld [vmem:[%s0 + $0x88] sm:$0xff]
    %v48 = vld [vmem:[%s0 + $0x90] sm:$0xff]
    %v49 = vld [vmem:[%s0 + $0x98] sm:$0xff]
    %v50 = vld [vmem:[%s0 + $0xa0] sm:$0xff]
    %v51 = vld [vmem:[%s0 + $0xa8] sm:$0xff]
    %v52 = vld [vmem:[%s0 + $0xb0] sm:$0xff]
    %v53 = vld [vmem:[%s0 + $0xb8] sm:$0xff]
    %v54 = vld [vmem:[%s0 + $0xc0] sm:$0xff]
    %v55 = vld [vmem:[%s0 + $0xc8] sm:$0xff]
    %v56 = vld [vmem:[%s0 + $0xd0] sm:$0xff]
    %v57 = vld [vmem:[%s0 + $0xd8] sm:$0xff]
    %v58 = vld [vmem:[%s0 + $0xe0] sm:$0xff]
    %v59 = vld [vmem:[%s0 + $0xe8] sm:$0xff]
    %v60 = vld [vmem:[%s0 + $0xf0] sm:$0xff]
    %v61 = vld [vmem:[%s0 + $0xf8] sm:$0xff]
    %v62 = vld [vmem:[%s0 + $0x100] sm:$0xff]
    %v63 = vld [vmem:[%s0 + $0x108] sm:$0xff]
    %v64 = vld [vmem:[%s0 + $0x110] sm:$0xff]
    %v65 = vld [vmem:[%s0 + $0x118] sm:$0xff]
    %v66 = vld [vmem:[%s0 + $0x120] sm:$0xff]
    %v67 = vld [vmem:[%s0 + $0x128] sm:$0xff]
    %v68 = vld [vmem:[%s0 + $0x130] sm:$0xff]
    %v69 = vld [vmem:[%s0 + $0x138] sm:$0xff]
    %v70 = vld [vmem:[%s0 + $0x140] sm:$0xff]
    %v71 = vld [vmem:[%s0 + $0x148] sm:$0xff]
    %v72 = vld [vmem:[%s0 + $0x150] sm:$0xff]
    %v73 = vld [vmem:[%s0 + $0x158] sm:$0xff]
    %v74 = vld [vmem:[%s0 + $0x160] sm:$0xff]
    %v75 = vld [vmem:[%s0 + $0x168] sm:$0xff]
    %v76 = vld [vmem:[%s0 + $0x170] sm:$0xff]
    %v77 = vld [vmem:[%s0 + $0x178] sm:$0xff]
    %v78 = vld [vmem:[%s1] sm:$0xff]
    %v79 = vld [vmem:[%s1 + $0x8] sm:$0xff]
    %v80 = vld [vmem:[%s1 + $0x10] sm:$0xff]
    %v81 = vld [vmem:[%s1 + $0x18] sm:$0xff]
    %v82 = vld [vmem:[%s1 + $0x20] sm:$0xff]
    %v83 = vld [vmem:[%s1 + $0x28] sm:$0xff]
    %v84 = vld [vmem:[%s1 + $0x30] sm:$0xff]
    %v85 = vld [vmem:[%s1 + $0x38] sm:$0xff]
    %v86 = vld [vmem:[%s1 + $0x40] sm:$0xff]
    %v87 = vld [vmem:[%s1 + $0x48] sm:$0xff]
    %v88 = vld [vmem:[%s1 + $0x50] sm:$0xff]
    %v89 = vld [vmem:[%s1 + $0x58] sm:$0xff]
    %v90 = vld [vmem:[%s1 + $0x60] sm:$0xff]
    %v91 = vld [vmem:[%s1 + $0x68] sm:$0xff]
    %v92 = vld [vmem:[%s1 + $0x70] sm:$0xff]
    %v93 = vld [vmem:[%s1 + $0x78] sm:$0xff]
    %v94 = vld [vmem:[%s1 + $0x80] sm:$0xff]
    %v95 = vld [vmem:[%s1 + $0x88] sm:$0xff]
    %v96 = vld [vmem:[%s1 + $0x90] sm:$0xff]
    %v97 = vld [vmem:[%s1 + $0x98] sm:$0xff]
    %v98 = vld [vmem:[%s1 + $0xa0] sm:$0xff]
    %v99 = vld [vmem:[%s1 + $0xa8] sm:$0xff]
    %v100 = vld [vmem:[%s1 + $0xb0] sm:$0xff]
    %v101 = vld [vmem:[%s1 + $0xb8] sm:$0xff]
    %v102 = vld [vmem:[%s1 + $0xc0] sm:$0xff]
    %v103 = vld [vmem:[%s1 + $0xc8] sm:$0xff]
    %v104 = vld [vmem:[%s1 + $0xd0] sm:$0xff]
    %v105 = vld [vmem:[%s1 + $0xd8] sm:$0xff]
    %v106 = vld [vmem:[%s1 + $0xe0] sm:$0xff]
    %v107 = vld [vmem:[%s1 + $0xe8] sm:$0xff]
    %v108 = vld [vmem:[%s1 + $0xf0] sm:$0xff]
    %v109 = vld [vmem:[%s1 + $0xf8] sm:$0xff]
    %v110 = vld [vmem:[%s1 + $0x100] sm:$0xff]
    %v111 = vld [vmem:[%s1 + $0x108] sm:$0xff]
    %v112 = vld [vmem:[%s1 + $0x110] sm:$0xff]
    %v113 = vld [vmem:[%s1 + $0x118] sm:$0xff]
    %v114 = vld [vmem:[%s1 + $0x120] sm:$0xff]
    %v115 = vld [vmem:[%s1 + $0x128] sm:$0xff]
    %v116 = vld [vmem:[%s1 + $0x130] sm:$0xff]
    %v117 = vld [vmem:[%s1 + $0x138] sm:$0xff]
    %v118 = vld [vmem:[%s1 + $0x140] sm:$0xff]
    %v119 = vld [vmem:[%s1 + $0x148] sm:$0xff]
    %v120 = vld [vmem:[%s1 + $0x150] sm:$0xff]
    %v121 = vld [vmem:[%s1 + $0x158] sm:$0xff]
    %v122 = vld [vmem:[%s1 + $0x160] sm:$0xff]
    %v123 = vld [vmem:[%s1 + $0x168] sm:$0xff]
    %v124 = vld [vmem:[%s1 + $0x170] sm:$0xff]
    %v125 = vld [vmem:[%s1 + $0x178] sm:$0xff]
    %v126 = vadd.f32 %v30, %v78
    %v127 = vadd.f32 %v31, %v79
    %v128 = vadd.f32 %v32, %v80
    %v129 = vadd.f32 %v33, %v81
    %v130 = vadd.f32 %v34, %v82
    %v131 = vadd.f32 %v35, %v83
    %v132 = vadd.f32 %v36, %v84
    %v133 = vadd.f32 %v37, %v85
    %v134 = vadd.f32 %v38, %v86
    %v135 = vadd.f32 %v39, %v87
    %v136 = vadd.f32 %v40, %v88
    %v137 = vadd.f32 %v41, %v89
    %v138 = vadd.f32 %v42, %v90
    %v139 = vadd.f32 %v43, %v91
    %v140 = vadd.f32 %v44, %v92
    %v141 = vadd.f32 %v45, %v93
    %v142 = vadd.f32 %v46, %v94
    %v143 = vadd.f32 %v47, %v95
    %v144 = vadd.f32 %v48, %v96
    %v145 = vadd.f32 %v49, %v97
    %v146 = vadd.f32 %v50, %v98
    %v147 = vadd.f32 %v51, %v99
    %v148 = vadd.f32 %v52, %v100
    %v149 = vadd.f32 %v53, %v101
    %v150 = vadd.f32 %v54, %v102
    %v151 = vadd.f32 %v55, %v103
    %v152 = vadd.f32 %v56, %v104
    %v153 = vadd.f32 %v57, %v105
    %v154 = vadd.f32 %v58, %v106
    %v155 = vadd.f32 %v59, %v107
    %v156 = vadd.f32 %v60, %v108
    %v157 = vadd.f32 %v61, %v109
    %v158 = vadd.f32 %v62, %v110
    %v159 = vadd.f32 %v63, %v111
    %v160 = vadd.f32 %v64, %v112
    %v161 = vadd.f32 %v65, %v113
    %v162 = vadd.f32 %v66, %v114
    %v163 = vadd.f32 %v67, %v115
    %v164 = vadd.f32 %v68, %v116
    %v165 = vadd.f32 %v69, %v117
    %v166 = vadd.f32 %v70, %v118
    %v167 = vadd.f32 %v71, %v119
    %v168 = vadd.f32 %v72, %v120
    %v169 = vadd.f32 %v73, %v121
    %v170 = vadd.f32 %v74, %v122
    %v171 = vadd.f32 %v75, %v123
    %v172 = vadd.f32 %v76, %v124
    %v173 = vadd.f32 %v77, %v125
    %v174 = vpack.c.bf16 %v127, %v126
    %v175 = vpack.c.bf16 %v129, %v128
    %v176 = vpack.c.bf16 %v131, %v130
    %v177 = vpack.c.bf16 %v133, %v132
    %v178 = vpack.c.bf16 %v135, %v134
    %v179 = vpack.c.bf16 %v137, %v136
    %v180 = vpack.c.bf16 %v139, %v138
    %v181 = vpack.c.bf16 %v141, %v140
    %v182 = vpack.c.bf16 %v143, %v142
    %v183 = vpack.c.bf16 %v145, %v144
    %v184 = vpack.c.bf16 %v147, %v146
    %v185 = vpack.c.bf16 %v149, %v148
    %v186 = vpack.c.bf16 %v151, %v150
    %v187 = vpack.c.bf16 %v153, %v152
    %v188 = vpack.c.bf16 %v155, %v154
    %v189 = vpack.c.bf16 %v157, %v156
    %v190 = vpack.c.bf16 %v159, %v158
    %v191 = vpack.c.bf16 %v161, %v160
    %v192 = vpack.c.bf16 %v163, %v162
    %v193 = vpack.c.bf16 %v165, %v164
    %v194 = vpack.c.bf16 %v167, %v166
    %v195 = vpack.c.bf16 %v169, %v168
    %v196 = vpack.c.bf16 %v171, %v170
    %v197 = vpack.c.bf16 %v173, %v172
    %v198 = vld [vmem:[#allocation2] sm:$0xff]
    %v199 = vld [vmem:[#allocation2 + $0x8] sm:$0xf]
    %v200 = vld [vmem:[#allocation2 + $0xc] sm:$0xff]
    %v201 = vld [vmem:[#allocation2 + $0x14] sm:$0xf]
    %v202 = vld [vmem:[#allocation2 + $0x18] sm:$0xff]
    %v203 = vld [vmem:[#allocation2 + $0x20] sm:$0xf]
    %v204 = vld [vmem:[#allocation2 + $0x24] sm:$0xff]
    %v205 = vld [vmem:[#allocation2 + $0x2c] sm:$0xf]
    %v206 = vld [vmem:[#allocation2 + $0x30] sm:$0xff]
    %v207 = vld [vmem:[#allocation2 + $0x38] sm:$0xf]
    %v208 = vld [vmem:[#allocation2 + $0x3c] sm:$0xff]
    %v209 = vld [vmem:[#allocation2 + $0x44] sm:$0xf]
    %v210 = vld [vmem:[#allocation2 + $0x48] sm:$0xff]
    %v211 = vld [vmem:[#allocation2 + $0x50] sm:$0xf]
    %v212 = vld [vmem:[#allocation2 + $0x54] sm:$0xff]
    %v213 = vld [vmem:[#allocation2 + $0x5c] sm:$0xf]
    %v214 = vld [vmem:[#allocation2 + $0x60] sm:$0xff]
    %v215 = vld [vmem:[#allocation2 + $0x68] sm:$0xf]
    %v216 = vld [vmem:[#allocation2 + $0x6c] sm:$0xff]
    %v217 = vld [vmem:[#allocation2 + $0x74] sm:$0xf]
    %v218 = vld [vmem:[#allocation2 + $0x78] sm:$0xff]
    %v219 = vld [vmem:[#allocation2 + $0x80] sm:$0xf]
    %v220 = vld [vmem:[#allocation2 + $0x84] sm:$0xff]
    %v221 = vld [vmem:[#allocation2 + $0x8c] sm:$0xf]
    %v222 = vld [vmem:[#allocation2 + $0x90] sm:$0xff]
    %v223 = vld [vmem:[#allocation2 + $0x98] sm:$0xf]
    %v224 = vld [vmem:[#allocation2 + $0x9c] sm:$0xff]
    %v225 = vld [vmem:[#allocation2 + $0xa4] sm:$0xf]
    %v226 = vld [vmem:[#allocation2 + $0xa8] sm:$0xff]
    %v227 = vld [vmem:[#allocation2 + $0xb0] sm:$0xf]
    %v228 = vld [vmem:[#allocation2 + $0xb4] sm:$0xff]
    %v229 = vld [vmem:[#allocation2 + $0xbc] sm:$0xf]
    %v230 = vld [vmem:[#allocation2 + $0xc0] sm:$0xff]
    %v231 = vld [vmem:[#allocation2 + $0xc8] sm:$0xf]
    %v232 = vld [vmem:[#allocation2 + $0xcc] sm:$0xff]
    %v233 = vld [vmem:[#allocation2 + $0xd4] sm:$0xf]
    %v234 = vld [vmem:[#allocation2 + $0xd8] sm:$0xff]
    %v235 = vld [vmem:[#allocation2 + $0xe0] sm:$0xf]
    %v236 = vld [vmem:[#allocation2 + $0xe4] sm:$0xff]
    %v237 = vld [vmem:[#allocation2 + $0xec] sm:$0xf]
    %v238 = vld [vmem:[#allocation2 + $0xf0] sm:$0xff]
    %v239 = vld [vmem:[#allocation2 + $0xf8] sm:$0xf]
    %v240 = vld [vmem:[#allocation2 + $0xfc] sm:$0xff]
    %v241 = vld [vmem:[#allocation2 + $0x104] sm:$0xf]
    %v242 = vld [vmem:[#allocation2 + $0x108] sm:$0xff]
    %v243 = vld [vmem:[#allocation2 + $0x110] sm:$0xf]
    %v244 = vld [vmem:[#allocation2 + $0x114] sm:$0xff]
    %v245 = vld [vmem:[#allocation2 + $0x11c] sm:$0xf]
    %v246 = vld [vmem:[#allocation2 + $0x120] sm:$0xff]
    %v247 = vld [vmem:[#allocation2 + $0x128] sm:$0xf]
    %v248 = vld [vmem:[#allocation2 + $0x12c] sm:$0xff]
    %v249 = vld [vmem:[#allocation2 + $0x134] sm:$0xf]
    %v250 = vld [vmem:[#allocation2 + $0x138] sm:$0xff]
    %v251 = vld [vmem:[#allocation2 + $0x140] sm:$0xf]
    %v252 = vld [vmem:[#allocation2 + $0x144] sm:$0xff]
    %v253 = vld [vmem:[#allocation2 + $0x14c] sm:$0xf]
    %v254 = vld [vmem:[#allocation2 + $0x150] sm:$0xff]
    %v255 = vld [vmem:[#allocation2 + $0x158] sm:$0xf]
    %v256 = vld [vmem:[#allocation2 + $0x15c] sm:$0xff]
    %v257 = vld [vmem:[#allocation2 + $0x164] sm:$0xf]
    %v258 = vld [vmem:[#allocation2 + $0x168] sm:$0xff]
    %v259 = vld [vmem:[#allocation2 + $0x170] sm:$0xf]
    %v260 = vld [vmem:[#allocation2 + $0x174] sm:$0xff]
    %v261 = vld [vmem:[#allocation2 + $0x17c] sm:$0xf]
    %v262 = vld [vmem:[#allocation2 + $0x180] sm:$0xff]
    %v263 = vld [vmem:[#allocation2 + $0x188] sm:$0xf]
    %v264 = vld [vmem:[#allocation2 + $0x18c] sm:$0xff]
    %v265 = vld [vmem:[#allocation2 + $0x194] sm:$0xf]
    %v266 = vld [vmem:[#allocation2 + $0x198] sm:$0xff]
    %v267 = vld [vmem:[#allocation2 + $0x1a0] sm:$0xf]
    %v268 = vld [vmem:[#allocation2 + $0x1a4] sm:$0xff]
    %v269 = vld [vmem:[#allocation2 + $0x1ac] sm:$0xf]
    %v270 = vld [vmem:[#allocation2 + $0x1b0] sm:$0xff]
    %v271 = vld [vmem:[#allocation2 + $0x1b8] sm:$0xf]
    %v272 = vld [vmem:[#allocation2 + $0x1bc] sm:$0xff]
    %v273 = vld [vmem:[#allocation2 + $0x1c4] sm:$0xf]
    %v274 = vld [vmem:[#allocation2 + $0x1c8] sm:$0xff]
    %v275 = vld [vmem:[#allocation2 + $0x1d0] sm:$0xf]
    %v276 = vld [vmem:[#allocation2 + $0x1d4] sm:$0xff]
    %v277 = vld [vmem:[#allocation2 + $0x1dc] sm:$0xf]
    %v278 = vld [vmem:[#allocation2 + $0x1e0] sm:$0xff]
    %v279 = vld [vmem:[#allocation2 + $0x1e8] sm:$0xf]
    %v280 = vld [vmem:[#allocation2 + $0x1ec] sm:$0xff]
    %v281 = vld [vmem:[#allocation2 + $0x1f4] sm:$0xf]
    %v282 = vld [vmem:[#allocation2 + $0x1f8] sm:$0xff]
    %v283 = vld [vmem:[#allocation2 + $0x200] sm:$0xf]
    %v284 = vld [vmem:[#allocation2 + $0x204] sm:$0xff]
    %v285 = vld [vmem:[#allocation2 + $0x20c] sm:$0xf]
    %v286 = vld [vmem:[#allocation2 + $0x210] sm:$0xff]
    %v287 = vld [vmem:[#allocation2 + $0x218] sm:$0xf]
    %v288 = vld [vmem:[#allocation2 + $0x21c] sm:$0xff]
    %v289 = vld [vmem:[#allocation2 + $0x224] sm:$0xf]
    %v290 = vld [vmem:[#allocation2 + $0x228] sm:$0xff]
    %v291 = vld [vmem:[#allocation2 + $0x230] sm:$0xf]
    %v292 = vld [vmem:[#allocation2 + $0x234] sm:$0xff]
    %v293 = vld [vmem:[#allocation2 + $0x23c] sm:$0xf]
    %v294 = vld [vmem:[#allocation2 + $0x240] sm:$0xff]
    %v295 = vld [vmem:[#allocation2 + $0x248] sm:$0xf]
    %v296 = vld [vmem:[#allocation2 + $0x24c] sm:$0xff]
    %v297 = vld [vmem:[#allocation2 + $0x254] sm:$0xf]
    %v298 = vld [vmem:[#allocation2 + $0x258] sm:$0xff]
    %v299 = vld [vmem:[#allocation2 + $0x260] sm:$0xf]
    %v300 = vld [vmem:[#allocation2 + $0x264] sm:$0xff]
    %v301 = vld [vmem:[#allocation2 + $0x26c] sm:$0xf]
    %v302 = vld [vmem:[#allocation2 + $0x270] sm:$0xff]
    %v303 = vld [vmem:[#allocation2 + $0x278] sm:$0xf]
    %v304 = vld [vmem:[#allocation2 + $0x27c] sm:$0xff]
    %v305 = vld [vmem:[#allocation2 + $0x284] sm:$0xf]
    %v306 = vld [vmem:[#allocation2 + $0x288] sm:$0xff]
    %v307 = vld [vmem:[#allocation2 + $0x290] sm:$0xf]
    %v308 = vld [vmem:[#allocation2 + $0x294] sm:$0xff]
    %v309 = vld [vmem:[#allocation2 + $0x29c] sm:$0xf]
    %v310 = vld [vmem:[#allocation2 + $0x2a0] sm:$0xff]
    %v311 = vld [vmem:[#allocation2 + $0x2a8] sm:$0xf]
    %v312 = vld [vmem:[#allocation2 + $0x2ac] sm:$0xff]
    %v313 = vld [vmem:[#allocation2 + $0x2b4] sm:$0xf]
    %v314 = vld [vmem:[#allocation2 + $0x2b8] sm:$0xff]
    %v315 = vld [vmem:[#allocation2 + $0x2c0] sm:$0xf]
    %v316 = vld [vmem:[#allocation2 + $0x2c4] sm:$0xff]
    %v317 = vld [vmem:[#allocation2 + $0x2cc] sm:$0xf]
    %v318 = vld [vmem:[#allocation2 + $0x2d0] sm:$0xff]
    %v319 = vld [vmem:[#allocation2 + $0x2d8] sm:$0xf]
    %v320 = vld [vmem:[#allocation2 + $0x2dc] sm:$0xff]
    %v321 = vld [vmem:[#allocation2 + $0x2e4] sm:$0xf]
    %v322 = vld [vmem:[#allocation2 + $0x2e8] sm:$0xff]
    %v323 = vld [vmem:[#allocation2 + $0x2f0] sm:$0xf]
    %v324 = vld [vmem:[#allocation2 + $0x2f4] sm:$0xff]
    %v325 = vld [vmem:[#allocation2 + $0x2fc] sm:$0xf]
    %v326 = vld [vmem:[#allocation2 + $0x300] sm:$0xff]
    %v327 = vld [vmem:[#allocation2 + $0x308] sm:$0xf]
    %v328 = vld [vmem:[#allocation2 + $0x30c] sm:$0xff]
    %v329 = vld [vmem:[#allocation2 + $0x314] sm:$0xf]
    %v330 = vld [vmem:[#allocation2 + $0x318] sm:$0xff]
    %v331 = vld [vmem:[#allocation2 + $0x320] sm:$0xf]
    %v332 = vld [vmem:[#allocation2 + $0x324] sm:$0xff]
    %v333 = vld [vmem:[#allocation2 + $0x32c] sm:$0xf]
    %v334 = vld [vmem:[#allocation2 + $0x330] sm:$0xff]
    %v335 = vld [vmem:[#allocation2 + $0x338] sm:$0xf]
    %v336 = vld [vmem:[#allocation2 + $0x33c] sm:$0xff]
    %v337 = vld [vmem:[#allocation2 + $0x344] sm:$0xf]
    %v338 = vld [vmem:[#allocation2 + $0x348] sm:$0xff]
    %v339 = vld [vmem:[#allocation2 + $0x350] sm:$0xf]
    %v340 = vld [vmem:[#allocation2 + $0x354] sm:$0xff]
    %v341 = vld [vmem:[#allocation2 + $0x35c] sm:$0xf]
    %v342 = vld [vmem:[#allocation2 + $0x360] sm:$0xff]
    %v343 = vld [vmem:[#allocation2 + $0x368] sm:$0xf]
    %v344 = vld [vmem:[#allocation2 + $0x36c] sm:$0xff]
    %v345 = vld [vmem:[#allocation2 + $0x374] sm:$0xf]
    %v346 = vld [vmem:[#allocation2 + $0x378] sm:$0xff]
    %v347 = vld [vmem:[#allocation2 + $0x380] sm:$0xf]
    %v348 = vld [vmem:[#allocation2 + $0x384] sm:$0xff]
    %v349 = vld [vmem:[#allocation2 + $0x38c] sm:$0xf]
    %v350 = vld [vmem:[#allocation2 + $0x390] sm:$0xff]
    %v351 = vld [vmem:[#allocation2 + $0x398] sm:$0xf]
    %v352 = vld [vmem:[#allocation2 + $0x39c] sm:$0xff]
    %v353 = vld [vmem:[#allocation2 + $0x3a4] sm:$0xf]
    %v354 = vld [vmem:[#allocation2 + $0x3a8] sm:$0xff]
    %v355 = vld [vmem:[#allocation2 + $0x3b0] sm:$0xf]
    %v356 = vld [vmem:[#allocation2 + $0x3b4] sm:$0xff]
    %v357 = vld [vmem:[#allocation2 + $0x3bc] sm:$0xf]
    %v358 = vld [vmem:[#allocation2 + $0x3c0] sm:$0xff]
    %v359 = vld [vmem:[#allocation2 + $0x3c8] sm:$0xf]
    %v360 = vld [vmem:[#allocation2 + $0x3cc] sm:$0xff]
    %v361 = vld [vmem:[#allocation2 + $0x3d4] sm:$0xf]
    %v362 = vld [vmem:[#allocation2 + $0x3d8] sm:$0xff]
    %v363 = vld [vmem:[#allocation2 + $0x3e0] sm:$0xf]
    %v364 = vld [vmem:[#allocation2 + $0x3e4] sm:$0xff]
    %v365 = vld [vmem:[#allocation2 + $0x3ec] sm:$0xf]
    %v366 = vld [vmem:[#allocation2 + $0x3f0] sm:$0xff]
    %v367 = vld [vmem:[#allocation2 + $0x3f8] sm:$0xf]
    %v368 = vld [vmem:[#allocation2 + $0x3fc] sm:$0xff]
    %v369 = vld [vmem:[#allocation2 + $0x404] sm:$0xf]
    %v370 = vld [vmem:[#allocation2 + $0x408] sm:$0xff]
    %v371 = vld [vmem:[#allocation2 + $0x410] sm:$0xf]
    %v372 = vld [vmem:[#allocation2 + $0x414] sm:$0xff]
    %v373 = vld [vmem:[#allocation2 + $0x41c] sm:$0xf]
    %v374 = vld [vmem:[#allocation2 + $0x420] sm:$0xff]
    %v375 = vld [vmem:[#allocation2 + $0x428] sm:$0xf]
    %v376 = vld [vmem:[#allocation2 + $0x42c] sm:$0xff]
    %v377 = vld [vmem:[#allocation2 + $0x434] sm:$0xf]
    %v378 = vld [vmem:[#allocation2 + $0x438] sm:$0xff]
    %v379 = vld [vmem:[#allocation2 + $0x440] sm:$0xf]
    %v380 = vld [vmem:[#allocation2 + $0x444] sm:$0xff]
    %v381 = vld [vmem:[#allocation2 + $0x44c] sm:$0xf]
    %v382 = vld [vmem:[#allocation2 + $0x450] sm:$0xff]
    %v383 = vld [vmem:[#allocation2 + $0x458] sm:$0xf]
    %v384 = vld [vmem:[#allocation2 + $0x45c] sm:$0xff]
    %v385 = vld [vmem:[#allocation2 + $0x464] sm:$0xf]
    %v386 = vld [vmem:[#allocation2 + $0x468] sm:$0xff]
    %v387 = vld [vmem:[#allocation2 + $0x470] sm:$0xf]
    %v388 = vld [vmem:[#allocation2 + $0x474] sm:$0xff]
    %v389 = vld [vmem:[#allocation2 + $0x47c] sm:$0xf]
    %v390 = vld [vmem:[#allocation2 + $0x480] sm:$0xff]
    %v391 = vld [vmem:[#allocation2 + $0x488] sm:$0xf]
    %v392 = vld [vmem:[#allocation2 + $0x48c] sm:$0xff]
    %v393 = vld [vmem:[#allocation2 + $0x494] sm:$0xf]
    %v394 = vld [vmem:[#allocation2 + $0x498] sm:$0xff]
    %v395 = vld [vmem:[#allocation2 + $0x4a0] sm:$0xf]
    %v396 = vld [vmem:[#allocation2 + $0x4a4] sm:$0xff]
    %v397 = vld [vmem:[#allocation2 + $0x4ac] sm:$0xf]
    %v398 = vld [vmem:[#allocation2 + $0x4b0] sm:$0xff]
    %v399 = vld [vmem:[#allocation2 + $0x4b8] sm:$0xf]
    %v400 = vld [vmem:[#allocation2 + $0x4bc] sm:$0xff]
    %v401 = vld [vmem:[#allocation2 + $0x4c4] sm:$0xf]
    %v402 = vld [vmem:[#allocation2 + $0x4c8] sm:$0xff]
    %v403 = vld [vmem:[#allocation2 + $0x4d0] sm:$0xf]
    %v404 = vld [vmem:[#allocation2 + $0x4d4] sm:$0xff]
    %v405 = vld [vmem:[#allocation2 + $0x4dc] sm:$0xf]
    %v406 = vld [vmem:[#allocation2 + $0x4e0] sm:$0xff]
    %v407 = vld [vmem:[#allocation2 + $0x4e8] sm:$0xf]
    %v408 = vld [vmem:[#allocation2 + $0x4ec] sm:$0xff]
    %v409 = vld [vmem:[#allocation2 + $0x4f4] sm:$0xf]
    %v410 = vld [vmem:[#allocation2 + $0x4f8] sm:$0xff]
    %v411 = vld [vmem:[#allocation2 + $0x500] sm:$0xf]
    %v412 = vld [vmem:[#allocation2 + $0x504] sm:$0xff]
    %v413 = vld [vmem:[#allocation2 + $0x50c] sm:$0xf]
    %v414 = vld [vmem:[#allocation2 + $0x510] sm:$0xff]
    %v415 = vld [vmem:[#allocation2 + $0x518] sm:$0xf]
    %v416 = vld [vmem:[#allocation2 + $0x51c] sm:$0xff]
    %v417 = vld [vmem:[#allocation2 + $0x524] sm:$0xf]
    %v418 = vld [vmem:[#allocation2 + $0x528] sm:$0xff]
    %v419 = vld [vmem:[#allocation2 + $0x530] sm:$0xf]
    %v420 = vld [vmem:[#allocation2 + $0x534] sm:$0xff]
    %v421 = vld [vmem:[#allocation2 + $0x53c] sm:$0xf]
    %v422 = vld [vmem:[#allocation2 + $0x540] sm:$0xff]
    %v423 = vld [vmem:[#allocation2 + $0x548] sm:$0xf]
    %v424 = vld [vmem:[#allocation2 + $0x54c] sm:$0xff]
    %v425 = vld [vmem:[#allocation2 + $0x554] sm:$0xf]
    %v426 = vld [vmem:[#allocation2 + $0x558] sm:$0xff]
    %v427 = vld [vmem:[#allocation2 + $0x560] sm:$0xf]
    %v428 = vld [vmem:[#allocation2 + $0x564] sm:$0xff]
    %v429 = vld [vmem:[#allocation2 + $0x56c] sm:$0xf]
    %v430 = vld [vmem:[#allocation2 + $0x570] sm:$0xff]
    %v431 = vld [vmem:[#allocation2 + $0x578] sm:$0xf]
    %v432 = vld [vmem:[#allocation2 + $0x57c] sm:$0xff]
    %v433 = vld [vmem:[#allocation2 + $0x584] sm:$0xf]
    %v434 = vld [vmem:[#allocation2 + $0x588] sm:$0xff]
    %v435 = vld [vmem:[#allocation2 + $0x590] sm:$0xf]
    %v436 = vld [vmem:[#allocation2 + $0x594] sm:$0xff]
    %v437 = vld [vmem:[#allocation2 + $0x59c] sm:$0xf]
    %v438 = vld [vmem:[#allocation2 + $0x5a0] sm:$0xff]
    %v439 = vld [vmem:[#allocation2 + $0x5a8] sm:$0xf]
    %v440 = vld [vmem:[#allocation2 + $0x5ac] sm:$0xff]
    %v441 = vld [vmem:[#allocation2 + $0x5b4] sm:$0xf]
    %v442 = vld [vmem:[#allocation2 + $0x5b8] sm:$0xff]
    %v443 = vld [vmem:[#allocation2 + $0x5c0] sm:$0xf]
    %v444 = vld [vmem:[#allocation2 + $0x5c4] sm:$0xff]
    %v445 = vld [vmem:[#allocation2 + $0x5cc] sm:$0xf]
    %v446 = vld [vmem:[#allocation2 + $0x5d0] sm:$0xff]
    %v447 = vld [vmem:[#allocation2 + $0x5d8] sm:$0xf]
    %v448 = vld [vmem:[#allocation2 + $0x5dc] sm:$0xff]
    %v449 = vld [vmem:[#allocation2 + $0x5e4] sm:$0xf]
    %v450 = vld [vmem:[#allocation2 + $0x5e8] sm:$0xff]
    %v451 = vld [vmem:[#allocation2 + $0x5f0] sm:$0xf]
    %v452 = vld [vmem:[#allocation2 + $0x5f4] sm:$0xff]
    %v453 = vld [vmem:[#allocation2 + $0x5fc] sm:$0xf]
    %v454 = vld [vmem:[#allocation2 + $0x600] sm:$0xff]
    %v455 = vld [vmem:[#allocation2 + $0x608] sm:$0xf]
    %v456 = vld [vmem:[#allocation2 + $0x60c] sm:$0xff]
    %v457 = vld [vmem:[#allocation2 + $0x614] sm:$0xf]
    %v458 = vld [vmem:[#allocation2 + $0x618] sm:$0xff]
    %v459 = vld [vmem:[#allocation2 + $0x620] sm:$0xf]
    %v460 = vld [vmem:[#allocation2 + $0x624] sm:$0xff]
    %v461 = vld [vmem:[#allocation2 + $0x62c] sm:$0xf]
    %v462 = vld [vmem:[#allocation2 + $0x630] sm:$0xff]
    %v463 = vld [vmem:[#allocation2 + $0x638] sm:$0xf]
    %v464 = vld [vmem:[#allocation2 + $0x63c] sm:$0xff]
    %v465 = vld [vmem:[#allocation2 + $0x644] sm:$0xf]
    %v466 = vld [vmem:[#allocation2 + $0x648] sm:$0xff]
    %v467 = vld [vmem:[#allocation2 + $0x650] sm:$0xf]
    %v468 = vld [vmem:[#allocation2 + $0x654] sm:$0xff]
    %v469 = vld [vmem:[#allocation2 + $0x65c] sm:$0xf]
    %v470 = vld [vmem:[#allocation2 + $0x660] sm:$0xff]
    %v471 = vld [vmem:[#allocation2 + $0x668] sm:$0xf]
    %v472 = vld [vmem:[#allocation2 + $0x66c] sm:$0xff]
    %v473 = vld [vmem:[#allocation2 + $0x674] sm:$0xf]
    %v474 = vld [vmem:[#allocation2 + $0x678] sm:$0xff]
    %v475 = vld [vmem:[#allocation2 + $0x680] sm:$0xf]
    %v476 = vld [vmem:[#allocation2 + $0x684] sm:$0xff]
    %v477 = vld [vmem:[#allocation2 + $0x68c] sm:$0xf]
    %v478 = vld [vmem:[#allocation2 + $0x690] sm:$0xff]
    %v479 = vld [vmem:[#allocation2 + $0x698] sm:$0xf]
    %v480 = vld [vmem:[#allocation2 + $0x69c] sm:$0xff]
    %v481 = vld [vmem:[#allocation2 + $0x6a4] sm:$0xf]
    %v482 = vld [vmem:[#allocation2 + $0x6a8] sm:$0xff]
    %v483 = vld [vmem:[#allocation2 + $0x6b0] sm:$0xf]
    %v484 = vld [vmem:[#allocation2 + $0x6b4] sm:$0xff]
    %v485 = vld [vmem:[#allocation2 + $0x6bc] sm:$0xf]
    %v486 = vld [vmem:[#allocation2 + $0x6c0] sm:$0xff]
    %v487 = vld [vmem:[#allocation2 + $0x6c8] sm:$0xf]
    %v488 = vld [vmem:[#allocation2 + $0x6cc] sm:$0xff]
    %v489 = vld [vmem:[#allocation2 + $0x6d4] sm:$0xf]
    %v490 = vld [vmem:[#allocation2 + $0x6d8] sm:$0xff]
    %v491 = vld [vmem:[#allocation2 + $0x6e0] sm:$0xf]
    %v492 = vld [vmem:[#allocation2 + $0x6e4] sm:$0xff]
    %v493 = vld [vmem:[#allocation2 + $0x6ec] sm:$0xf]
    %v494 = vld [vmem:[#allocation2 + $0x6f0] sm:$0xff]
    %v495 = vld [vmem:[#allocation2 + $0x6f8] sm:$0xf]
    %v496 = vld [vmem:[#allocation2 + $0x6fc] sm:$0xff]
    %v497 = vld [vmem:[#allocation2 + $0x704] sm:$0xf]
    %v498 = vld [vmem:[#allocation2 + $0x708] sm:$0xff]
    %v499 = vld [vmem:[#allocation2 + $0x710] sm:$0xf]
    %v500 = vld [vmem:[#allocation2 + $0x714] sm:$0xff]
    %v501 = vld [vmem:[#allocation2 + $0x71c] sm:$0xf]
    %v502 = vld [vmem:[#allocation2 + $0x720] sm:$0xff]
    %v503 = vld [vmem:[#allocation2 + $0x728] sm:$0xf]
    %v504 = vld [vmem:[#allocation2 + $0x72c] sm:$0xff]
    %v505 = vld [vmem:[#allocation2 + $0x734] sm:$0xf]
    %v506 = vld [vmem:[#allocation2 + $0x738] sm:$0xff]
    %v507 = vld [vmem:[#allocation2 + $0x740] sm:$0xf]
    %v508 = vld [vmem:[#allocation2 + $0x744] sm:$0xff]
    %v509 = vld [vmem:[#allocation2 + $0x74c] sm:$0xf]
    %v510 = vld [vmem:[#allocation2 + $0x750] sm:$0xff]
    %v511 = vld [vmem:[#allocation2 + $0x758] sm:$0xf]
    %v512 = vld [vmem:[#allocation2 + $0x75c] sm:$0xff]
    %v513 = vld [vmem:[#allocation2 + $0x764] sm:$0xf]
    %v514 = vld [vmem:[#allocation2 + $0x768] sm:$0xff]
    %v515 = vld [vmem:[#allocation2 + $0x770] sm:$0xf]
    %v516 = vld [vmem:[#allocation2 + $0x774] sm:$0xff]
    %v517 = vld [vmem:[#allocation2 + $0x77c] sm:$0xf]
    %v518 = vld [vmem:[#allocation2 + $0x780] sm:$0xff]
    %v519 = vld [vmem:[#allocation2 + $0x788] sm:$0xf]
    %v520 = vld [vmem:[#allocation2 + $0x78c] sm:$0xff]
    %v521 = vld [vmem:[#allocation2 + $0x794] sm:$0xf]
    %v522 = vld [vmem:[#allocation2 + $0x798] sm:$0xff]
    %v523 = vld [vmem:[#allocation2 + $0x7a0] sm:$0xf]
    %v524 = vld [vmem:[#allocation2 + $0x7a4] sm:$0xff]
    %v525 = vld [vmem:[#allocation2 + $0x7ac] sm:$0xf]
    %v526 = vld [vmem:[#allocation2 + $0x7b0] sm:$0xff]
    %v527 = vld [vmem:[#allocation2 + $0x7b8] sm:$0xf]
    %v528 = vld [vmem:[#allocation2 + $0x7bc] sm:$0xff]
    %v529 = vld [vmem:[#allocation2 + $0x7c4] sm:$0xf]
    %v530 = vld [vmem:[#allocation2 + $0x7c8] sm:$0xff]
    %v531 = vld [vmem:[#allocation2 + $0x7d0] sm:$0xf]
    %v532 = vld [vmem:[#allocation2 + $0x7d4] sm:$0xff]
    %v533 = vld [vmem:[#allocation2 + $0x7dc] sm:$0xf]
    %v534 = vld [vmem:[#allocation2 + $0x7e0] sm:$0xff]
    %v535 = vld [vmem:[#allocation2 + $0x7e8] sm:$0xf]
    %v536 = vld [vmem:[#allocation2 + $0x7ec] sm:$0xff]
    %v537 = vld [vmem:[#allocation2 + $0x7f4] sm:$0xf]
    %v538 = vld [vmem:[#allocation2 + $0x7f8] sm:$0xff]
    %v539 = vld [vmem:[#allocation2 + $0x800] sm:$0xf]
    %v540 = vld [vmem:[#allocation2 + $0x804] sm:$0xff]
    %v541 = vld [vmem:[#allocation2 + $0x80c] sm:$0xf]
    %v542 = vld [vmem:[#allocation2 + $0x810] sm:$0xff]
    %v543 = vld [vmem:[#allocation2 + $0x818] sm:$0xf]
    %v544 = vld [vmem:[#allocation2 + $0x81c] sm:$0xff]
    %v545 = vld [vmem:[#allocation2 + $0x824] sm:$0xf]
    %v546 = vld [vmem:[#allocation2 + $0x828] sm:$0xff]
    %v547 = vld [vmem:[#allocation2 + $0x830] sm:$0xf]
    %v548 = vld [vmem:[#allocation2 + $0x834] sm:$0xff]
    %v549 = vld [vmem:[#allocation2 + $0x83c] sm:$0xf]
    %v550 = vld [vmem:[#allocation2 + $0x840] sm:$0xff]
    %v551 = vld [vmem:[#allocation2 + $0x848] sm:$0xf]
    %v552 = vld [vmem:[#allocation2 + $0x84c] sm:$0xff]
    %v553 = vld [vmem:[#allocation2 + $0x854] sm:$0xf]
    %v554 = vld [vmem:[#allocation2 + $0x858] sm:$0xff]
    %v555 = vld [vmem:[#allocation2 + $0x860] sm:$0xf]
    %v556 = vld [vmem:[#allocation2 + $0x864] sm:$0xff]
    %v557 = vld [vmem:[#allocation2 + $0x86c] sm:$0xf]
    %v558 = vld [vmem:[#allocation2 + $0x870] sm:$0xff]
    %v559 = vld [vmem:[#allocation2 + $0x878] sm:$0xf]
    %v560 = vld [vmem:[#allocation2 + $0x87c] sm:$0xff]
    %v561 = vld [vmem:[#allocation2 + $0x884] sm:$0xf]
    %v562 = vld [vmem:[#allocation2 + $0x888] sm:$0xff]
    %v563 = vld [vmem:[#allocation2 + $0x890] sm:$0xf]
    %v564 = vld [vmem:[#allocation2 + $0x894] sm:$0xff]
    %v565 = vld [vmem:[#allocation2 + $0x89c] sm:$0xf]
    %v566 = vld [vmem:[#allocation2 + $0x8a0] sm:$0xff]
    %v567 = vld [vmem:[#allocation2 + $0x8a8] sm:$0xf]
    %v568 = vld [vmem:[#allocation2 + $0x8ac] sm:$0xff]
    %v569 = vld [vmem:[#allocation2 + $0x8b4] sm:$0xf]
    %v570 = vld [vmem:[#allocation2 + $0x8b8] sm:$0xff]
    %v571 = vld [vmem:[#allocation2 + $0x8c0] sm:$0xf]
    %v572 = vld [vmem:[#allocation2 + $0x8c4] sm:$0xff]
    %v573 = vld [vmem:[#allocation2 + $0x8cc] sm:$0xf]
    %v574 = vld [vmem:[#allocation2 + $0x8d0] sm:$0xff]
    %v575 = vld [vmem:[#allocation2 + $0x8d8] sm:$0xf]
    %v576 = vld [vmem:[#allocation2 + $0x8dc] sm:$0xff]
    %v577 = vld [vmem:[#allocation2 + $0x8e4] sm:$0xf]
    %v578 = vld [vmem:[#allocation2 + $0x8e8] sm:$0xff]
    %v579 = vld [vmem:[#allocation2 + $0x8f0] sm:$0xf]
    %v580 = vld [vmem:[#allocation2 + $0x8f4] sm:$0xff]
    %v581 = vld [vmem:[#allocation2 + $0x8fc] sm:$0xf]
    %v582 = vld [vmem:[#allocation2 + $0x900] sm:$0xff]
    %v583 = vld [vmem:[#allocation2 + $0x908] sm:$0xf]
    %v584 = vld [vmem:[#allocation2 + $0x90c] sm:$0xff]
    %v585 = vld [vmem:[#allocation2 + $0x914] sm:$0xf]
    %v586 = vld [vmem:[#allocation2 + $0x918] sm:$0xff]
    %v587 = vld [vmem:[#allocation2 + $0x920] sm:$0xf]
    %v588 = vld [vmem:[#allocation2 + $0x924] sm:$0xff]
    %v589 = vld [vmem:[#allocation2 + $0x92c] sm:$0xf]
    %v590 = vld [vmem:[#allocation2 + $0x930] sm:$0xff]
    %v591 = vld [vmem:[#allocation2 + $0x938] sm:$0xf]
    %v592 = vld [vmem:[#allocation2 + $0x93c] sm:$0xff]
    %v593 = vld [vmem:[#allocation2 + $0x944] sm:$0xf]
    %v594 = vld [vmem:[#allocation2 + $0x948] sm:$0xff]
    %v595 = vld [vmem:[#allocation2 + $0x950] sm:$0xf]
    %v596 = vld [vmem:[#allocation2 + $0x954] sm:$0xff]
    %v597 = vld [vmem:[#allocation2 + $0x95c] sm:$0xf]
    %v598 = vld [vmem:[#allocation2 + $0x960] sm:$0xff]
    %v599 = vld [vmem:[#allocation2 + $0x968] sm:$0xf]
    %v600 = vld [vmem:[#allocation2 + $0x96c] sm:$0xff]
    %v601 = vld [vmem:[#allocation2 + $0x974] sm:$0xf]
    %v602 = vld [vmem:[#allocation2 + $0x978] sm:$0xff]
    %v603 = vld [vmem:[#allocation2 + $0x980] sm:$0xf]
    %v604 = vld [vmem:[#allocation2 + $0x984] sm:$0xff]
    %v605 = vld [vmem:[#allocation2 + $0x98c] sm:$0xf]
    %v606 = vld [vmem:[#allocation2 + $0x990] sm:$0xff]
    %v607 = vld [vmem:[#allocation2 + $0x998] sm:$0xf]
    %v608 = vld [vmem:[#allocation2 + $0x99c] sm:$0xff]
    %v609 = vld [vmem:[#allocation2 + $0x9a4] sm:$0xf]
    %v610 = vld [vmem:[#allocation2 + $0x9a8] sm:$0xff]
    %v611 = vld [vmem:[#allocation2 + $0x9b0] sm:$0xf]
    %v612 = vld [vmem:[#allocation2 + $0x9b4] sm:$0xff]
    %v613 = vld [vmem:[#allocation2 + $0x9bc] sm:$0xf]
    %v614 = vld [vmem:[#allocation2 + $0x9c0] sm:$0xff]
    %v615 = vld [vmem:[#allocation2 + $0x9c8] sm:$0xf]
    %v616 = vld [vmem:[#allocation2 + $0x9cc] sm:$0xff]
    %v617 = vld [vmem:[#allocation2 + $0x9d4] sm:$0xf]
    %v618 = vld [vmem:[#allocation2 + $0x9d8] sm:$0xff]
    %v619 = vld [vmem:[#allocation2 + $0x9e0] sm:$0xf]
    %v620 = vld [vmem:[#allocation2 + $0x9e4] sm:$0xff]
    %v621 = vld [vmem:[#allocation2 + $0x9ec] sm:$0xf]
    %v622 = vld [vmem:[#allocation2 + $0x9f0] sm:$0xff]
    %v623 = vld [vmem:[#allocation2 + $0x9f8] sm:$0xf]
    %v624 = vld [vmem:[#allocation2 + $0x9fc] sm:$0xff]
    %v625 = vld [vmem:[#allocation2 + $0xa04] sm:$0xf]
    %v626 = vld [vmem:[#allocation2 + $0xa08] sm:$0xff]
    %v627 = vld [vmem:[#allocation2 + $0xa10] sm:$0xf]
    %v628 = vld [vmem:[#allocation2 + $0xa14] sm:$0xff]
    %v629 = vld [vmem:[#allocation2 + $0xa1c] sm:$0xf]
    %v630 = vld [vmem:[#allocation2 + $0xa20] sm:$0xff]
    %v631 = vld [vmem:[#allocation2 + $0xa28] sm:$0xf]
    %v632 = vld [vmem:[#allocation2 + $0xa2c] sm:$0xff]
    %v633 = vld [vmem:[#allocation2 + $0xa34] sm:$0xf]
    %v634 = vld [vmem:[#allocation2 + $0xa38] sm:$0xff]
    %v635 = vld [vmem:[#allocation2 + $0xa40] sm:$0xf]
    %v636 = vld [vmem:[#allocation2 + $0xa44] sm:$0xff]
    %v637 = vld [vmem:[#allocation2 + $0xa4c] sm:$0xf]
    %v638 = vld [vmem:[#allocation2 + $0xa50] sm:$0xff]
    %v639 = vld [vmem:[#allocation2 + $0xa58] sm:$0xf]
    %v640 = vld [vmem:[#allocation2 + $0xa5c] sm:$0xff]
    %v641 = vld [vmem:[#allocation2 + $0xa64] sm:$0xf]
    %v642 = vld [vmem:[#allocation2 + $0xa68] sm:$0xff]
    %v643 = vld [vmem:[#allocation2 + $0xa70] sm:$0xf]
    %v644 = vld [vmem:[#allocation2 + $0xa74] sm:$0xff]
    %v645 = vld [vmem:[#allocation2 + $0xa7c] sm:$0xf]
    %v646 = vld [vmem:[#allocation2 + $0xa80] sm:$0xff]
    %v647 = vld [vmem:[#allocation2 + $0xa88] sm:$0xf]
    %v648 = vld [vmem:[#allocation2 + $0xa8c] sm:$0xff]
    %v649 = vld [vmem:[#allocation2 + $0xa94] sm:$0xf]
    %v650 = vld [vmem:[#allocation2 + $0xa98] sm:$0xff]
    %v651 = vld [vmem:[#allocation2 + $0xaa0] sm:$0xf]
    %v652 = vld [vmem:[#allocation2 + $0xaa4] sm:$0xff]
    %v653 = vld [vmem:[#allocation2 + $0xaac] sm:$0xf]
    %v654 = vld [vmem:[#allocation2 + $0xab0] sm:$0xff]
    %v655 = vld [vmem:[#allocation2 + $0xab8] sm:$0xf]
    %v656 = vld [vmem:[#allocation2 + $0xabc] sm:$0xff]
    %v657 = vld [vmem:[#allocation2 + $0xac4] sm:$0xf]
    %v658 = vld [vmem:[#allocation2 + $0xac8] sm:$0xff]
    %v659 = vld [vmem:[#allocation2 + $0xad0] sm:$0xf]
    %v660 = vld [vmem:[#allocation2 + $0xad4] sm:$0xff]
    %v661 = vld [vmem:[#allocation2 + $0xadc] sm:$0xf]
    %v662 = vld [vmem:[#allocation2 + $0xae0] sm:$0xff]
    %v663 = vld [vmem:[#allocation2 + $0xae8] sm:$0xf]
    %v664 = vld [vmem:[#allocation2 + $0xaec] sm:$0xff]
    %v665 = vld [vmem:[#allocation2 + $0xaf4] sm:$0xf]
    %v666 = vld [vmem:[#allocation2 + $0xaf8] sm:$0xff]
    %v667 = vld [vmem:[#allocation2 + $0xb00] sm:$0xf]
    %v668 = vld [vmem:[#allocation2 + $0xb04] sm:$0xff]
    %v669 = vld [vmem:[#allocation2 + $0xb0c] sm:$0xf]
    %v670 = vld [vmem:[#allocation2 + $0xb10] sm:$0xff]
    %v671 = vld [vmem:[#allocation2 + $0xb18] sm:$0xf]
    %v672 = vld [vmem:[#allocation2 + $0xb1c] sm:$0xff]
    %v673 = vld [vmem:[#allocation2 + $0xb24] sm:$0xf]
    %v674 = vld [vmem:[#allocation2 + $0xb28] sm:$0xff]
    %v675 = vld [vmem:[#allocation2 + $0xb30] sm:$0xf]
    %v676 = vld [vmem:[#allocation2 + $0xb34] sm:$0xff]
    %v677 = vld [vmem:[#allocation2 + $0xb3c] sm:$0xf]
    %v678 = vld [vmem:[#allocation2 + $0xb40] sm:$0xff]
    %v679 = vld [vmem:[#allocation2 + $0xb48] sm:$0xf]
    %v680 = vld [vmem:[#allocation2 + $0xb4c] sm:$0xff]
    %v681 = vld [vmem:[#allocation2 + $0xb54] sm:$0xf]
    %v682 = vld [vmem:[#allocation2 + $0xb58] sm:$0xff]
    %v683 = vld [vmem:[#allocation2 + $0xb60] sm:$0xf]
    %v684 = vld [vmem:[#allocation2 + $0xb64] sm:$0xff]
    %v685 = vld [vmem:[#allocation2 + $0xb6c] sm:$0xf]
    %v686 = vld [vmem:[#allocation2 + $0xb70] sm:$0xff]
    %v687 = vld [vmem:[#allocation2 + $0xb78] sm:$0xf]
    %v688 = vld [vmem:[#allocation2 + $0xb7c] sm:$0xff]
    %v689 = vld [vmem:[#allocation2 + $0xb84] sm:$0xf]
    %v690 = vld [vmem:[#allocation2 + $0xb88] sm:$0xff]
    %v691 = vld [vmem:[#allocation2 + $0xb90] sm:$0xf]
    %v692 = vld [vmem:[#allocation2 + $0xb94] sm:$0xff]
    %v693 = vld [vmem:[#allocation2 + $0xb9c] sm:$0xf]
    %v694 = vld [vmem:[#allocation2 + $0xba0] sm:$0xff]
    %v695 = vld [vmem:[#allocation2 + $0xba8] sm:$0xf]
    %v696 = vld [vmem:[#allocation2 + $0xbac] sm:$0xff]
    %v697 = vld [vmem:[#allocation2 + $0xbb4] sm:$0xf]
    %v698 = vld [vmem:[#allocation2 + $0xbb8] sm:$0xff]
    %v699 = vld [vmem:[#allocation2 + $0xbc0] sm:$0xf]
    %v700 = vld [vmem:[#allocation2 + $0xbc4] sm:$0xff]
    %v701 = vld [vmem:[#allocation2 + $0xbcc] sm:$0xf]
    %v702 = vld [vmem:[#allocation2 + $0xbd0] sm:$0xff]
    %v703 = vld [vmem:[#allocation2 + $0xbd8] sm:$0xf]
    %v704 = vld [vmem:[#allocation2 + $0xbdc] sm:$0xff]
    %v705 = vld [vmem:[#allocation2 + $0xbe4] sm:$0xf]
    %v706 = vld [vmem:[#allocation2 + $0xbe8] sm:$0xff]
    %v707 = vld [vmem:[#allocation2 + $0xbf0] sm:$0xf]
    %v708 = vld [vmem:[#allocation2 + $0xbf4] sm:$0xff]
    %v709 = vld [vmem:[#allocation2 + $0xbfc] sm:$0xf]
    %v710 = vld [vmem:[#allocation2 + $0xc00] sm:$0xff]
    %v711 = vld [vmem:[#allocation2 + $0xc08] sm:$0xf]
    %v712 = vld [vmem:[#allocation2 + $0xc0c] sm:$0xff]
    %v713 = vld [vmem:[#allocation2 + $0xc14] sm:$0xf]
    %v714 = vld [vmem:[#allocation2 + $0xc18] sm:$0xff]
    %v715 = vld [vmem:[#allocation2 + $0xc20] sm:$0xf]
    %v716 = vld [vmem:[#allocation2 + $0xc24] sm:$0xff]
    %v717 = vld [vmem:[#allocation2 + $0xc2c] sm:$0xf]
    %v718 = vld [vmem:[#allocation2 + $0xc30] sm:$0xff]
    %v719 = vld [vmem:[#allocation2 + $0xc38] sm:$0xf]
    %v720 = vld [vmem:[#allocation2 + $0xc3c] sm:$0xff]
    %v721 = vld [vmem:[#allocation2 + $0xc44] sm:$0xf]
    %v722 = vld [vmem:[#allocation2 + $0xc48] sm:$0xff]
    %v723 = vld [vmem:[#allocation2 + $0xc50] sm:$0xf]
    %v724 = vld [vmem:[#allocation2 + $0xc54] sm:$0xff]
    %v725 = vld [vmem:[#allocation2 + $0xc5c] sm:$0xf]
    %v726 = vld [vmem:[#allocation2 + $0xc60] sm:$0xff]
    %v727 = vld [vmem:[#allocation2 + $0xc68] sm:$0xf]
    %v728 = vld [vmem:[#allocation2 + $0xc6c] sm:$0xff]
    %v729 = vld [vmem:[#allocation2 + $0xc74] sm:$0xf]
    %v730 = vld [vmem:[#allocation2 + $0xc78] sm:$0xff]
    %v731 = vld [vmem:[#allocation2 + $0xc80] sm:$0xf]
    %v732 = vld [vmem:[#allocation2 + $0xc84] sm:$0xff]
    %v733 = vld [vmem:[#allocation2 + $0xc8c] sm:$0xf]
    %v734 = vld [vmem:[#allocation2 + $0xc90] sm:$0xff]
    %v735 = vld [vmem:[#allocation2 + $0xc98] sm:$0xf]
    %v736 = vld [vmem:[#allocation2 + $0xc9c] sm:$0xff]
    %v737 = vld [vmem:[#allocation2 + $0xca4] sm:$0xf]
    %v738 = vld [vmem:[#allocation2 + $0xca8] sm:$0xff]
    %v739 = vld [vmem:[#allocation2 + $0xcb0] sm:$0xf]
    %v740 = vld [vmem:[#allocation2 + $0xcb4] sm:$0xff]
    %v741 = vld [vmem:[#allocation2 + $0xcbc] sm:$0xf]
    %v742 = vld [vmem:[#allocation2 + $0xcc0] sm:$0xff]
    %v743 = vld [vmem:[#allocation2 + $0xcc8] sm:$0xf]
    %v744 = vld [vmem:[#allocation2 + $0xccc] sm:$0xff]
    %v745 = vld [vmem:[#allocation2 + $0xcd4] sm:$0xf]
    %v746 = vld [vmem:[#allocation2 + $0xcd8] sm:$0xff]
    %v747 = vld [vmem:[#allocation2 + $0xce0] sm:$0xf]
    %v748 = vld [vmem:[#allocation2 + $0xce4] sm:$0xff]
    %v749 = vld [vmem:[#allocation2 + $0xcec] sm:$0xf]
    %v750 = vld [vmem:[#allocation2 + $0xcf0] sm:$0xff]
    %v751 = vld [vmem:[#allocation2 + $0xcf8] sm:$0xf]
    %v752 = vld [vmem:[#allocation2 + $0xcfc] sm:$0xff]
    %v753 = vld [vmem:[#allocation2 + $0xd04] sm:$0xf]
    %v754 = vld [vmem:[#allocation2 + $0xd08] sm:$0xff]
    %v755 = vld [vmem:[#allocation2 + $0xd10] sm:$0xf]
    %v756 = vld [vmem:[#allocation2 + $0xd14] sm:$0xff]
    %v757 = vld [vmem:[#allocation2 + $0xd1c] sm:$0xf]
    %v758 = vld [vmem:[#allocation2 + $0xd20] sm:$0xff]
    %v759 = vld [vmem:[#allocation2 + $0xd28] sm:$0xf]
    %v760 = vld [vmem:[#allocation2 + $0xd2c] sm:$0xff]
    %v761 = vld [vmem:[#allocation2 + $0xd34] sm:$0xf]
    %v762 = vld [vmem:[#allocation2 + $0xd38] sm:$0xff]
    %v763 = vld [vmem:[#allocation2 + $0xd40] sm:$0xf]
    %v764 = vld [vmem:[#allocation2 + $0xd44] sm:$0xff]
    %v765 = vld [vmem:[#allocation2 + $0xd4c] sm:$0xf]
    %v766 = vld [vmem:[#allocation2 + $0xd50] sm:$0xff]
    %v767 = vld [vmem:[#allocation2 + $0xd58] sm:$0xf]
    %v768 = vld [vmem:[#allocation2 + $0xd5c] sm:$0xff]
    %v769 = vld [vmem:[#allocation2 + $0xd64] sm:$0xf]
    %v770 = vld [vmem:[#allocation2 + $0xd68] sm:$0xff]
    %v771 = vld [vmem:[#allocation2 + $0xd70] sm:$0xf]
    %v772 = vld [vmem:[#allocation2 + $0xd74] sm:$0xff]
    %v773 = vld [vmem:[#allocation2 + $0xd7c] sm:$0xf]
    %v1350 = vunpack.c.l.b16 %v198
    %v1351 = vunpack.c.h.b16 %v198
    %v1352 = vunpack.c.l.b16 %v199
    %v1353 = vunpack.c.l.b16 %v200
    %v1354 = vunpack.c.h.b16 %v200
    %v1355 = vunpack.c.l.b16 %v201
    %v1356 = vunpack.c.l.b16 %v202
    %v1357 = vunpack.c.h.b16 %v202
    %v1358 = vunpack.c.l.b16 %v203
    %v1359 = vunpack.c.l.b16 %v204
    %v1360 = vunpack.c.h.b16 %v204
    %v1361 = vunpack.c.l.b16 %v205
    %v1362 = vunpack.c.l.b16 %v206
    %v1363 = vunpack.c.h.b16 %v206
    %v1364 = vunpack.c.l.b16 %v207
    %v1365 = vunpack.c.l.b16 %v208
    %v1366 = vunpack.c.h.b16 %v208
    %v1367 = vunpack.c.l.b16 %v209
    %v1368 = vunpack.c.l.b16 %v210
    %v1369 = vunpack.c.h.b16 %v210
    %v1370 = vunpack.c.l.b16 %v211
    %v1371 = vunpack.c.l.b16 %v212
    %v1372 = vunpack.c.h.b16 %v212
    %v1373 = vunpack.c.l.b16 %v213
    %v1374 = vunpack.c.l.b16 %v214
    %v1375 = vunpack.c.h.b16 %v214
    %v1376 = vunpack.c.l.b16 %v215
    %v1377 = vunpack.c.l.b16 %v216
    %v1378 = vunpack.c.h.b16 %v216
    %v1379 = vunpack.c.l.b16 %v217
    %v1380 = vunpack.c.l.b16 %v218
    %v1381 = vunpack.c.h.b16 %v218
    %v1382 = vunpack.c.l.b16 %v219
    %v1383 = vunpack.c.l.b16 %v220
    %v1384 = vunpack.c.h.b16 %v220
    %v1385 = vunpack.c.l.b16 %v221
    %v1386 = vunpack.c.l.b16 %v222
    %v1387 = vunpack.c.h.b16 %v222
    %v1388 = vunpack.c.l.b16 %v223
    %v1389 = vunpack.c.l.b16 %v224
    %v1390 = vunpack.c.h.b16 %v224
    %v1391 = vunpack.c.l.b16 %v225
    %v1392 = vunpack.c.l.b16 %v226
    %v1393 = vunpack.c.h.b16 %v226
    %v1394 = vunpack.c.l.b16 %v227
    %v1395 = vunpack.c.l.b16 %v228
    %v1396 = vunpack.c.h.b16 %v228
    %v1397 = vunpack.c.l.b16 %v229
    %v1398 = vunpack.c.l.b16 %v230
    %v1399 = vunpack.c.h.b16 %v230
    %v1400 = vunpack.c.l.b16 %v231
    %v1401 = vunpack.c.l.b16 %v232
    %v1402 = vunpack.c.h.b16 %v232
    %v1403 = vunpack.c.l.b16 %v233
    %v1404 = vunpack.c.l.b16 %v234
    %v1405 = vunpack.c.h.b16 %v234
    %v1406 = vunpack.c.l.b16 %v235
    %v1407 = vunpack.c.l.b16 %v236
    %v1408 = vunpack.c.h.b16 %v236
    %v1409 = vunpack.c.l.b16 %v237
    %v1410 = vunpack.c.l.b16 %v238
    %v1411 = vunpack.c.h.b16 %v238
    %v1412 = vunpack.c.l.b16 %v239
    %v1413 = vunpack.c.l.b16 %v240
    %v1414 = vunpack.c.h.b16 %v240
    %v1415 = vunpack.c.l.b16 %v241
    %v1416 = vunpack.c.l.b16 %v242
    %v1417 = vunpack.c.h.b16 %v242
    %v1418 = vunpack.c.l.b16 %v243
    %v1419 = vunpack.c.l.b16 %v244
    %v1420 = vunpack.c.h.b16 %v244
    %v1421 = vunpack.c.l.b16 %v245
    %v1422 = vunpack.c.l.b16 %v246
    %v1423 = vunpack.c.h.b16 %v246
    %v1424 = vunpack.c.l.b16 %v247
    %v1425 = vunpack.c.l.b16 %v248
    %v1426 = vunpack.c.h.b16 %v248
    %v1427 = vunpack.c.l.b16 %v249
    %v1428 = vunpack.c.l.b16 %v250
    %v1429 = vunpack.c.h.b16 %v250
    %v1430 = vunpack.c.l.b16 %v251
    %v1431 = vunpack.c.l.b16 %v252
    %v1432 = vunpack.c.h.b16 %v252
    %v1433 = vunpack.c.l.b16 %v253
    %v1434 = vunpack.c.l.b16 %v254
    %v1435 = vunpack.c.h.b16 %v254
    %v1436 = vunpack.c.l.b16 %v255
    %v1437 = vunpack.c.l.b16 %v256
    %v1438 = vunpack.c.h.b16 %v256
    %v1439 = vunpack.c.l.b16 %v257
    %v1440 = vunpack.c.l.b16 %v258
    %v1441 = vunpack.c.h.b16 %v258
    %v1442 = vunpack.c.l.b16 %v259
    %v1443 = vunpack.c.l.b16 %v260
    %v1444 = vunpack.c.h.b16 %v260
    %v1445 = vunpack.c.l.b16 %v261
    %v1446 = vunpack.c.l.b16 %v262
    %v1447 = vunpack.c.h.b16 %v262
    %v1448 = vunpack.c.l.b16 %v263
    %v1449 = vunpack.c.l.b16 %v264
    %v1450 = vunpack.c.h.b16 %v264
    %v1451 = vunpack.c.l.b16 %v265
    %v1452 = vunpack.c.l.b16 %v266
    %v1453 = vunpack.c.h.b16 %v266
    %v1454 = vunpack.c.l.b16 %v267
    %v1455 = vunpack.c.l.b16 %v268
    %v1456 = vunpack.c.h.b16 %v268
    %v1457 = vunpack.c.l.b16 %v269
    %v1458 = vunpack.c.l.b16 %v270
    %v1459 = vunpack.c.h.b16 %v270
    %v1460 = vunpack.c.l.b16 %v271
    %v1461 = vunpack.c.l.b16 %v272
    %v1462 = vunpack.c.h.b16 %v272
    %v1463 = vunpack.c.l.b16 %v273
    %v1464 = vunpack.c.l.b16 %v274
    %v1465 = vunpack.c.h.b16 %v274
    %v1466 = vunpack.c.l.b16 %v275
    %v1467 = vunpack.c.l.b16 %v276
    %v1468 = vunpack.c.h.b16 %v276
    %v1469 = vunpack.c.l.b16 %v277
    %v1470 = vunpack.c.l.b16 %v278
    %v1471 = vunpack.c.h.b16 %v278
    %v1472 = vunpack.c.l.b16 %v279
    %v1473 = vunpack.c.l.b16 %v280
    %v1474 = vunpack.c.h.b16 %v280
    %v1475 = vunpack.c.l.b16 %v281
    %v1476 = vunpack.c.l.b16 %v282
    %v1477 = vunpack.c.h.b16 %v282
    %v1478 = vunpack.c.l.b16 %v283
    %v1479 = vunpack.c.l.b16 %v284
    %v1480 = vunpack.c.h.b16 %v284
    %v1481 = vunpack.c.l.b16 %v285
    %v1482 = vunpack.c.l.b16 %v286
    %v1483 = vunpack.c.h.b16 %v286
    %v1484 = vunpack.c.l.b16 %v287
    %v1485 = vunpack.c.l.b16 %v288
    %v1486 = vunpack.c.h.b16 %v288
    %v1487 = vunpack.c.l.b16 %v289
    %v1488 = vunpack.c.l.b16 %v290
    %v1489 = vunpack.c.h.b16 %v290
    %v1490 = vunpack.c.l.b16 %v291
    %v1491 = vunpack.c.l.b16 %v292
    %v1492 = vunpack.c.h.b16 %v292
    %v1493 = vunpack.c.l.b16 %v293
    %v1494 = vunpack.c.l.b16 %v294
    %v1495 = vunpack.c.h.b16 %v294
    %v1496 = vunpack.c.l.b16 %v295
    %v1497 = vunpack.c.l.b16 %v296
    %v1498 = vunpack.c.h.b16 %v296
    %v1499 = vunpack.c.l.b16 %v297
    %v1500 = vunpack.c.l.b16 %v298
    %v1501 = vunpack.c.h.b16 %v298
    %v1502 = vunpack.c.l.b16 %v299
    %v1503 = vunpack.c.l.b16 %v300
    %v1504 = vunpack.c.h.b16 %v300
    %v1505 = vunpack.c.l.b16 %v301
    %v1506 = vunpack.c.l.b16 %v302
    %v1507 = vunpack.c.h.b16 %v302
    %v1508 = vunpack.c.l.b16 %v303
    %v1509 = vunpack.c.l.b16 %v304
    %v1510 = vunpack.c.h.b16 %v304
    %v1511 = vunpack.c.l.b16 %v305
    %v1512 = vunpack.c.l.b16 %v306
    %v1513 = vunpack.c.h.b16 %v306
    %v1514 = vunpack.c.l.b16 %v307
    %v1515 = vunpack.c.l.b16 %v308
    %v1516 = vunpack.c.h.b16 %v308
    %v1517 = vunpack.c.l.b16 %v309
    %v1518 = vunpack.c.l.b16 %v310
    %v1519 = vunpack.c.h.b16 %v310
    %v1520 = vunpack.c.l.b16 %v311
    %v1521 = vunpack.c.l.b16 %v312
    %v1522 = vunpack.c.h.b16 %v312
    %v1523 = vunpack.c.l.b16 %v313
    %v1524 = vunpack.c.l.b16 %v314
    %v1525 = vunpack.c.h.b16 %v314
    %v1526 = vunpack.c.l.b16 %v315
    %v1527 = vunpack.c.l.b16 %v316
    %v1528 = vunpack.c.h.b16 %v316
    %v1529 = vunpack.c.l.b16 %v317
    %v1530 = vunpack.c.l.b16 %v318
    %v1531 = vunpack.c.h.b16 %v318
    %v1532 = vunpack.c.l.b16 %v319
    %v1533 = vunpack.c.l.b16 %v320
    %v1534 = vunpack.c.h.b16 %v320
    %v1535 = vunpack.c.l.b16 %v321
    %v1536 = vunpack.c.l.b16 %v322
    %v1537 = vunpack.c.h.b16 %v322
    %v1538 = vunpack.c.l.b16 %v323
    %v1539 = vunpack.c.l.b16 %v324
    %v1540 = vunpack.c.h.b16 %v324
    %v1541 = vunpack.c.l.b16 %v325
    %v1542 = vunpack.c.l.b16 %v326
    %v1543 = vunpack.c.h.b16 %v326
    %v1544 = vunpack.c.l.b16 %v327
    %v1545 = vunpack.c.l.b16 %v328
    %v1546 = vunpack.c.h.b16 %v328
    %v1547 = vunpack.c.l.b16 %v329
    %v1548 = vunpack.c.l.b16 %v330
    %v1549 = vunpack.c.h.b16 %v330
    %v1550 = vunpack.c.l.b16 %v331
    %v1551 = vunpack.c.l.b16 %v332
    %v1552 = vunpack.c.h.b16 %v332
    %v1553 = vunpack.c.l.b16 %v333
    %v1554 = vunpack.c.l.b16 %v334
    %v1555 = vunpack.c.h.b16 %v334
    %v1556 = vunpack.c.l.b16 %v335
    %v1557 = vunpack.c.l.b16 %v336
    %v1558 = vunpack.c.h.b16 %v336
    %v1559 = vunpack.c.l.b16 %v337
    %v1560 = vunpack.c.l.b16 %v338
    %v1561 = vunpack.c.h.b16 %v338
    %v1562 = vunpack.c.l.b16 %v339
    %v1563 = vunpack.c.l.b16 %v340
    %v1564 = vunpack.c.h.b16 %v340
    %v1565 = vunpack.c.l.b16 %v341
    %v1566 = vunpack.c.l.b16 %v342
    %v1567 = vunpack.c.h.b16 %v342
    %v1568 = vunpack.c.l.b16 %v343
    %v1569 = vunpack.c.l.b16 %v344
    %v1570 = vunpack.c.h.b16 %v344
    %v1571 = vunpack.c.l.b16 %v345
    %v1572 = vunpack.c.l.b16 %v346
    %v1573 = vunpack.c.h.b16 %v346
    %v1574 = vunpack.c.l.b16 %v347
    %v1575 = vunpack.c.l.b16 %v348
    %v1576 = vunpack.c.h.b16 %v348
    %v1577 = vunpack.c.l.b16 %v349
    %v1578 = vunpack.c.l.b16 %v350
    %v1579 = vunpack.c.h.b16 %v350
    %v1580 = vunpack.c.l.b16 %v351
    %v1581 = vunpack.c.l.b16 %v352
    %v1582 = vunpack.c.h.b16 %v352
    %v1583 = vunpack.c.l.b16 %v353
    %v1584 = vunpack.c.l.b16 %v354
    %v1585 = vunpack.c.h.b16 %v354
    %v1586 = vunpack.c.l.b16 %v355
    %v1587 = vunpack.c.l.b16 %v356
    %v1588 = vunpack.c.h.b16 %v356
    %v1589 = vunpack.c.l.b16 %v357
    %v1590 = vunpack.c.l.b16 %v358
    %v1591 = vunpack.c.h.b16 %v358
    %v1592 = vunpack.c.l.b16 %v359
    %v1593 = vunpack.c.l.b16 %v360
    %v1594 = vunpack.c.h.b16 %v360
    %v1595 = vunpack.c.l.b16 %v361
    %v1596 = vunpack.c.l.b16 %v362
    %v1597 = vunpack.c.h.b16 %v362
    %v1598 = vunpack.c.l.b16 %v363
    %v1599 = vunpack.c.l.b16 %v364
    %v1600 = vunpack.c.h.b16 %v364
    %v1601 = vunpack.c.l.b16 %v365
    %v1602 = vunpack.c.l.b16 %v366
    %v1603 = vunpack.c.h.b16 %v366
    %v1604 = vunpack.c.l.b16 %v367
    %v1605 = vunpack.c.l.b16 %v368
    %v1606 = vunpack.c.h.b16 %v368
    %v1607 = vunpack.c.l.b16 %v369
    %v1608 = vunpack.c.l.b16 %v370
    %v1609 = vunpack.c.h.b16 %v370
    %v1610 = vunpack.c.l.b16 %v371
    %v1611 = vunpack.c.l.b16 %v372
    %v1612 = vunpack.c.h.b16 %v372
    %v1613 = vunpack.c.l.b16 %v373
    %v1614 = vunpack.c.l.b16 %v374
    %v1615 = vunpack.c.h.b16 %v374
    %v1616 = vunpack.c.l.b16 %v375
    %v1617 = vunpack.c.l.b16 %v376
    %v1618 = vunpack.c.h.b16 %v376
    %v1619 = vunpack.c.l.b16 %v377
    %v1620 = vunpack.c.l.b16 %v378
    %v1621 = vunpack.c.h.b16 %v378
    %v1622 = vunpack.c.l.b16 %v379
    %v1623 = vunpack.c.l.b16 %v380
    %v1624 = vunpack.c.h.b16 %v380
    %v1625 = vunpack.c.l.b16 %v381
    %v1626 = vunpack.c.l.b16 %v382
    %v1627 = vunpack.c.h.b16 %v382
    %v1628 = vunpack.c.l.b16 %v383
    %v1629 = vunpack.c.l.b16 %v384
    %v1630 = vunpack.c.h.b16 %v384
    %v1631 = vunpack.c.l.b16 %v385
    %v1632 = vunpack.c.l.b16 %v386
    %v1633 = vunpack.c.h.b16 %v386
    %v1634 = vunpack.c.l.b16 %v387
    %v1635 = vunpack.c.l.b16 %v388
    %v1636 = vunpack.c.h.b16 %v388
    %v1637 = vunpack.c.l.b16 %v389
    %v1638 = vunpack.c.l.b16 %v390
    %v1639 = vunpack.c.h.b16 %v390
    %v1640 = vunpack.c.l.b16 %v391
    %v1641 = vunpack.c.l.b16 %v392
    %v1642 = vunpack.c.h.b16 %v392
    %v1643 = vunpack.c.l.b16 %v393
    %v1644 = vunpack.c.l.b16 %v394
    %v1645 = vunpack.c.h.b16 %v394
    %v1646 = vunpack.c.l.b16 %v395
    %v1647 = vunpack.c.l.b16 %v396
    %v1648 = vunpack.c.h.b16 %v396
    %v1649 = vunpack.c.l.b16 %v397
    %v1650 = vunpack.c.l.b16 %v398
    %v1651 = vunpack.c.h.b16 %v398
    %v1652 = vunpack.c.l.b16 %v399
    %v1653 = vunpack.c.l.b16 %v400
    %v1654 = vunpack.c.h.b16 %v400
    %v1655 = vunpack.c.l.b16 %v401
    %v1656 = vunpack.c.l.b16 %v402
    %v1657 = vunpack.c.h.b16 %v402
    %v1658 = vunpack.c.l.b16 %v403
    %v1659 = vunpack.c.l.b16 %v404
    %v1660 = vunpack.c.h.b16 %v404
    %v1661 = vunpack.c.l.b16 %v405
    %v1662 = vunpack.c.l.b16 %v406
    %v1663 = vunpack.c.h.b16 %v406
    %v1664 = vunpack.c.l.b16 %v407
    %v1665 = vunpack.c.l.b16 %v408
    %v1666 = vunpack.c.h.b16 %v408
    %v1667 = vunpack.c.l.b16 %v409
    %v1668 = vunpack.c.l.b16 %v410
    %v1669 = vunpack.c.h.b16 %v410
    %v1670 = vunpack.c.l.b16 %v411
    %v1671 = vunpack.c.l.b16 %v412
    %v1672 = vunpack.c.h.b16 %v412
    %v1673 = vunpack.c.l.b16 %v413
    %v1674 = vunpack.c.l.b16 %v414
    %v1675 = vunpack.c.h.b16 %v414
    %v1676 = vunpack.c.l.b16 %v415
    %v1677 = vunpack.c.l.b16 %v416
    %v1678 = vunpack.c.h.b16 %v416
    %v1679 = vunpack.c.l.b16 %v417
    %v1680 = vunpack.c.l.b16 %v418
    %v1681 = vunpack.c.h.b16 %v418
    %v1682 = vunpack.c.l.b16 %v419
    %v1683 = vunpack.c.l.b16 %v420
    %v1684 = vunpack.c.h.b16 %v420
    %v1685 = vunpack.c.l.b16 %v421
    %v1686 = vunpack.c.l.b16 %v422
    %v1687 = vunpack.c.h.b16 %v422
    %v1688 = vunpack.c.l.b16 %v423
    %v1689 = vunpack.c.l.b16 %v424
    %v1690 = vunpack.c.h.b16 %v424
    %v1691 = vunpack.c.l.b16 %v425
    %v1692 = vunpack.c.l.b16 %v426
    %v1693 = vunpack.c.h.b16 %v426
    %v1694 = vunpack.c.l.b16 %v427
    %v1695 = vunpack.c.l.b16 %v428
    %v1696 = vunpack.c.h.b16 %v428
    %v1697 = vunpack.c.l.b16 %v429
    %v1698 = vunpack.c.l.b16 %v430
    %v1699 = vunpack.c.h.b16 %v430
    %v1700 = vunpack.c.l.b16 %v431
    %v1701 = vunpack.c.l.b16 %v432
    %v1702 = vunpack.c.h.b16 %v432
    %v1703 = vunpack.c.l.b16 %v433
    %v1704 = vunpack.c.l.b16 %v434
    %v1705 = vunpack.c.h.b16 %v434
    %v1706 = vunpack.c.l.b16 %v435
    %v1707 = vunpack.c.l.b16 %v436
    %v1708 = vunpack.c.h.b16 %v436
    %v1709 = vunpack.c.l.b16 %v437
    %v1710 = vunpack.c.l.b16 %v438
    %v1711 = vunpack.c.h.b16 %v438
    %v1712 = vunpack.c.l.b16 %v439
    %v1713 = vunpack.c.l.b16 %v440
    %v1714 = vunpack.c.h.b16 %v440
    %v1715 = vunpack.c.l.b16 %v441
    %v1716 = vunpack.c.l.b16 %v442
    %v1717 = vunpack.c.h.b16 %v442
    %v1718 = vunpack.c.l.b16 %v443
    %v1719 = vunpack.c.l.b16 %v444
    %v1720 = vunpack.c.h.b16 %v444
    %v1721 = vunpack.c.l.b16 %v445
    %v1722 = vunpack.c.l.b16 %v446
    %v1723 = vunpack.c.h.b16 %v446
    %v1724 = vunpack.c.l.b16 %v447
    %v1725 = vunpack.c.l.b16 %v448
    %v1726 = vunpack.c.h.b16 %v448
    %v1727 = vunpack.c.l.b16 %v449
    %v1728 = vunpack.c.l.b16 %v450
    %v1729 = vunpack.c.h.b16 %v450
    %v1730 = vunpack.c.l.b16 %v451
    %v1731 = vunpack.c.l.b16 %v452
    %v1732 = vunpack.c.h.b16 %v452
    %v1733 = vunpack.c.l.b16 %v453
    %v1734 = vunpack.c.l.b16 %v454
    %v1735 = vunpack.c.h.b16 %v454
    %v1736 = vunpack.c.l.b16 %v455
    %v1737 = vunpack.c.l.b16 %v456
    %v1738 = vunpack.c.h.b16 %v456
    %v1739 = vunpack.c.l.b16 %v457
    %v1740 = vunpack.c.l.b16 %v458
    %v1741 = vunpack.c.h.b16 %v458
    %v1742 = vunpack.c.l.b16 %v459
    %v1743 = vunpack.c.l.b16 %v460
    %v1744 = vunpack.c.h.b16 %v460
    %v1745 = vunpack.c.l.b16 %v461
    %v1746 = vunpack.c.l.b16 %v462
    %v1747 = vunpack.c.h.b16 %v462
    %v1748 = vunpack.c.l.b16 %v463
    %v1749 = vunpack.c.l.b16 %v464
    %v1750 = vunpack.c.h.b16 %v464
    %v1751 = vunpack.c.l.b16 %v465
    %v1752 = vunpack.c.l.b16 %v466
    %v1753 = vunpack.c.h.b16 %v466
    %v1754 = vunpack.c.l.b16 %v467
    %v1755 = vunpack.c.l.b16 %v468
    %v1756 = vunpack.c.h.b16 %v468
    %v1757 = vunpack.c.l.b16 %v469
    %v1758 = vunpack.c.l.b16 %v470
    %v1759 = vunpack.c.h.b16 %v470
    %v1760 = vunpack.c.l.b16 %v471
    %v1761 = vunpack.c.l.b16 %v472
    %v1762 = vunpack.c.h.b16 %v472
    %v1763 = vunpack.c.l.b16 %v473
    %v1764 = vunpack.c.l.b16 %v474
    %v1765 = vunpack.c.h.b16 %v474
    %v1766 = vunpack.c.l.b16 %v475
    %v1767 = vunpack.c.l.b16 %v476
    %v1768 = vunpack.c.h.b16 %v476
    %v1769 = vunpack.c.l.b16 %v477
    %v1770 = vunpack.c.l.b16 %v478
    %v1771 = vunpack.c.h.b16 %v478
    %v1772 = vunpack.c.l.b16 %v479
    %v1773 = vunpack.c.l.b16 %v480
    %v1774 = vunpack.c.h.b16 %v480
    %v1775 = vunpack.c.l.b16 %v481
    %v1776 = vunpack.c.l.b16 %v482
    %v1777 = vunpack.c.h.b16 %v482
    %v1778 = vunpack.c.l.b16 %v483
    %v1779 = vunpack.c.l.b16 %v484
    %v1780 = vunpack.c.h.b16 %v484
    %v1781 = vunpack.c.l.b16 %v485
    %v1782 = vunpack.c.l.b16 %v486
    %v1783 = vunpack.c.h.b16 %v486
    %v1784 = vunpack.c.l.b16 %v487
    %v1785 = vunpack.c.l.b16 %v488
    %v1786 = vunpack.c.h.b16 %v488
    %v1787 = vunpack.c.l.b16 %v489
    %v1788 = vunpack.c.l.b16 %v490
    %v1789 = vunpack.c.h.b16 %v490
    %v1790 = vunpack.c.l.b16 %v491
    %v1791 = vunpack.c.l.b16 %v492
    %v1792 = vunpack.c.h.b16 %v492
    %v1793 = vunpack.c.l.b16 %v493
    %v1794 = vunpack.c.l.b16 %v494
    %v1795 = vunpack.c.h.b16 %v494
    %v1796 = vunpack.c.l.b16 %v495
    %v1797 = vunpack.c.l.b16 %v496
    %v1798 = vunpack.c.h.b16 %v496
    %v1799 = vunpack.c.l.b16 %v497
    %v1800 = vunpack.c.l.b16 %v498
    %v1801 = vunpack.c.h.b16 %v498
    %v1802 = vunpack.c.l.b16 %v499
    %v1803 = vunpack.c.l.b16 %v500
    %v1804 = vunpack.c.h.b16 %v500
    %v1805 = vunpack.c.l.b16 %v501
    %v1806 = vunpack.c.l.b16 %v502
    %v1807 = vunpack.c.h.b16 %v502
    %v1808 = vunpack.c.l.b16 %v503
    %v1809 = vunpack.c.l.b16 %v504
    %v1810 = vunpack.c.h.b16 %v504
    %v1811 = vunpack.c.l.b16 %v505
    %v1812 = vunpack.c.l.b16 %v506
    %v1813 = vunpack.c.h.b16 %v506
    %v1814 = vunpack.c.l.b16 %v507
    %v1815 = vunpack.c.l.b16 %v508
    %v1816 = vunpack.c.h.b16 %v508
    %v1817 = vunpack.c.l.b16 %v509
    %v1818 = vunpack.c.l.b16 %v510
    %v1819 = vunpack.c.h.b16 %v510
    %v1820 = vunpack.c.l.b16 %v511
    %v1821 = vunpack.c.l.b16 %v512
    %v1822 = vunpack.c.h.b16 %v512
    %v1823 = vunpack.c.l.b16 %v513
    %v1824 = vunpack.c.l.b16 %v514
    %v1825 = vunpack.c.h.b16 %v514
    %v1826 = vunpack.c.l.b16 %v515
    %v1827 = vunpack.c.l.b16 %v516
    %v1828 = vunpack.c.h.b16 %v516
    %v1829 = vunpack.c.l.b16 %v517
    %v1830 = vunpack.c.l.b16 %v518
    %v1831 = vunpack.c.h.b16 %v518
    %v1832 = vunpack.c.l.b16 %v519
    %v1833 = vunpack.c.l.b16 %v520
    %v1834 = vunpack.c.h.b16 %v520
    %v1835 = vunpack.c.l.b16 %v521
    %v1836 = vunpack.c.l.b16 %v522
    %v1837 = vunpack.c.h.b16 %v522
    %v1838 = vunpack.c.l.b16 %v523
    %v1839 = vunpack.c.l.b16 %v524
    %v1840 = vunpack.c.h.b16 %v524
    %v1841 = vunpack.c.l.b16 %v525
    %v1842 = vunpack.c.l.b16 %v526
    %v1843 = vunpack.c.h.b16 %v526
    %v1844 = vunpack.c.l.b16 %v527
    %v1845 = vunpack.c.l.b16 %v528
    %v1846 = vunpack.c.h.b16 %v528
    %v1847 = vunpack.c.l.b16 %v529
    %v1848 = vunpack.c.l.b16 %v530
    %v1849 = vunpack.c.h.b16 %v530
    %v1850 = vunpack.c.l.b16 %v531
    %v1851 = vunpack.c.l.b16 %v532
    %v1852 = vunpack.c.h.b16 %v532
    %v1853 = vunpack.c.l.b16 %v533
    %v1854 = vunpack.c.l.b16 %v534
    %v1855 = vunpack.c.h.b16 %v534
    %v1856 = vunpack.c.l.b16 %v535
    %v1857 = vunpack.c.l.b16 %v536
    %v1858 = vunpack.c.h.b16 %v536
    %v1859 = vunpack.c.l.b16 %v537
    %v1860 = vunpack.c.l.b16 %v538
    %v1861 = vunpack.c.h.b16 %v538
    %v1862 = vunpack.c.l.b16 %v539
    %v1863 = vunpack.c.l.b16 %v540
    %v1864 = vunpack.c.h.b16 %v540
    %v1865 = vunpack.c.l.b16 %v541
    %v1866 = vunpack.c.l.b16 %v542
    %v1867 = vunpack.c.h.b16 %v542
    %v1868 = vunpack.c.l.b16 %v543
    %v1869 = vunpack.c.l.b16 %v544
    %v1870 = vunpack.c.h.b16 %v544
    %v1871 = vunpack.c.l.b16 %v545
    %v1872 = vunpack.c.l.b16 %v546
    %v1873 = vunpack.c.h.b16 %v546
    %v1874 = vunpack.c.l.b16 %v547
    %v1875 = vunpack.c.l.b16 %v548
    %v1876 = vunpack.c.h.b16 %v548
    %v1877 = vunpack.c.l.b16 %v549
    %v1878 = vunpack.c.l.b16 %v550
    %v1879 = vunpack.c.h.b16 %v550
    %v1880 = vunpack.c.l.b16 %v551
    %v1881 = vunpack.c.l.b16 %v552
    %v1882 = vunpack.c.h.b16 %v552
    %v1883 = vunpack.c.l.b16 %v553
    %v1884 = vunpack.c.l.b16 %v554
    %v1885 = vunpack.c.h.b16 %v554
    %v1886 = vunpack.c.l.b16 %v555
    %v1887 = vunpack.c.l.b16 %v556
    %v1888 = vunpack.c.h.b16 %v556
    %v1889 = vunpack.c.l.b16 %v557
    %v1890 = vunpack.c.l.b16 %v558
    %v1891 = vunpack.c.h.b16 %v558
    %v1892 = vunpack.c.l.b16 %v559
    %v1893 = vunpack.c.l.b16 %v560
    %v1894 = vunpack.c.h.b16 %v560
    %v1895 = vunpack.c.l.b16 %v561
    %v1896 = vunpack.c.l.b16 %v562
    %v1897 = vunpack.c.h.b16 %v562
    %v1898 = vunpack.c.l.b16 %v563
    %v1899 = vunpack.c.l.b16 %v564
    %v1900 = vunpack.c.h.b16 %v564
    %v1901 = vunpack.c.l.b16 %v565
    %v1902 = vunpack.c.l.b16 %v566
    %v1903 = vunpack.c.h.b16 %v566
    %v1904 = vunpack.c.l.b16 %v567
    %v1905 = vunpack.c.l.b16 %v568
    %v1906 = vunpack.c.h.b16 %v568
    %v1907 = vunpack.c.l.b16 %v569
    %v1908 = vunpack.c.l.b16 %v570
    %v1909 = vunpack.c.h.b16 %v570
    %v1910 = vunpack.c.l.b16 %v571
    %v1911 = vunpack.c.l.b16 %v572
    %v1912 = vunpack.c.h.b16 %v572
    %v1913 = vunpack.c.l.b16 %v573
    %v1914 = vunpack.c.l.b16 %v574
    %v1915 = vunpack.c.h.b16 %v574
    %v1916 = vunpack.c.l.b16 %v575
    %v1917 = vunpack.c.l.b16 %v576
    %v1918 = vunpack.c.h.b16 %v576
    %v1919 = vunpack.c.l.b16 %v577
    %v1920 = vunpack.c.l.b16 %v578
    %v1921 = vunpack.c.h.b16 %v578
    %v1922 = vunpack.c.l.b16 %v579
    %v1923 = vunpack.c.l.b16 %v580
    %v1924 = vunpack.c.h.b16 %v580
    %v1925 = vunpack.c.l.b16 %v581
    %v1926 = vunpack.c.l.b16 %v582
    %v1927 = vunpack.c.h.b16 %v582
    %v1928 = vunpack.c.l.b16 %v583
    %v1929 = vunpack.c.l.b16 %v584
    %v1930 = vunpack.c.h.b16 %v584
    %v1931 = vunpack.c.l.b16 %v585
    %v1932 = vunpack.c.l.b16 %v586
    %v1933 = vunpack.c.h.b16 %v586
    %v1934 = vunpack.c.l.b16 %v587
    %v1935 = vunpack.c.l.b16 %v588
    %v1936 = vunpack.c.h.b16 %v588
    %v1937 = vunpack.c.l.b16 %v589
    %v1938 = vunpack.c.l.b16 %v590
    %v1939 = vunpack.c.h.b16 %v590
    %v1940 = vunpack.c.l.b16 %v591
    %v1941 = vunpack.c.l.b16 %v592
    %v1942 = vunpack.c.h.b16 %v592
    %v1943 = vunpack.c.l.b16 %v593
    %v1944 = vunpack.c.l.b16 %v594
    %v1945 = vunpack.c.h.b16 %v594
    %v1946 = vunpack.c.l.b16 %v595
    %v1947 = vunpack.c.l.b16 %v596
    %v1948 = vunpack.c.h.b16 %v596
    %v1949 = vunpack.c.l.b16 %v597
    %v1950 = vunpack.c.l.b16 %v598
    %v1951 = vunpack.c.h.b16 %v598
    %v1952 = vunpack.c.l.b16 %v599
    %v1953 = vunpack.c.l.b16 %v600
    %v1954 = vunpack.c.h.b16 %v600
    %v1955 = vunpack.c.l.b16 %v601
    %v1956 = vunpack.c.l.b16 %v602
    %v1957 = vunpack.c.h.b16 %v602
    %v1958 = vunpack.c.l.b16 %v603
    %v1959 = vunpack.c.l.b16 %v604
    %v1960 = vunpack.c.h.b16 %v604
    %v1961 = vunpack.c.l.b16 %v605
    %v1962 = vunpack.c.l.b16 %v606
    %v1963 = vunpack.c.h.b16 %v606
    %v1964 = vunpack.c.l.b16 %v607
    %v1965 = vunpack.c.l.b16 %v608
    %v1966 = vunpack.c.h.b16 %v608
    %v1967 = vunpack.c.l.b16 %v609
    %v1968 = vunpack.c.l.b16 %v610
    %v1969 = vunpack.c.h.b16 %v610
    %v1970 = vunpack.c.l.b16 %v611
    %v1971 = vunpack.c.l.b16 %v612
    %v1972 = vunpack.c.h.b16 %v612
    %v1973 = vunpack.c.l.b16 %v613
    %v1974 = vunpack.c.l.b16 %v614
    %v1975 = vunpack.c.h.b16 %v614
    %v1976 = vunpack.c.l.b16 %v615
    %v1977 = vunpack.c.l.b16 %v616
    %v1978 = vunpack.c.h.b16 %v616
    %v1979 = vunpack.c.l.b16 %v617
    %v1980 = vunpack.c.l.b16 %v618
    %v1981 = vunpack.c.h.b16 %v618
    %v1982 = vunpack.c.l.b16 %v619
    %v1983 = vunpack.c.l.b16 %v620
    %v1984 = vunpack.c.h.b16 %v620
    %v1985 = vunpack.c.l.b16 %v621
    %v1986 = vunpack.c.l.b16 %v622
    %v1987 = vunpack.c.h.b16 %v622
    %v1988 = vunpack.c.l.b16 %v623
    %v1989 = vunpack.c.l.b16 %v624
    %v1990 = vunpack.c.h.b16 %v624
    %v1991 = vunpack.c.l.b16 %v625
    %v1992 = vunpack.c.l.b16 %v626
    %v1993 = vunpack.c.h.b16 %v626
    %v1994 = vunpack.c.l.b16 %v627
    %v1995 = vunpack.c.l.b16 %v628
    %v1996 = vunpack.c.h.b16 %v628
    %v1997 = vunpack.c.l.b16 %v629
    %v1998 = vunpack.c.l.b16 %v630
    %v1999 = vunpack.c.h.b16 %v630
    %v2000 = vunpack.c.l.b16 %v631
    %v2001 = vunpack.c.l.b16 %v632
    %v2002 = vunpack.c.h.b16 %v632
    %v2003 = vunpack.c.l.b16 %v633
    %v2004 = vunpack.c.l.b16 %v634
    %v2005 = vunpack.c.h.b16 %v634
    %v2006 = vunpack.c.l.b16 %v635
    %v2007 = vunpack.c.l.b16 %v636
    %v2008 = vunpack.c.h.b16 %v636
    %v2009 = vunpack.c.l.b16 %v637
    %v2010 = vunpack.c.l.b16 %v638
    %v2011 = vunpack.c.h.b16 %v638
    %v2012 = vunpack.c.l.b16 %v639
    %v2013 = vunpack.c.l.b16 %v640
    %v2014 = vunpack.c.h.b16 %v640
    %v2015 = vunpack.c.l.b16 %v641
    %v2016 = vunpack.c.l.b16 %v642
    %v2017 = vunpack.c.h.b16 %v642
    %v2018 = vunpack.c.l.b16 %v643
    %v2019 = vunpack.c.l.b16 %v644
    %v2020 = vunpack.c.h.b16 %v644
    %v2021 = vunpack.c.l.b16 %v645
    %v2022 = vunpack.c.l.b16 %v646
    %v2023 = vunpack.c.h.b16 %v646
    %v2024 = vunpack.c.l.b16 %v647
    %v2025 = vunpack.c.l.b16 %v648
    %v2026 = vunpack.c.h.b16 %v648
    %v2027 = vunpack.c.l.b16 %v649
    %v2028 = vunpack.c.l.b16 %v650
    %v2029 = vunpack.c.h.b16 %v650
    %v2030 = vunpack.c.l.b16 %v651
    %v2031 = vunpack.c.l.b16 %v652
    %v2032 = vunpack.c.h.b16 %v652
    %v2033 = vunpack.c.l.b16 %v653
    %v2034 = vunpack.c.l.b16 %v654
    %v2035 = vunpack.c.h.b16 %v654
    %v2036 = vunpack.c.l.b16 %v655
    %v2037 = vunpack.c.l.b16 %v656
    %v2038 = vunpack.c.h.b16 %v656
    %v2039 = vunpack.c.l.b16 %v657
    %v2040 = vunpack.c.l.b16 %v658
    %v2041 = vunpack.c.h.b16 %v658
    %v2042 = vunpack.c.l.b16 %v659
    %v2043 = vunpack.c.l.b16 %v660
    %v2044 = vunpack.c.h.b16 %v660
    %v2045 = vunpack.c.l.b16 %v661
    %v2046 = vunpack.c.l.b16 %v662
    %v2047 = vunpack.c.h.b16 %v662
    %v2048 = vunpack.c.l.b16 %v663
    %v2049 = vunpack.c.l.b16 %v664
    %v2050 = vunpack.c.h.b16 %v664
    %v2051 = vunpack.c.l.b16 %v665
    %v2052 = vunpack.c.l.b16 %v666
    %v2053 = vunpack.c.h.b16 %v666
    %v2054 = vunpack.c.l.b16 %v667
    %v2055 = vunpack.c.l.b16 %v668
    %v2056 = vunpack.c.h.b16 %v668
    %v2057 = vunpack.c.l.b16 %v669
    %v2058 = vunpack.c.l.b16 %v670
    %v2059 = vunpack.c.h.b16 %v670
    %v2060 = vunpack.c.l.b16 %v671
    %v2061 = vunpack.c.l.b16 %v672
    %v2062 = vunpack.c.h.b16 %v672
    %v2063 = vunpack.c.l.b16 %v673
    %v2064 = vunpack.c.l.b16 %v674
    %v2065 = vunpack.c.h.b16 %v674
    %v2066 = vunpack.c.l.b16 %v675
    %v2067 = vunpack.c.l.b16 %v676
    %v2068 = vunpack.c.h.b16 %v676
    %v2069 = vunpack.c.l.b16 %v677
    %v2070 = vunpack.c.l.b16 %v678
    %v2071 = vunpack.c.h.b16 %v678
    %v2072 = vunpack.c.l.b16 %v679
    %v2073 = vunpack.c.l.b16 %v680
    %v2074 = vunpack.c.h.b16 %v680
    %v2075 = vunpack.c.l.b16 %v681
    %v2076 = vunpack.c.l.b16 %v682
    %v2077 = vunpack.c.h.b16 %v682
    %v2078 = vunpack.c.l.b16 %v683
    %v2079 = vunpack.c.l.b16 %v684
    %v2080 = vunpack.c.h.b16 %v684
    %v2081 = vunpack.c.l.b16 %v685
    %v2082 = vunpack.c.l.b16 %v686
    %v2083 = vunpack.c.h.b16 %v686
    %v2084 = vunpack.c.l.b16 %v687
    %v2085 = vunpack.c.l.b16 %v688
    %v2086 = vunpack.c.h.b16 %v688
    %v2087 = vunpack.c.l.b16 %v689
    %v2088 = vunpack.c.l.b16 %v690
    %v2089 = vunpack.c.h.b16 %v690
    %v2090 = vunpack.c.l.b16 %v691
    %v2091 = vunpack.c.l.b16 %v692
    %v2092 = vunpack.c.h.b16 %v692
    %v2093 = vunpack.c.l.b16 %v693
    %v2094 = vunpack.c.l.b16 %v694
    %v2095 = vunpack.c.h.b16 %v694
    %v2096 = vunpack.c.l.b16 %v695
    %v2097 = vunpack.c.l.b16 %v696
    %v2098 = vunpack.c.h.b16 %v696
    %v2099 = vunpack.c.l.b16 %v697
    %v2100 = vunpack.c.l.b16 %v698
    %v2101 = vunpack.c.h.b16 %v698
    %v2102 = vunpack.c.l.b16 %v699
    %v2103 = vunpack.c.l.b16 %v700
    %v2104 = vunpack.c.h.b16 %v700
    %v2105 = vunpack.c.l.b16 %v701
    %v2106 = vunpack.c.l.b16 %v702
    %v2107 = vunpack.c.h.b16 %v702
    %v2108 = vunpack.c.l.b16 %v703
    %v2109 = vunpack.c.l.b16 %v704
    %v2110 = vunpack.c.h.b16 %v704
    %v2111 = vunpack.c.l.b16 %v705
    %v2112 = vunpack.c.l.b16 %v706
    %v2113 = vunpack.c.h.b16 %v706
    %v2114 = vunpack.c.l.b16 %v707
    %v2115 = vunpack.c.l.b16 %v708
    %v2116 = vunpack.c.h.b16 %v708
    %v2117 = vunpack.c.l.b16 %v709
    %v2118 = vunpack.c.l.b16 %v710
    %v2119 = vunpack.c.h.b16 %v710
    %v2120 = vunpack.c.l.b16 %v711
    %v2121 = vunpack.c.l.b16 %v712
    %v2122 = vunpack.c.h.b16 %v712
    %v2123 = vunpack.c.l.b16 %v713
    %v2124 = vunpack.c.l.b16 %v714
    %v2125 = vunpack.c.h.b16 %v714
    %v2126 = vunpack.c.l.b16 %v715
    %v2127 = vunpack.c.l.b16 %v716
    %v2128 = vunpack.c.h.b16 %v716
    %v2129 = vunpack.c.l.b16 %v717
    %v2130 = vunpack.c.l.b16 %v718
    %v2131 = vunpack.c.h.b16 %v718
    %v2132 = vunpack.c.l.b16 %v719
    %v2133 = vunpack.c.l.b16 %v720
    %v2134 = vunpack.c.h.b16 %v720
    %v2135 = vunpack.c.l.b16 %v721
    %v2136 = vunpack.c.l.b16 %v722
    %v2137 = vunpack.c.h.b16 %v722
    %v2138 = vunpack.c.l.b16 %v723
    %v2139 = vunpack.c.l.b16 %v724
    %v2140 = vunpack.c.h.b16 %v724
    %v2141 = vunpack.c.l.b16 %v725
    %v2142 = vunpack.c.l.b16 %v726
    %v2143 = vunpack.c.h.b16 %v726
    %v2144 = vunpack.c.l.b16 %v727
    %v2145 = vunpack.c.l.b16 %v728
    %v2146 = vunpack.c.h.b16 %v728
    %v2147 = vunpack.c.l.b16 %v729
    %v2148 = vunpack.c.l.b16 %v730
    %v2149 = vunpack.c.h.b16 %v730
    %v2150 = vunpack.c.l.b16 %v731
    %v2151 = vunpack.c.l.b16 %v732
    %v2152 = vunpack.c.h.b16 %v732
    %v2153 = vunpack.c.l.b16 %v733
    %v2154 = vunpack.c.l.b16 %v734
    %v2155 = vunpack.c.h.b16 %v734
    %v2156 = vunpack.c.l.b16 %v735
    %v2157 = vunpack.c.l.b16 %v736
    %v2158 = vunpack.c.h.b16 %v736
    %v2159 = vunpack.c.l.b16 %v737
    %v2160 = vunpack.c.l.b16 %v738
    %v2161 = vunpack.c.h.b16 %v738
    %v2162 = vunpack.c.l.b16 %v739
    %v2163 = vunpack.c.l.b16 %v740
    %v2164 = vunpack.c.h.b16 %v740
    %v2165 = vunpack.c.l.b16 %v741
    %v2166 = vunpack.c.l.b16 %v742
    %v2167 = vunpack.c.h.b16 %v742
    %v2168 = vunpack.c.l.b16 %v743
    %v2169 = vunpack.c.l.b16 %v744
    %v2170 = vunpack.c.h.b16 %v744
    %v2171 = vunpack.c.l.b16 %v745
    %v2172 = vunpack.c.l.b16 %v746
    %v2173 = vunpack.c.h.b16 %v746
    %v2174 = vunpack.c.l.b16 %v747
    %v2175 = vunpack.c.l.b16 %v748
    %v2176 = vunpack.c.h.b16 %v748
    %v2177 = vunpack.c.l.b16 %v749
    %v2178 = vunpack.c.l.b16 %v750
    %v2179 = vunpack.c.h.b16 %v750
    %v2180 = vunpack.c.l.b16 %v751
    %v2181 = vunpack.c.l.b16 %v752
    %v2182 = vunpack.c.h.b16 %v752
    %v2183 = vunpack.c.l.b16 %v753
    %v2184 = vunpack.c.l.b16 %v754
    %v2185 = vunpack.c.h.b16 %v754
    %v2186 = vunpack.c.l.b16 %v755
    %v2187 = vunpack.c.l.b16 %v756
    %v2188 = vunpack.c.h.b16 %v756
    %v2189 = vunpack.c.l.b16 %v757
    %v2190 = vunpack.c.l.b16 %v758
    %v2191 = vunpack.c.h.b16 %v758
    %v2192 = vunpack.c.l.b16 %v759
    %v2193 = vunpack.c.l.b16 %v760
    %v2194 = vunpack.c.h.b16 %v760
    %v2195 = vunpack.c.l.b16 %v761
    %v2196 = vunpack.c.l.b16 %v762
    %v2197 = vunpack.c.h.b16 %v762
    %v2198 = vunpack.c.l.b16 %v763
    %v2199 = vunpack.c.l.b16 %v764
    %v2200 = vunpack.c.h.b16 %v764
    %v2201 = vunpack.c.l.b16 %v765
    %v2202 = vunpack.c.l.b16 %v766
    %v2203 = vunpack.c.h.b16 %v766
    %v2204 = vunpack.c.l.b16 %v767
    %v2205 = vunpack.c.l.b16 %v768
    %v2206 = vunpack.c.h.b16 %v768
    %v2207 = vunpack.c.l.b16 %v769
    %v2208 = vunpack.c.l.b16 %v770
    %v2209 = vunpack.c.h.b16 %v770
    %v2210 = vunpack.c.l.b16 %v771
    %v2211 = vunpack.c.l.b16 %v772
    %v2212 = vunpack.c.h.b16 %v772
    %v2213 = vunpack.c.l.b16 %v773
    %v2214 = vpack.c.b16 %v1353, %v1350
    %v2215 = vpack.c.b16 %v1354, %v1351
    %v2216 = vpack.c.b16 %v1355, %v1352
    %v2217 = vpack.c.b16 %v1359, %v1356
    %v2218 = vpack.c.b16 %v1360, %v1357
    %v2219 = vpack.c.b16 %v1361, %v1358
    %v2220 = vpack.c.b16 %v1365, %v1362
    %v2221 = vpack.c.b16 %v1366, %v1363
    %v2222 = vpack.c.b16 %v1367, %v1364
    %v2223 = vpack.c.b16 %v1371, %v1368
    %v2224 = vpack.c.b16 %v1372, %v1369
    %v2225 = vpack.c.b16 %v1373, %v1370
    %v2226 = vpack.c.b16 %v1377, %v1374
    %v2227 = vpack.c.b16 %v1378, %v1375
    %v2228 = vpack.c.b16 %v1379, %v1376
    %v2229 = vpack.c.b16 %v1383, %v1380
    %v2230 = vpack.c.b16 %v1384, %v1381
    %v2231 = vpack.c.b16 %v1385, %v1382
    %v2232 = vpack.c.b16 %v1389, %v1386
    %v2233 = vpack.c.b16 %v1390, %v1387
    %v2234 = vpack.c.b16 %v1391, %v1388
    %v2235 = vpack.c.b16 %v1395, %v1392
    %v2236 = vpack.c.b16 %v1396, %v1393
    %v2237 = vpack.c.b16 %v1397, %v1394
    %v2238 = vpack.c.b16 %v1401, %v1398
    %v2239 = vpack.c.b16 %v1402, %v1399
    %v2240 = vpack.c.b16 %v1403, %v1400
    %v2241 = vpack.c.b16 %v1407, %v1404
    %v2242 = vpack.c.b16 %v1408, %v1405
    %v2243 = vpack.c.b16 %v1409, %v1406
    %v2244 = vpack.c.b16 %v1413, %v1410
    %v2245 = vpack.c.b16 %v1414, %v1411
    %v2246 = vpack.c.b16 %v1415, %v1412
    %v2247 = vpack.c.b16 %v1419, %v1416
    %v2248 = vpack.c.b16 %v1420, %v1417
    %v2249 = vpack.c.b16 %v1421, %v1418
    %v2250 = vpack.c.b16 %v1425, %v1422
    %v2251 = vpack.c.b16 %v1426, %v1423
    %v2252 = vpack.c.b16 %v1427, %v1424
    %v2253 = vpack.c.b16 %v1431, %v1428
    %v2254 = vpack.c.b16 %v1432, %v1429
    %v2255 = vpack.c.b16 %v1433, %v1430
    %v2256 = vpack.c.b16 %v1437, %v1434
    %v2257 = vpack.c.b16 %v1438, %v1435
    %v2258 = vpack.c.b16 %v1439, %v1436
    %v2259 = vpack.c.b16 %v1443, %v1440
    %v2260 = vpack.c.b16 %v1444, %v1441
    %v2261 = vpack.c.b16 %v1445, %v1442
    %v2262 = vpack.c.b16 %v1449, %v1446
    %v2263 = vpack.c.b16 %v1450, %v1447
    %v2264 = vpack.c.b16 %v1451, %v1448
    %v2265 = vpack.c.b16 %v1455, %v1452
    %v2266 = vpack.c.b16 %v1456, %v1453
    %v2267 = vpack.c.b16 %v1457, %v1454
    %v2268 = vpack.c.b16 %v1461, %v1458
    %v2269 = vpack.c.b16 %v1462, %v1459
    %v2270 = vpack.c.b16 %v1463, %v1460
    %v2271 = vpack.c.b16 %v1467, %v1464
    %v2272 = vpack.c.b16 %v1468, %v1465
    %v2273 = vpack.c.b16 %v1469, %v1466
    %v2274 = vpack.c.b16 %v1473, %v1470
    %v2275 = vpack.c.b16 %v1474, %v1471
    %v2276 = vpack.c.b16 %v1475, %v1472
    %v2277 = vpack.c.b16 %v1479, %v1476
    %v2278 = vpack.c.b16 %v1480, %v1477
    %v2279 = vpack.c.b16 %v1481, %v1478
    %v2280 = vpack.c.b16 %v1485, %v1482
    %v2281 = vpack.c.b16 %v1486, %v1483
    %v2282 = vpack.c.b16 %v1487, %v1484
    %v2283 = vpack.c.b16 %v1491, %v1488
    %v2284 = vpack.c.b16 %v1492, %v1489
    %v2285 = vpack.c.b16 %v1493, %v1490
    %v2286 = vpack.c.b16 %v1497, %v1494
    %v2287 = vpack.c.b16 %v1498, %v1495
    %v2288 = vpack.c.b16 %v1499, %v1496
    %v2289 = vpack.c.b16 %v1503, %v1500
    %v2290 = vpack.c.b16 %v1504, %v1501
    %v2291 = vpack.c.b16 %v1505, %v1502
    %v2292 = vpack.c.b16 %v1509, %v1506
    %v2293 = vpack.c.b16 %v1510, %v1507
    %v2294 = vpack.c.b16 %v1511, %v1508
    %v2295 = vpack.c.b16 %v1515, %v1512
    %v2296 = vpack.c.b16 %v1516, %v1513
    %v2297 = vpack.c.b16 %v1517, %v1514
    %v2298 = vpack.c.b16 %v1521, %v1518
    %v2299 = vpack.c.b16 %v1522, %v1519
    %v2300 = vpack.c.b16 %v1523, %v1520
    %v2301 = vpack.c.b16 %v1527, %v1524
    %v2302 = vpack.c.b16 %v1528, %v1525
    %v2303 = vpack.c.b16 %v1529, %v1526
    %v2304 = vpack.c.b16 %v1533, %v1530
    %v2305 = vpack.c.b16 %v1534, %v1531
    %v2306 = vpack.c.b16 %v1535, %v1532
    %v2307 = vpack.c.b16 %v1539, %v1536
    %v2308 = vpack.c.b16 %v1540, %v1537
    %v2309 = vpack.c.b16 %v1541, %v1538
    %v2310 = vpack.c.b16 %v1545, %v1542
    %v2311 = vpack.c.b16 %v1546, %v1543
    %v2312 = vpack.c.b16 %v1547, %v1544
    %v2313 = vpack.c.b16 %v1551, %v1548
    %v2314 = vpack.c.b16 %v1552, %v1549
    %v2315 = vpack.c.b16 %v1553, %v1550
    %v2316 = vpack.c.b16 %v1557, %v1554
    %v2317 = vpack.c.b16 %v1558, %v1555
    %v2318 = vpack.c.b16 %v1559, %v1556
    %v2319 = vpack.c.b16 %v1563, %v1560
    %v2320 = vpack.c.b16 %v1564, %v1561
    %v2321 = vpack.c.b16 %v1565, %v1562
    %v2322 = vpack.c.b16 %v1569, %v1566
    %v2323 = vpack.c.b16 %v1570, %v1567
    %v2324 = vpack.c.b16 %v1571, %v1568
    %v2325 = vpack.c.b16 %v1575, %v1572
    %v2326 = vpack.c.b16 %v1576, %v1573
    %v2327 = vpack.c.b16 %v1577, %v1574
    %v2328 = vpack.c.b16 %v1581, %v1578
    %v2329 = vpack.c.b16 %v1582, %v1579
    %v2330 = vpack.c.b16 %v1583, %v1580
    %v2331 = vpack.c.b16 %v1587, %v1584
    %v2332 = vpack.c.b16 %v1588, %v1585
    %v2333 = vpack.c.b16 %v1589, %v1586
    %v2334 = vpack.c.b16 %v1593, %v1590
    %v2335 = vpack.c.b16 %v1594, %v1591
    %v2336 = vpack.c.b16 %v1595, %v1592
    %v2337 = vpack.c.b16 %v1599, %v1596
    %v2338 = vpack.c.b16 %v1600, %v1597
    %v2339 = vpack.c.b16 %v1601, %v1598
    %v2340 = vpack.c.b16 %v1605, %v1602
    %v2341 = vpack.c.b16 %v1606, %v1603
    %v2342 = vpack.c.b16 %v1607, %v1604
    %v2343 = vpack.c.b16 %v1611, %v1608
    %v2344 = vpack.c.b16 %v1612, %v1609
    %v2345 = vpack.c.b16 %v1613, %v1610
    %v2346 = vpack.c.b16 %v1617, %v1614
    %v2347 = vpack.c.b16 %v1618, %v1615
    %v2348 = vpack.c.b16 %v1619, %v1616
    %v2349 = vpack.c.b16 %v1623, %v1620
    %v2350 = vpack.c.b16 %v1624, %v1621
    %v2351 = vpack.c.b16 %v1625, %v1622
    %v2352 = vpack.c.b16 %v1629, %v1626
    %v2353 = vpack.c.b16 %v1630, %v1627
    %v2354 = vpack.c.b16 %v1631, %v1628
    %v2355 = vpack.c.b16 %v1635, %v1632
    %v2356 = vpack.c.b16 %v1636, %v1633
    %v2357 = vpack.c.b16 %v1637, %v1634
    %v2358 = vpack.c.b16 %v1641, %v1638
    %v2359 = vpack.c.b16 %v1642, %v1639
    %v2360 = vpack.c.b16 %v1643, %v1640
    %v2361 = vpack.c.b16 %v1647, %v1644
    %v2362 = vpack.c.b16 %v1648, %v1645
    %v2363 = vpack.c.b16 %v1649, %v1646
    %v2364 = vpack.c.b16 %v1653, %v1650
    %v2365 = vpack.c.b16 %v1654, %v1651
    %v2366 = vpack.c.b16 %v1655, %v1652
    %v2367 = vpack.c.b16 %v1659, %v1656
    %v2368 = vpack.c.b16 %v1660, %v1657
    %v2369 = vpack.c.b16 %v1661, %v1658
    %v2370 = vpack.c.b16 %v1665, %v1662
    %v2371 = vpack.c.b16 %v1666, %v1663
    %v2372 = vpack.c.b16 %v1667, %v1664
    %v2373 = vpack.c.b16 %v1671, %v1668
    %v2374 = vpack.c.b16 %v1672, %v1669
    %v2375 = vpack.c.b16 %v1673, %v1670
    %v2376 = vpack.c.b16 %v1677, %v1674
    %v2377 = vpack.c.b16 %v1678, %v1675
    %v2378 = vpack.c.b16 %v1679, %v1676
    %v2379 = vpack.c.b16 %v1683, %v1680
    %v2380 = vpack.c.b16 %v1684, %v1681
    %v2381 = vpack.c.b16 %v1685, %v1682
    %v2382 = vpack.c.b16 %v1689, %v1686
    %v2383 = vpack.c.b16 %v1690, %v1687
    %v2384 = vpack.c.b16 %v1691, %v1688
    %v2385 = vpack.c.b16 %v1695, %v1692
    %v2386 = vpack.c.b16 %v1696, %v1693
    %v2387 = vpack.c.b16 %v1697, %v1694
    %v2388 = vpack.c.b16 %v1701, %v1698
    %v2389 = vpack.c.b16 %v1702, %v1699
    %v2390 = vpack.c.b16 %v1703, %v1700
    %v2391 = vpack.c.b16 %v1707, %v1704
    %v2392 = vpack.c.b16 %v1708, %v1705
    %v2393 = vpack.c.b16 %v1709, %v1706
    %v2394 = vpack.c.b16 %v1713, %v1710
    %v2395 = vpack.c.b16 %v1714, %v1711
    %v2396 = vpack.c.b16 %v1715, %v1712
    %v2397 = vpack.c.b16 %v1719, %v1716
    %v2398 = vpack.c.b16 %v1720, %v1717
    %v2399 = vpack.c.b16 %v1721, %v1718
    %v2400 = vpack.c.b16 %v1725, %v1722
    %v2401 = vpack.c.b16 %v1726, %v1723
    %v2402 = vpack.c.b16 %v1727, %v1724
    %v2403 = vpack.c.b16 %v1731, %v1728
    %v2404 = vpack.c.b16 %v1732, %v1729
    %v2405 = vpack.c.b16 %v1733, %v1730
    %v2406 = vpack.c.b16 %v1737, %v1734
    %v2407 = vpack.c.b16 %v1738, %v1735
    %v2408 = vpack.c.b16 %v1739, %v1736
    %v2409 = vpack.c.b16 %v1743, %v1740
    %v2410 = vpack.c.b16 %v1744, %v1741
    %v2411 = vpack.c.b16 %v1745, %v1742
    %v2412 = vpack.c.b16 %v1749, %v1746
    %v2413 = vpack.c.b16 %v1750, %v1747
    %v2414 = vpack.c.b16 %v1751, %v1748
    %v2415 = vpack.c.b16 %v1755, %v1752
    %v2416 = vpack.c.b16 %v1756, %v1753
    %v2417 = vpack.c.b16 %v1757, %v1754
    %v2418 = vpack.c.b16 %v1761, %v1758
    %v2419 = vpack.c.b16 %v1762, %v1759
    %v2420 = vpack.c.b16 %v1763, %v1760
    %v2421 = vpack.c.b16 %v1767, %v1764
    %v2422 = vpack.c.b16 %v1768, %v1765
    %v2423 = vpack.c.b16 %v1769, %v1766
    %v2424 = vpack.c.b16 %v1773, %v1770
    %v2425 = vpack.c.b16 %v1774, %v1771
    %v2426 = vpack.c.b16 %v1775, %v1772
    %v2427 = vpack.c.b16 %v1779, %v1776
    %v2428 = vpack.c.b16 %v1780, %v1777
    %v2429 = vpack.c.b16 %v1781, %v1778
    %v2430 = vpack.c.b16 %v1785, %v1782
    %v2431 = vpack.c.b16 %v1786, %v1783
    %v2432 = vpack.c.b16 %v1787, %v1784
    %v2433 = vpack.c.b16 %v1791, %v1788
    %v2434 = vpack.c.b16 %v1792, %v1789
    %v2435 = vpack.c.b16 %v1793, %v1790
    %v2436 = vpack.c.b16 %v1797, %v1794
    %v2437 = vpack.c.b16 %v1798, %v1795
    %v2438 = vpack.c.b16 %v1799, %v1796
    %v2439 = vpack.c.b16 %v1803, %v1800
    %v2440 = vpack.c.b16 %v1804, %v1801
    %v2441 = vpack.c.b16 %v1805, %v1802
    %v2442 = vpack.c.b16 %v1809, %v1806
    %v2443 = vpack.c.b16 %v1810, %v1807
    %v2444 = vpack.c.b16 %v1811, %v1808
    %v2445 = vpack.c.b16 %v1815, %v1812
    %v2446 = vpack.c.b16 %v1816, %v1813
    %v2447 = vpack.c.b16 %v1817, %v1814
    %v2448 = vpack.c.b16 %v1821, %v1818
    %v2449 = vpack.c.b16 %v1822, %v1819
    %v2450 = vpack.c.b16 %v1823, %v1820
    %v2451 = vpack.c.b16 %v1827, %v1824
    %v2452 = vpack.c.b16 %v1828, %v1825
    %v2453 = vpack.c.b16 %v1829, %v1826
    %v2454 = vpack.c.b16 %v1833, %v1830
    %v2455 = vpack.c.b16 %v1834, %v1831
    %v2456 = vpack.c.b16 %v1835, %v1832
    %v2457 = vpack.c.b16 %v1839, %v1836
    %v2458 = vpack.c.b16 %v1840, %v1837
    %v2459 = vpack.c.b16 %v1841, %v1838
    %v2460 = vpack.c.b16 %v1845, %v1842
    %v2461 = vpack.c.b16 %v1846, %v1843
    %v2462 = vpack.c.b16 %v1847, %v1844
    %v2463 = vpack.c.b16 %v1851, %v1848
    %v2464 = vpack.c.b16 %v1852, %v1849
    %v2465 = vpack.c.b16 %v1853, %v1850
    %v2466 = vpack.c.b16 %v1857, %v1854
    %v2467 = vpack.c.b16 %v1858, %v1855
    %v2468 = vpack.c.b16 %v1859, %v1856
    %v2469 = vpack.c.b16 %v1863, %v1860
    %v2470 = vpack.c.b16 %v1864, %v1861
    %v2471 = vpack.c.b16 %v1865, %v1862
    %v2472 = vpack.c.b16 %v1869, %v1866
    %v2473 = vpack.c.b16 %v1870, %v1867
    %v2474 = vpack.c.b16 %v1871, %v1868
    %v2475 = vpack.c.b16 %v1875, %v1872
    %v2476 = vpack.c.b16 %v1876, %v1873
    %v2477 = vpack.c.b16 %v1877, %v1874
    %v2478 = vpack.c.b16 %v1881, %v1878
    %v2479 = vpack.c.b16 %v1882, %v1879
    %v2480 = vpack.c.b16 %v1883, %v1880
    %v2481 = vpack.c.b16 %v1887, %v1884
    %v2482 = vpack.c.b16 %v1888, %v1885
    %v2483 = vpack.c.b16 %v1889, %v1886
    %v2484 = vpack.c.b16 %v1893, %v1890
    %v2485 = vpack.c.b16 %v1894, %v1891
    %v2486 = vpack.c.b16 %v1895, %v1892
    %v2487 = vpack.c.b16 %v1899, %v1896
    %v2488 = vpack.c.b16 %v1900, %v1897
    %v2489 = vpack.c.b16 %v1901, %v1898
    %v2490 = vpack.c.b16 %v1905, %v1902
    %v2491 = vpack.c.b16 %v1906, %v1903
    %v2492 = vpack.c.b16 %v1907, %v1904
    %v2493 = vpack.c.b16 %v1911, %v1908
    %v2494 = vpack.c.b16 %v1912, %v1909
    %v2495 = vpack.c.b16 %v1913, %v1910
    %v2496 = vpack.c.b16 %v1917, %v1914
    %v2497 = vpack.c.b16 %v1918, %v1915
    %v2498 = vpack.c.b16 %v1919, %v1916
    %v2499 = vpack.c.b16 %v1923, %v1920
    %v2500 = vpack.c.b16 %v1924, %v1921
    %v2501 = vpack.c.b16 %v1925, %v1922
    %v2502 = vpack.c.b16 %v1929, %v1926
    %v2503 = vpack.c.b16 %v1930, %v1927
    %v2504 = vpack.c.b16 %v1931, %v1928
    %v2505 = vpack.c.b16 %v1935, %v1932
    %v2506 = vpack.c.b16 %v1936, %v1933
    %v2507 = vpack.c.b16 %v1937, %v1934
    %v2508 = vpack.c.b16 %v1941, %v1938
    %v2509 = vpack.c.b16 %v1942, %v1939
    %v2510 = vpack.c.b16 %v1943, %v1940
    %v2511 = vpack.c.b16 %v1947, %v1944
    %v2512 = vpack.c.b16 %v1948, %v1945
    %v2513 = vpack.c.b16 %v1949, %v1946
    %v2514 = vpack.c.b16 %v1953, %v1950
    %v2515 = vpack.c.b16 %v1954, %v1951
    %v2516 = vpack.c.b16 %v1955, %v1952
    %v2517 = vpack.c.b16 %v1959, %v1956
    %v2518 = vpack.c.b16 %v1960, %v1957
    %v2519 = vpack.c.b16 %v1961, %v1958
    %v2520 = vpack.c.b16 %v1965, %v1962
    %v2521 = vpack.c.b16 %v1966, %v1963
    %v2522 = vpack.c.b16 %v1967, %v1964
    %v2523 = vpack.c.b16 %v1971, %v1968
    %v2524 = vpack.c.b16 %v1972, %v1969
    %v2525 = vpack.c.b16 %v1973, %v1970
    %v2526 = vpack.c.b16 %v1977, %v1974
    %v2527 = vpack.c.b16 %v1978, %v1975
    %v2528 = vpack.c.b16 %v1979, %v1976
    %v2529 = vpack.c.b16 %v1983, %v1980
    %v2530 = vpack.c.b16 %v1984, %v1981
    %v2531 = vpack.c.b16 %v1985, %v1982
    %v2532 = vpack.c.b16 %v1989, %v1986
    %v2533 = vpack.c.b16 %v1990, %v1987
    %v2534 = vpack.c.b16 %v1991, %v1988
    %v2535 = vpack.c.b16 %v1995, %v1992
    %v2536 = vpack.c.b16 %v1996, %v1993
    %v2537 = vpack.c.b16 %v1997, %v1994
    %v2538 = vpack.c.b16 %v2001, %v1998
    %v2539 = vpack.c.b16 %v2002, %v1999
    %v2540 = vpack.c.b16 %v2003, %v2000
    %v2541 = vpack.c.b16 %v2007, %v2004
    %v2542 = vpack.c.b16 %v2008, %v2005
    %v2543 = vpack.c.b16 %v2009, %v2006
    %v2544 = vpack.c.b16 %v2013, %v2010
    %v2545 = vpack.c.b16 %v2014, %v2011
    %v2546 = vpack.c.b16 %v2015, %v2012
    %v2547 = vpack.c.b16 %v2019, %v2016
    %v2548 = vpack.c.b16 %v2020, %v2017
    %v2549 = vpack.c.b16 %v2021, %v2018
    %v2550 = vpack.c.b16 %v2025, %v2022
    %v2551 = vpack.c.b16 %v2026, %v2023
    %v2552 = vpack.c.b16 %v2027, %v2024
    %v2553 = vpack.c.b16 %v2031, %v2028
    %v2554 = vpack.c.b16 %v2032, %v2029
    %v2555 = vpack.c.b16 %v2033, %v2030
    %v2556 = vpack.c.b16 %v2037, %v2034
    %v2557 = vpack.c.b16 %v2038, %v2035
    %v2558 = vpack.c.b16 %v2039, %v2036
    %v2559 = vpack.c.b16 %v2043, %v2040
    %v2560 = vpack.c.b16 %v2044, %v2041
    %v2561 = vpack.c.b16 %v2045, %v2042
    %v2562 = vpack.c.b16 %v2049, %v2046
    %v2563 = vpack.c.b16 %v2050, %v2047
    %v2564 = vpack.c.b16 %v2051, %v2048
    %v2565 = vpack.c.b16 %v2055, %v2052
    %v2566 = vpack.c.b16 %v2056, %v2053
    %v2567 = vpack.c.b16 %v2057, %v2054
    %v2568 = vpack.c.b16 %v2061, %v2058
    %v2569 = vpack.c.b16 %v2062, %v2059
    %v2570 = vpack.c.b16 %v2063, %v2060
    %v2571 = vpack.c.b16 %v2067, %v2064
    %v2572 = vpack.c.b16 %v2068, %v2065
    %v2573 = vpack.c.b16 %v2069, %v2066
    %v2574 = vpack.c.b16 %v2073, %v2070
    %v2575 = vpack.c.b16 %v2074, %v2071
    %v2576 = vpack.c.b16 %v2075, %v2072
    %v2577 = vpack.c.b16 %v2079, %v2076
    %v2578 = vpack.c.b16 %v2080, %v2077
    %v2579 = vpack.c.b16 %v2081, %v2078
    %v2580 = vpack.c.b16 %v2085, %v2082
    %v2581 = vpack.c.b16 %v2086, %v2083
    %v2582 = vpack.c.b16 %v2087, %v2084
    %v2583 = vpack.c.b16 %v2091, %v2088
    %v2584 = vpack.c.b16 %v2092, %v2089
    %v2585 = vpack.c.b16 %v2093, %v2090
    %v2586 = vpack.c.b16 %v2097, %v2094
    %v2587 = vpack.c.b16 %v2098, %v2095
    %v2588 = vpack.c.b16 %v2099, %v2096
    %v2589 = vpack.c.b16 %v2103, %v2100
    %v2590 = vpack.c.b16 %v2104, %v2101
    %v2591 = vpack.c.b16 %v2105, %v2102
    %v2592 = vpack.c.b16 %v2109, %v2106
    %v2593 = vpack.c.b16 %v2110, %v2107
    %v2594 = vpack.c.b16 %v2111, %v2108
    %v2595 = vpack.c.b16 %v2115, %v2112
    %v2596 = vpack.c.b16 %v2116, %v2113
    %v2597 = vpack.c.b16 %v2117, %v2114
    %v2598 = vpack.c.b16 %v2121, %v2118
    %v2599 = vpack.c.b16 %v2122, %v2119
    %v2600 = vpack.c.b16 %v2123, %v2120
    %v2601 = vpack.c.b16 %v2127, %v2124
    %v2602 = vpack.c.b16 %v2128, %v2125
    %v2603 = vpack.c.b16 %v2129, %v2126
    %v2604 = vpack.c.b16 %v2133, %v2130
    %v2605 = vpack.c.b16 %v2134, %v2131
    %v2606 = vpack.c.b16 %v2135, %v2132
    %v2607 = vpack.c.b16 %v2139, %v2136
    %v2608 = vpack.c.b16 %v2140, %v2137
    %v2609 = vpack.c.b16 %v2141, %v2138
    %v2610 = vpack.c.b16 %v2145, %v2142
    %v2611 = vpack.c.b16 %v2146, %v2143
    %v2612 = vpack.c.b16 %v2147, %v2144
    %v2613 = vpack.c.b16 %v2151, %v2148
    %v2614 = vpack.c.b16 %v2152, %v2149
    %v2615 = vpack.c.b16 %v2153, %v2150
    %v2616 = vpack.c.b16 %v2157, %v2154
    %v2617 = vpack.c.b16 %v2158, %v2155
    %v2618 = vpack.c.b16 %v2159, %v2156
    %v2619 = vpack.c.b16 %v2163, %v2160
    %v2620 = vpack.c.b16 %v2164, %v2161
    %v2621 = vpack.c.b16 %v2165, %v2162
    %v2622 = vpack.c.b16 %v2169, %v2166
    %v2623 = vpack.c.b16 %v2170, %v2167
    %v2624 = vpack.c.b16 %v2171, %v2168
    %v2625 = vpack.c.b16 %v2175, %v2172
    %v2626 = vpack.c.b16 %v2176, %v2173
    %v2627 = vpack.c.b16 %v2177, %v2174
    %v2628 = vpack.c.b16 %v2181, %v2178
    %v2629 = vpack.c.b16 %v2182, %v2179
    %v2630 = vpack.c.b16 %v2183, %v2180
    %v2631 = vpack.c.b16 %v2187, %v2184
    %v2632 = vpack.c.b16 %v2188, %v2185
    %v2633 = vpack.c.b16 %v2189, %v2186
    %v2634 = vpack.c.b16 %v2193, %v2190
    %v2635 = vpack.c.b16 %v2194, %v2191
    %v2636 = vpack.c.b16 %v2195, %v2192
    %v2637 = vpack.c.b16 %v2199, %v2196
    %v2638 = vpack.c.b16 %v2200, %v2197
    %v2639 = vpack.c.b16 %v2201, %v2198
    %v2640 = vpack.c.b16 %v2205, %v2202
    %v2641 = vpack.c.b16 %v2206, %v2203
    %v2642 = vpack.c.b16 %v2207, %v2204
    %v2643 = vpack.c.b16 %v2211, %v2208
    %v2644 = vpack.c.b16 %v2212, %v2209
    %v2645 = vpack.c.b16 %v2213, %v2210
    %3078 = vmatpush.bf16.msra.mxu0 %v181
    %3079 = vmatpush.bf16.msra.mxu0 %v180
    %3080 = vmatpush.bf16.msra.mxu0 %v179
    %3081 = vmatpush.bf16.msra.mxu0 %v178
    %3082 = vmatpush.bf16.msra.mxu0 %v177
    %3083 = vmatpush.bf16.msra.mxu0 %v176
    %3084 = vmatpush.bf16.msra.mxu0 %v175
    %3085 = vmatpush.bf16.msra.mxu0 %v174
    %3086 = vmatmul.bf16.gmra.mxu0 %v2214
    %v3087 = vpop.f32.mrf.mxu0
    %v3088 = vadd.f32 0.0, %v3087
    %v3089 = vpop.f32.mrf.mxu0
    %v3090 = vadd.f32 0.0, %v3089
    %3091 = vmatmul.bf16.gmra.mxu0 %v2217
    %v3092 = vpop.f32.mrf.mxu0
    %v3093 = vadd.f32 0.0, %v3092
    %v3094 = vpop.f32.mrf.mxu0
    %v3095 = vadd.f32 0.0, %v3094
    %3096 = vmatmul.bf16.gmra.mxu0 %v2220
    %v3097 = vpop.f32.mrf.mxu0
    %v3098 = vadd.f32 0.0, %v3097
    %v3099 = vpop.f32.mrf.mxu0
    %v3100 = vadd.f32 0.0, %v3099
    %3101 = vmatmul.bf16.gmra.mxu0 %v2223
    %v3102 = vpop.f32.mrf.mxu0
    %v3103 = vadd.f32 0.0, %v3102
    %v3104 = vpop.f32.mrf.mxu0
    %v3105 = vadd.f32 0.0, %v3104
    %3106 = vmatmul.bf16.gmra.mxu0 %v2226
    %v3107 = vpop.f32.mrf.mxu0
    %v3108 = vadd.f32 0.0, %v3107
    %v3109 = vpop.f32.mrf.mxu0
    %v3110 = vadd.f32 0.0, %v3109
    %3111 = vmatmul.bf16.gmra.mxu0 %v2229
    %v3112 = vpop.f32.mrf.mxu0
    %v3113 = vadd.f32 0.0, %v3112
    %v3114 = vpop.f32.mrf.mxu0
    %v3115 = vadd.f32 0.0, %v3114
    %3116 = vmatmul.bf16.gmra.mxu0 %v2232
    %v3117 = vpop.f32.mrf.mxu0
    %v3118 = vadd.f32 0.0, %v3117
    %v3119 = vpop.f32.mrf.mxu0
    %v3120 = vadd.f32 0.0, %v3119
    %3121 = vmatmul.bf16.gmra.mxu0 %v2235
    %v3122 = vpop.f32.mrf.mxu0
    %v3123 = vadd.f32 0.0, %v3122
    %v3124 = vpop.f32.mrf.mxu0
    %v3125 = vadd.f32 0.0, %v3124
    %3126 = vmatmul.bf16.gmra.mxu0 %v2238
    %v3127 = vpop.f32.mrf.mxu0
    %v3128 = vadd.f32 0.0, %v3127
    %v3129 = vpop.f32.mrf.mxu0
    %v3130 = vadd.f32 0.0, %v3129
    %3131 = vmatmul.bf16.gmra.mxu0 %v2241
    %v3132 = vpop.f32.mrf.mxu0
    %v3133 = vadd.f32 0.0, %v3132
    %v3134 = vpop.f32.mrf.mxu0
    %v3135 = vadd.f32 0.0, %v3134
    %3136 = vmatmul.bf16.gmra.mxu0 %v2244
    %v3137 = vpop.f32.mrf.mxu0
    %v3138 = vadd.f32 0.0, %v3137
    %v3139 = vpop.f32.mrf.mxu0
    %v3140 = vadd.f32 0.0, %v3139
    %3141 = vmatmul.bf16.gmra.mxu0 %v2247
    %v3142 = vpop.f32.mrf.mxu0
    %v3143 = vadd.f32 0.0, %v3142
    %v3144 = vpop.f32.mrf.mxu0
    %v3145 = vadd.f32 0.0, %v3144
    %3146 = vmatmul.bf16.gmra.mxu0 %v2250
    %v3147 = vpop.f32.mrf.mxu0
    %v3148 = vadd.f32 0.0, %v3147
    %v3149 = vpop.f32.mrf.mxu0
    %v3150 = vadd.f32 0.0, %v3149
    %3151 = vmatmul.bf16.gmra.mxu0 %v2253
    %v3152 = vpop.f32.mrf.mxu0
    %v3153 = vadd.f32 0.0, %v3152
    %v3154 = vpop.f32.mrf.mxu0
    %v3155 = vadd.f32 0.0, %v3154
    %3156 = vmatmul.bf16.gmra.mxu0 %v2256
    %v3157 = vpop.f32.mrf.mxu0
    %v3158 = vadd.f32 0.0, %v3157
    %v3159 = vpop.f32.mrf.mxu0
    %v3160 = vadd.f32 0.0, %v3159
    %3161 = vmatmul.bf16.gmra.mxu0 %v2259
    %v3162 = vpop.f32.mrf.mxu0
    %v3163 = vadd.f32 0.0, %v3162
    %v3164 = vpop.f32.mrf.mxu0
    %v3165 = vadd.f32 0.0, %v3164
    %3166 = vmatmul.bf16.gmra.mxu0 %v2262
    %v3167 = vpop.f32.mrf.mxu0
    %v3168 = vadd.f32 0.0, %v3167
    %v3169 = vpop.f32.mrf.mxu0
    %v3170 = vadd.f32 0.0, %v3169
    %3171 = vmatmul.bf16.gmra.mxu0 %v2265
    %v3172 = vpop.f32.mrf.mxu0
    %v3173 = vadd.f32 0.0, %v3172
    %v3174 = vpop.f32.mrf.mxu0
    %v3175 = vadd.f32 0.0, %v3174
    %3176 = vmatmul.bf16.gmra.mxu0 %v2268
    %v3177 = vpop.f32.mrf.mxu0
    %v3178 = vadd.f32 0.0, %v3177
    %v3179 = vpop.f32.mrf.mxu0
    %v3180 = vadd.f32 0.0, %v3179
    %3181 = vmatmul.bf16.gmra.mxu0 %v2271
    %v3182 = vpop.f32.mrf.mxu0
    %v3183 = vadd.f32 0.0, %v3182
    %v3184 = vpop.f32.mrf.mxu0
    %v3185 = vadd.f32 0.0, %v3184
    %3186 = vmatmul.bf16.gmra.mxu0 %v2274
    %v3187 = vpop.f32.mrf.mxu0
    %v3188 = vadd.f32 0.0, %v3187
    %v3189 = vpop.f32.mrf.mxu0
    %v3190 = vadd.f32 0.0, %v3189
    %3191 = vmatmul.bf16.gmra.mxu0 %v2277
    %v3192 = vpop.f32.mrf.mxu0
    %v3193 = vadd.f32 0.0, %v3192
    %v3194 = vpop.f32.mrf.mxu0
    %v3195 = vadd.f32 0.0, %v3194
    %3196 = vmatmul.bf16.gmra.mxu0 %v2280
    %v3197 = vpop.f32.mrf.mxu0
    %v3198 = vadd.f32 0.0, %v3197
    %v3199 = vpop.f32.mrf.mxu0
    %v3200 = vadd.f32 0.0, %v3199
    %3201 = vmatmul.bf16.gmra.mxu0 %v2283
    %v3202 = vpop.f32.mrf.mxu0
    %v3203 = vadd.f32 0.0, %v3202
    %v3204 = vpop.f32.mrf.mxu0
    %v3205 = vadd.f32 0.0, %v3204
    %3206 = vmatmul.bf16.gmra.mxu0 %v2286
    %v3207 = vpop.f32.mrf.mxu0
    %v3208 = vadd.f32 0.0, %v3207
    %v3209 = vpop.f32.mrf.mxu0
    %v3210 = vadd.f32 0.0, %v3209
    %3211 = vmatmul.bf16.gmra.mxu0 %v2289
    %v3212 = vpop.f32.mrf.mxu0
    %v3213 = vadd.f32 0.0, %v3212
    %v3214 = vpop.f32.mrf.mxu0
    %v3215 = vadd.f32 0.0, %v3214
    %3216 = vmatmul.bf16.gmra.mxu0 %v2292
    %v3217 = vpop.f32.mrf.mxu0
    %v3218 = vadd.f32 0.0, %v3217
    %v3219 = vpop.f32.mrf.mxu0
    %v3220 = vadd.f32 0.0, %v3219
    %3221 = vmatmul.bf16.gmra.mxu0 %v2295
    %v3222 = vpop.f32.mrf.mxu0
    %v3223 = vadd.f32 0.0, %v3222
    %v3224 = vpop.f32.mrf.mxu0
    %v3225 = vadd.f32 0.0, %v3224
    %3226 = vmatmul.bf16.gmra.mxu0 %v2298
    %v3227 = vpop.f32.mrf.mxu0
    %v3228 = vadd.f32 0.0, %v3227
    %v3229 = vpop.f32.mrf.mxu0
    %v3230 = vadd.f32 0.0, %v3229
    %3231 = vmatmul.bf16.gmra.mxu0 %v2301
    %v3232 = vpop.f32.mrf.mxu0
    %v3233 = vadd.f32 0.0, %v3232
    %v3234 = vpop.f32.mrf.mxu0
    %v3235 = vadd.f32 0.0, %v3234
    %3236 = vmatmul.bf16.gmra.mxu0 %v2304
    %v3237 = vpop.f32.mrf.mxu0
    %v3238 = vadd.f32 0.0, %v3237
    %v3239 = vpop.f32.mrf.mxu0
    %v3240 = vadd.f32 0.0, %v3239
    %3241 = vmatmul.bf16.gmra.mxu0 %v2307
    %v3242 = vpop.f32.mrf.mxu0
    %v3243 = vadd.f32 0.0, %v3242
    %v3244 = vpop.f32.mrf.mxu0
    %v3245 = vadd.f32 0.0, %v3244
    %3246 = vmatmul.bf16.gmra.mxu0 %v2310
    %v3247 = vpop.f32.mrf.mxu0
    %v3248 = vadd.f32 0.0, %v3247
    %v3249 = vpop.f32.mrf.mxu0
    %v3250 = vadd.f32 0.0, %v3249
    %3251 = vmatmul.bf16.gmra.mxu0 %v2313
    %v3252 = vpop.f32.mrf.mxu0
    %v3253 = vadd.f32 0.0, %v3252
    %v3254 = vpop.f32.mrf.mxu0
    %v3255 = vadd.f32 0.0, %v3254
    %3256 = vmatmul.bf16.gmra.mxu0 %v2316
    %v3257 = vpop.f32.mrf.mxu0
    %v3258 = vadd.f32 0.0, %v3257
    %v3259 = vpop.f32.mrf.mxu0
    %v3260 = vadd.f32 0.0, %v3259
    %3261 = vmatmul.bf16.gmra.mxu0 %v2319
    %v3262 = vpop.f32.mrf.mxu0
    %v3263 = vadd.f32 0.0, %v3262
    %v3264 = vpop.f32.mrf.mxu0
    %v3265 = vadd.f32 0.0, %v3264
    %3266 = vmatmul.bf16.gmra.mxu0 %v2322
    %v3267 = vpop.f32.mrf.mxu0
    %v3268 = vadd.f32 0.0, %v3267
    %v3269 = vpop.f32.mrf.mxu0
    %v3270 = vadd.f32 0.0, %v3269
    %3271 = vmatmul.bf16.gmra.mxu0 %v2325
    %v3272 = vpop.f32.mrf.mxu0
    %v3273 = vadd.f32 0.0, %v3272
    %v3274 = vpop.f32.mrf.mxu0
    %v3275 = vadd.f32 0.0, %v3274
    %3276 = vmatmul.bf16.gmra.mxu0 %v2328
    %v3277 = vpop.f32.mrf.mxu0
    %v3278 = vadd.f32 0.0, %v3277
    %v3279 = vpop.f32.mrf.mxu0
    %v3280 = vadd.f32 0.0, %v3279
    %3281 = vmatmul.bf16.gmra.mxu0 %v2331
    %v3282 = vpop.f32.mrf.mxu0
    %v3283 = vadd.f32 0.0, %v3282
    %v3284 = vpop.f32.mrf.mxu0
    %v3285 = vadd.f32 0.0, %v3284
    %3286 = vmatmul.bf16.gmra.mxu0 %v2334
    %v3287 = vpop.f32.mrf.mxu0
    %v3288 = vadd.f32 0.0, %v3287
    %v3289 = vpop.f32.mrf.mxu0
    %v3290 = vadd.f32 0.0, %v3289
    %3291 = vmatmul.bf16.gmra.mxu0 %v2337
    %v3292 = vpop.f32.mrf.mxu0
    %v3293 = vadd.f32 0.0, %v3292
    %v3294 = vpop.f32.mrf.mxu0
    %v3295 = vadd.f32 0.0, %v3294
    %3296 = vmatmul.bf16.gmra.mxu0 %v2340
    %v3297 = vpop.f32.mrf.mxu0
    %v3298 = vadd.f32 0.0, %v3297
    %v3299 = vpop.f32.mrf.mxu0
    %v3300 = vadd.f32 0.0, %v3299
    %3301 = vmatmul.bf16.gmra.mxu0 %v2343
    %v3302 = vpop.f32.mrf.mxu0
    %v3303 = vadd.f32 0.0, %v3302
    %v3304 = vpop.f32.mrf.mxu0
    %v3305 = vadd.f32 0.0, %v3304
    %3306 = vmatmul.bf16.gmra.mxu0 %v2346
    %v3307 = vpop.f32.mrf.mxu0
    %v3308 = vadd.f32 0.0, %v3307
    %v3309 = vpop.f32.mrf.mxu0
    %v3310 = vadd.f32 0.0, %v3309
    %3311 = vmatmul.bf16.gmra.mxu0 %v2349
    %v3312 = vpop.f32.mrf.mxu0
    %v3313 = vadd.f32 0.0, %v3312
    %v3314 = vpop.f32.mrf.mxu0
    %v3315 = vadd.f32 0.0, %v3314
    %3316 = vmatmul.bf16.gmra.mxu0 %v2352
    %v3317 = vpop.f32.mrf.mxu0
    %v3318 = vadd.f32 0.0, %v3317
    %v3319 = vpop.f32.mrf.mxu0
    %v3320 = vadd.f32 0.0, %v3319
    %3321 = vmatmul.bf16.gmra.mxu0 %v2355
    %v3322 = vpop.f32.mrf.mxu0
    %v3323 = vadd.f32 0.0, %v3322
    %v3324 = vpop.f32.mrf.mxu0
    %v3325 = vadd.f32 0.0, %v3324
    %3326 = vmatmul.bf16.gmra.mxu0 %v2358
    %v3327 = vpop.f32.mrf.mxu0
    %v3328 = vadd.f32 0.0, %v3327
    %v3329 = vpop.f32.mrf.mxu0
    %v3330 = vadd.f32 0.0, %v3329
    %3331 = vmatmul.bf16.gmra.mxu0 %v2361
    %v3332 = vpop.f32.mrf.mxu0
    %v3333 = vadd.f32 0.0, %v3332
    %v3334 = vpop.f32.mrf.mxu0
    %v3335 = vadd.f32 0.0, %v3334
    %3336 = vmatmul.bf16.gmra.mxu0 %v2364
    %v3337 = vpop.f32.mrf.mxu0
    %v3338 = vadd.f32 0.0, %v3337
    %v3339 = vpop.f32.mrf.mxu0
    %v3340 = vadd.f32 0.0, %v3339
    %3341 = vmatmul.bf16.gmra.mxu0 %v2367
    %v3342 = vpop.f32.mrf.mxu0
    %v3343 = vadd.f32 0.0, %v3342
    %v3344 = vpop.f32.mrf.mxu0
    %v3345 = vadd.f32 0.0, %v3344
    %3346 = vmatmul.bf16.gmra.mxu0 %v2370
    %v3347 = vpop.f32.mrf.mxu0
    %v3348 = vadd.f32 0.0, %v3347
    %v3349 = vpop.f32.mrf.mxu0
    %v3350 = vadd.f32 0.0, %v3349
    %3351 = vmatmul.bf16.gmra.mxu0 %v2373
    %v3352 = vpop.f32.mrf.mxu0
    %v3353 = vadd.f32 0.0, %v3352
    %v3354 = vpop.f32.mrf.mxu0
    %v3355 = vadd.f32 0.0, %v3354
    %3356 = vmatmul.bf16.gmra.mxu0 %v2376
    %v3357 = vpop.f32.mrf.mxu0
    %v3358 = vadd.f32 0.0, %v3357
    %v3359 = vpop.f32.mrf.mxu0
    %v3360 = vadd.f32 0.0, %v3359
    %3361 = vmatmul.bf16.gmra.mxu0 %v2379
    %v3362 = vpop.f32.mrf.mxu0
    %v3363 = vadd.f32 0.0, %v3362
    %v3364 = vpop.f32.mrf.mxu0
    %v3365 = vadd.f32 0.0, %v3364
    %3366 = vmatmul.bf16.gmra.mxu0 %v2382
    %v3367 = vpop.f32.mrf.mxu0
    %v3368 = vadd.f32 0.0, %v3367
    %v3369 = vpop.f32.mrf.mxu0
    %v3370 = vadd.f32 0.0, %v3369
    %3371 = vmatmul.bf16.gmra.mxu0 %v2385
    %v3372 = vpop.f32.mrf.mxu0
    %v3373 = vadd.f32 0.0, %v3372
    %v3374 = vpop.f32.mrf.mxu0
    %v3375 = vadd.f32 0.0, %v3374
    %3376 = vmatmul.bf16.gmra.mxu0 %v2388
    %v3377 = vpop.f32.mrf.mxu0
    %v3378 = vadd.f32 0.0, %v3377
    %v3379 = vpop.f32.mrf.mxu0
    %v3380 = vadd.f32 0.0, %v3379
    %3381 = vmatmul.bf16.gmra.mxu0 %v2391
    %v3382 = vpop.f32.mrf.mxu0
    %v3383 = vadd.f32 0.0, %v3382
    %v3384 = vpop.f32.mrf.mxu0
    %v3385 = vadd.f32 0.0, %v3384
    %3386 = vmatmul.bf16.gmra.mxu0 %v2394
    %v3387 = vpop.f32.mrf.mxu0
    %v3388 = vadd.f32 0.0, %v3387
    %v3389 = vpop.f32.mrf.mxu0
    %v3390 = vadd.f32 0.0, %v3389
    %3391 = vmatmul.bf16.gmra.mxu0 %v2397
    %v3392 = vpop.f32.mrf.mxu0
    %v3393 = vadd.f32 0.0, %v3392
    %v3394 = vpop.f32.mrf.mxu0
    %v3395 = vadd.f32 0.0, %v3394
    %3396 = vmatmul.bf16.gmra.mxu0 %v2400
    %v3397 = vpop.f32.mrf.mxu0
    %v3398 = vadd.f32 0.0, %v3397
    %v3399 = vpop.f32.mrf.mxu0
    %v3400 = vadd.f32 0.0, %v3399
    %3401 = vmatmul.bf16.gmra.mxu0 %v2403
    %v3402 = vpop.f32.mrf.mxu0
    %v3403 = vadd.f32 0.0, %v3402
    %v3404 = vpop.f32.mrf.mxu0
    %v3405 = vadd.f32 0.0, %v3404
    %3406 = vmatmul.bf16.gmra.mxu0 %v2406
    %v3407 = vpop.f32.mrf.mxu0
    %v3408 = vadd.f32 0.0, %v3407
    %v3409 = vpop.f32.mrf.mxu0
    %v3410 = vadd.f32 0.0, %v3409
    %3411 = vmatmul.bf16.gmra.mxu0 %v2409
    %v3412 = vpop.f32.mrf.mxu0
    %v3413 = vadd.f32 0.0, %v3412
    %v3414 = vpop.f32.mrf.mxu0
    %v3415 = vadd.f32 0.0, %v3414
    %3416 = vmatmul.bf16.gmra.mxu0 %v2412
    %v3417 = vpop.f32.mrf.mxu0
    %v3418 = vadd.f32 0.0, %v3417
    %v3419 = vpop.f32.mrf.mxu0
    %v3420 = vadd.f32 0.0, %v3419
    %3421 = vmatmul.bf16.gmra.mxu0 %v2415
    %v3422 = vpop.f32.mrf.mxu0
    %v3423 = vadd.f32 0.0, %v3422
    %v3424 = vpop.f32.mrf.mxu0
    %v3425 = vadd.f32 0.0, %v3424
    %3426 = vmatmul.bf16.gmra.mxu0 %v2418
    %v3427 = vpop.f32.mrf.mxu0
    %v3428 = vadd.f32 0.0, %v3427
    %v3429 = vpop.f32.mrf.mxu0
    %v3430 = vadd.f32 0.0, %v3429
    %3431 = vmatmul.bf16.gmra.mxu0 %v2421
    %v3432 = vpop.f32.mrf.mxu0
    %v3433 = vadd.f32 0.0, %v3432
    %v3434 = vpop.f32.mrf.mxu0
    %v3435 = vadd.f32 0.0, %v3434
    %3436 = vmatmul.bf16.gmra.mxu0 %v2424
    %v3437 = vpop.f32.mrf.mxu0
    %v3438 = vadd.f32 0.0, %v3437
    %v3439 = vpop.f32.mrf.mxu0
    %v3440 = vadd.f32 0.0, %v3439
    %3441 = vmatmul.bf16.gmra.mxu0 %v2427
    %v3442 = vpop.f32.mrf.mxu0
    %v3443 = vadd.f32 0.0, %v3442
    %v3444 = vpop.f32.mrf.mxu0
    %v3445 = vadd.f32 0.0, %v3444
    %3446 = vmatmul.bf16.gmra.mxu0 %v2430
    %v3447 = vpop.f32.mrf.mxu0
    %v3448 = vadd.f32 0.0, %v3447
    %v3449 = vpop.f32.mrf.mxu0
    %v3450 = vadd.f32 0.0, %v3449
    %3451 = vmatmul.bf16.gmra.mxu0 %v2433
    %v3452 = vpop.f32.mrf.mxu0
    %v3453 = vadd.f32 0.0, %v3452
    %v3454 = vpop.f32.mrf.mxu0
    %v3455 = vadd.f32 0.0, %v3454
    %3456 = vmatmul.bf16.gmra.mxu0 %v2436
    %v3457 = vpop.f32.mrf.mxu0
    %v3458 = vadd.f32 0.0, %v3457
    %v3459 = vpop.f32.mrf.mxu0
    %v3460 = vadd.f32 0.0, %v3459
    %3461 = vmatmul.bf16.gmra.mxu0 %v2439
    %v3462 = vpop.f32.mrf.mxu0
    %v3463 = vadd.f32 0.0, %v3462
    %v3464 = vpop.f32.mrf.mxu0
    %v3465 = vadd.f32 0.0, %v3464
    %3466 = vmatmul.bf16.gmra.mxu0 %v2442
    %v3467 = vpop.f32.mrf.mxu0
    %v3468 = vadd.f32 0.0, %v3467
    %v3469 = vpop.f32.mrf.mxu0
    %v3470 = vadd.f32 0.0, %v3469
    %3471 = vmatmul.bf16.gmra.mxu0 %v2445
    %v3472 = vpop.f32.mrf.mxu0
    %v3473 = vadd.f32 0.0, %v3472
    %v3474 = vpop.f32.mrf.mxu0
    %v3475 = vadd.f32 0.0, %v3474
    %3476 = vmatmul.bf16.gmra.mxu0 %v2448
    %v3477 = vpop.f32.mrf.mxu0
    %v3478 = vadd.f32 0.0, %v3477
    %v3479 = vpop.f32.mrf.mxu0
    %v3480 = vadd.f32 0.0, %v3479
    %3481 = vmatmul.bf16.gmra.mxu0 %v2451
    %v3482 = vpop.f32.mrf.mxu0
    %v3483 = vadd.f32 0.0, %v3482
    %v3484 = vpop.f32.mrf.mxu0
    %v3485 = vadd.f32 0.0, %v3484
    %3486 = vmatmul.bf16.gmra.mxu0 %v2454
    %v3487 = vpop.f32.mrf.mxu0
    %v3488 = vadd.f32 0.0, %v3487
    %v3489 = vpop.f32.mrf.mxu0
    %v3490 = vadd.f32 0.0, %v3489
    %3491 = vmatmul.bf16.gmra.mxu0 %v2457
    %v3492 = vpop.f32.mrf.mxu0
    %v3493 = vadd.f32 0.0, %v3492
    %v3494 = vpop.f32.mrf.mxu0
    %v3495 = vadd.f32 0.0, %v3494
    %3496 = vmatmul.bf16.gmra.mxu0 %v2460
    %v3497 = vpop.f32.mrf.mxu0
    %v3498 = vadd.f32 0.0, %v3497
    %v3499 = vpop.f32.mrf.mxu0
    %v3500 = vadd.f32 0.0, %v3499
    %3501 = vmatmul.bf16.gmra.mxu0 %v2463
    %v3502 = vpop.f32.mrf.mxu0
    %v3503 = vadd.f32 0.0, %v3502
    %v3504 = vpop.f32.mrf.mxu0
    %v3505 = vadd.f32 0.0, %v3504
    %3506 = vmatmul.bf16.gmra.mxu0 %v2466
    %v3507 = vpop.f32.mrf.mxu0
    %v3508 = vadd.f32 0.0, %v3507
    %v3509 = vpop.f32.mrf.mxu0
    %v3510 = vadd.f32 0.0, %v3509
    %3511 = vmatmul.bf16.gmra.mxu0 %v2469
    %v3512 = vpop.f32.mrf.mxu0
    %v3513 = vadd.f32 0.0, %v3512
    %v3514 = vpop.f32.mrf.mxu0
    %v3515 = vadd.f32 0.0, %v3514
    %3516 = vmatmul.bf16.gmra.mxu0 %v2472
    %v3517 = vpop.f32.mrf.mxu0
    %v3518 = vadd.f32 0.0, %v3517
    %v3519 = vpop.f32.mrf.mxu0
    %v3520 = vadd.f32 0.0, %v3519
    %3521 = vmatmul.bf16.gmra.mxu0 %v2475
    %v3522 = vpop.f32.mrf.mxu0
    %v3523 = vadd.f32 0.0, %v3522
    %v3524 = vpop.f32.mrf.mxu0
    %v3525 = vadd.f32 0.0, %v3524
    %3526 = vmatmul.bf16.gmra.mxu0 %v2478
    %v3527 = vpop.f32.mrf.mxu0
    %v3528 = vadd.f32 0.0, %v3527
    %v3529 = vpop.f32.mrf.mxu0
    %v3530 = vadd.f32 0.0, %v3529
    %3531 = vmatmul.bf16.gmra.mxu0 %v2481
    %v3532 = vpop.f32.mrf.mxu0
    %v3533 = vadd.f32 0.0, %v3532
    %v3534 = vpop.f32.mrf.mxu0
    %v3535 = vadd.f32 0.0, %v3534
    %3536 = vmatmul.bf16.gmra.mxu0 %v2484
    %v3537 = vpop.f32.mrf.mxu0
    %v3538 = vadd.f32 0.0, %v3537
    %v3539 = vpop.f32.mrf.mxu0
    %v3540 = vadd.f32 0.0, %v3539
    %3541 = vmatmul.bf16.gmra.mxu0 %v2487
    %v3542 = vpop.f32.mrf.mxu0
    %v3543 = vadd.f32 0.0, %v3542
    %v3544 = vpop.f32.mrf.mxu0
    %v3545 = vadd.f32 0.0, %v3544
    %3546 = vmatmul.bf16.gmra.mxu0 %v2490
    %v3547 = vpop.f32.mrf.mxu0
    %v3548 = vadd.f32 0.0, %v3547
    %v3549 = vpop.f32.mrf.mxu0
    %v3550 = vadd.f32 0.0, %v3549
    %3551 = vmatmul.bf16.gmra.mxu0 %v2493
    %v3552 = vpop.f32.mrf.mxu0
    %v3553 = vadd.f32 0.0, %v3552
    %v3554 = vpop.f32.mrf.mxu0
    %v3555 = vadd.f32 0.0, %v3554
    %3556 = vmatmul.bf16.gmra.mxu0 %v2496
    %v3557 = vpop.f32.mrf.mxu0
    %v3558 = vadd.f32 0.0, %v3557
    %v3559 = vpop.f32.mrf.mxu0
    %v3560 = vadd.f32 0.0, %v3559
    %3561 = vmatmul.bf16.gmra.mxu0 %v2499
    %v3562 = vpop.f32.mrf.mxu0
    %v3563 = vadd.f32 0.0, %v3562
    %v3564 = vpop.f32.mrf.mxu0
    %v3565 = vadd.f32 0.0, %v3564
    %3566 = vmatmul.bf16.gmra.mxu0 %v2502
    %v3567 = vpop.f32.mrf.mxu0
    %v3568 = vadd.f32 0.0, %v3567
    %v3569 = vpop.f32.mrf.mxu0
    %v3570 = vadd.f32 0.0, %v3569
    %3571 = vmatmul.bf16.gmra.mxu0 %v2505
    %v3572 = vpop.f32.mrf.mxu0
    %v3573 = vadd.f32 0.0, %v3572
    %v3574 = vpop.f32.mrf.mxu0
    %v3575 = vadd.f32 0.0, %v3574
    %3576 = vmatmul.bf16.gmra.mxu0 %v2508
    %v3577 = vpop.f32.mrf.mxu0
    %v3578 = vadd.f32 0.0, %v3577
    %v3579 = vpop.f32.mrf.mxu0
    %v3580 = vadd.f32 0.0, %v3579
    %3581 = vmatmul.bf16.gmra.mxu0 %v2511
    %v3582 = vpop.f32.mrf.mxu0
    %v3583 = vadd.f32 0.0, %v3582
    %v3584 = vpop.f32.mrf.mxu0
    %v3585 = vadd.f32 0.0, %v3584
    %3586 = vmatmul.bf16.gmra.mxu0 %v2514
    %v3587 = vpop.f32.mrf.mxu0
    %v3588 = vadd.f32 0.0, %v3587
    %v3589 = vpop.f32.mrf.mxu0
    %v3590 = vadd.f32 0.0, %v3589
    %3591 = vmatmul.bf16.gmra.mxu0 %v2517
    %v3592 = vpop.f32.mrf.mxu0
    %v3593 = vadd.f32 0.0, %v3592
    %v3594 = vpop.f32.mrf.mxu0
    %v3595 = vadd.f32 0.0, %v3594
    %3596 = vmatmul.bf16.gmra.mxu0 %v2520
    %v3597 = vpop.f32.mrf.mxu0
    %v3598 = vadd.f32 0.0, %v3597
    %v3599 = vpop.f32.mrf.mxu0
    %v3600 = vadd.f32 0.0, %v3599
    %3601 = vmatmul.bf16.gmra.mxu0 %v2523
    %v3602 = vpop.f32.mrf.mxu0
    %v3603 = vadd.f32 0.0, %v3602
    %v3604 = vpop.f32.mrf.mxu0
    %v3605 = vadd.f32 0.0, %v3604
    %3606 = vmatmul.bf16.gmra.mxu0 %v2526
    %v3607 = vpop.f32.mrf.mxu0
    %v3608 = vadd.f32 0.0, %v3607
    %v3609 = vpop.f32.mrf.mxu0
    %v3610 = vadd.f32 0.0, %v3609
    %3611 = vmatmul.bf16.gmra.mxu0 %v2529
    %v3612 = vpop.f32.mrf.mxu0
    %v3613 = vadd.f32 0.0, %v3612
    %v3614 = vpop.f32.mrf.mxu0
    %v3615 = vadd.f32 0.0, %v3614
    %3616 = vmatmul.bf16.gmra.mxu0 %v2532
    %v3617 = vpop.f32.mrf.mxu0
    %v3618 = vadd.f32 0.0, %v3617
    %v3619 = vpop.f32.mrf.mxu0
    %v3620 = vadd.f32 0.0, %v3619
    %3621 = vmatmul.bf16.gmra.mxu0 %v2535
    %v3622 = vpop.f32.mrf.mxu0
    %v3623 = vadd.f32 0.0, %v3622
    %v3624 = vpop.f32.mrf.mxu0
    %v3625 = vadd.f32 0.0, %v3624
    %3626 = vmatmul.bf16.gmra.mxu0 %v2538
    %v3627 = vpop.f32.mrf.mxu0
    %v3628 = vadd.f32 0.0, %v3627
    %v3629 = vpop.f32.mrf.mxu0
    %v3630 = vadd.f32 0.0, %v3629
    %3631 = vmatmul.bf16.gmra.mxu0 %v2541
    %v3632 = vpop.f32.mrf.mxu0
    %v3633 = vadd.f32 0.0, %v3632
    %v3634 = vpop.f32.mrf.mxu0
    %v3635 = vadd.f32 0.0, %v3634
    %3636 = vmatmul.bf16.gmra.mxu0 %v2544
    %v3637 = vpop.f32.mrf.mxu0
    %v3638 = vadd.f32 0.0, %v3637
    %v3639 = vpop.f32.mrf.mxu0
    %v3640 = vadd.f32 0.0, %v3639
    %3641 = vmatmul.bf16.gmra.mxu0 %v2547
    %v3642 = vpop.f32.mrf.mxu0
    %v3643 = vadd.f32 0.0, %v3642
    %v3644 = vpop.f32.mrf.mxu0
    %v3645 = vadd.f32 0.0, %v3644
    %3646 = vmatmul.bf16.gmra.mxu0 %v2550
    %v3647 = vpop.f32.mrf.mxu0
    %v3648 = vadd.f32 0.0, %v3647
    %v3649 = vpop.f32.mrf.mxu0
    %v3650 = vadd.f32 0.0, %v3649
    %3651 = vmatmul.bf16.gmra.mxu0 %v2553
    %v3652 = vpop.f32.mrf.mxu0
    %v3653 = vadd.f32 0.0, %v3652
    %v3654 = vpop.f32.mrf.mxu0
    %v3655 = vadd.f32 0.0, %v3654
    %3656 = vmatmul.bf16.gmra.mxu0 %v2556
    %v3657 = vpop.f32.mrf.mxu0
    %v3658 = vadd.f32 0.0, %v3657
    %v3659 = vpop.f32.mrf.mxu0
    %v3660 = vadd.f32 0.0, %v3659
    %3661 = vmatmul.bf16.gmra.mxu0 %v2559
    %v3662 = vpop.f32.mrf.mxu0
    %v3663 = vadd.f32 0.0, %v3662
    %v3664 = vpop.f32.mrf.mxu0
    %v3665 = vadd.f32 0.0, %v3664
    %3666 = vmatmul.bf16.gmra.mxu0 %v2562
    %v3667 = vpop.f32.mrf.mxu0
    %v3668 = vadd.f32 0.0, %v3667
    %v3669 = vpop.f32.mrf.mxu0
    %v3670 = vadd.f32 0.0, %v3669
    %3671 = vmatmul.bf16.gmra.mxu0 %v2565
    %v3672 = vpop.f32.mrf.mxu0
    %v3673 = vadd.f32 0.0, %v3672
    %v3674 = vpop.f32.mrf.mxu0
    %v3675 = vadd.f32 0.0, %v3674
    %3676 = vmatmul.bf16.gmra.mxu0 %v2568
    %v3677 = vpop.f32.mrf.mxu0
    %v3678 = vadd.f32 0.0, %v3677
    %v3679 = vpop.f32.mrf.mxu0
    %v3680 = vadd.f32 0.0, %v3679
    %3681 = vmatmul.bf16.gmra.mxu0 %v2571
    %v3682 = vpop.f32.mrf.mxu0
    %v3683 = vadd.f32 0.0, %v3682
    %v3684 = vpop.f32.mrf.mxu0
    %v3685 = vadd.f32 0.0, %v3684
    %3686 = vmatmul.bf16.gmra.mxu0 %v2574
    %v3687 = vpop.f32.mrf.mxu0
    %v3688 = vadd.f32 0.0, %v3687
    %v3689 = vpop.f32.mrf.mxu0
    %v3690 = vadd.f32 0.0, %v3689
    %3691 = vmatmul.bf16.gmra.mxu0 %v2577
    %v3692 = vpop.f32.mrf.mxu0
    %v3693 = vadd.f32 0.0, %v3692
    %v3694 = vpop.f32.mrf.mxu0
    %v3695 = vadd.f32 0.0, %v3694
    %3696 = vmatmul.bf16.gmra.mxu0 %v2580
    %v3697 = vpop.f32.mrf.mxu0
    %v3698 = vadd.f32 0.0, %v3697
    %v3699 = vpop.f32.mrf.mxu0
    %v3700 = vadd.f32 0.0, %v3699
    %3701 = vmatmul.bf16.gmra.mxu0 %v2583
    %v3702 = vpop.f32.mrf.mxu0
    %v3703 = vadd.f32 0.0, %v3702
    %v3704 = vpop.f32.mrf.mxu0
    %v3705 = vadd.f32 0.0, %v3704
    %3706 = vmatmul.bf16.gmra.mxu0 %v2586
    %v3707 = vpop.f32.mrf.mxu0
    %v3708 = vadd.f32 0.0, %v3707
    %v3709 = vpop.f32.mrf.mxu0
    %v3710 = vadd.f32 0.0, %v3709
    %3711 = vmatmul.bf16.gmra.mxu0 %v2589
    %v3712 = vpop.f32.mrf.mxu0
    %v3713 = vadd.f32 0.0, %v3712
    %v3714 = vpop.f32.mrf.mxu0
    %v3715 = vadd.f32 0.0, %v3714
    %3716 = vmatmul.bf16.gmra.mxu0 %v2592
    %v3717 = vpop.f32.mrf.mxu0
    %v3718 = vadd.f32 0.0, %v3717
    %v3719 = vpop.f32.mrf.mxu0
    %v3720 = vadd.f32 0.0, %v3719
    %3721 = vmatmul.bf16.gmra.mxu0 %v2595
    %v3722 = vpop.f32.mrf.mxu0
    %v3723 = vadd.f32 0.0, %v3722
    %v3724 = vpop.f32.mrf.mxu0
    %v3725 = vadd.f32 0.0, %v3724
    %3726 = vmatmul.bf16.gmra.mxu0 %v2598
    %v3727 = vpop.f32.mrf.mxu0
    %v3728 = vadd.f32 0.0, %v3727
    %v3729 = vpop.f32.mrf.mxu0
    %v3730 = vadd.f32 0.0, %v3729
    %3731 = vmatmul.bf16.gmra.mxu0 %v2601
    %v3732 = vpop.f32.mrf.mxu0
    %v3733 = vadd.f32 0.0, %v3732
    %v3734 = vpop.f32.mrf.mxu0
    %v3735 = vadd.f32 0.0, %v3734
    %3736 = vmatmul.bf16.gmra.mxu0 %v2604
    %v3737 = vpop.f32.mrf.mxu0
    %v3738 = vadd.f32 0.0, %v3737
    %v3739 = vpop.f32.mrf.mxu0
    %v3740 = vadd.f32 0.0, %v3739
    %3741 = vmatmul.bf16.gmra.mxu0 %v2607
    %v3742 = vpop.f32.mrf.mxu0
    %v3743 = vadd.f32 0.0, %v3742
    %v3744 = vpop.f32.mrf.mxu0
    %v3745 = vadd.f32 0.0, %v3744
    %3746 = vmatmul.bf16.gmra.mxu0 %v2610
    %v3747 = vpop.f32.mrf.mxu0
    %v3748 = vadd.f32 0.0, %v3747
    %v3749 = vpop.f32.mrf.mxu0
    %v3750 = vadd.f32 0.0, %v3749
    %3751 = vmatmul.bf16.gmra.mxu0 %v2613
    %v3752 = vpop.f32.mrf.mxu0
    %v3753 = vadd.f32 0.0, %v3752
    %v3754 = vpop.f32.mrf.mxu0
    %v3755 = vadd.f32 0.0, %v3754
    %3756 = vmatmul.bf16.gmra.mxu0 %v2616
    %v3757 = vpop.f32.mrf.mxu0
    %v3758 = vadd.f32 0.0, %v3757
    %v3759 = vpop.f32.mrf.mxu0
    %v3760 = vadd.f32 0.0, %v3759
    %3761 = vmatmul.bf16.gmra.mxu0 %v2619
    %v3762 = vpop.f32.mrf.mxu0
    %v3763 = vadd.f32 0.0, %v3762
    %v3764 = vpop.f32.mrf.mxu0
    %v3765 = vadd.f32 0.0, %v3764
    %3766 = vmatmul.bf16.gmra.mxu0 %v2622
    %v3767 = vpop.f32.mrf.mxu0
    %v3768 = vadd.f32 0.0, %v3767
    %v3769 = vpop.f32.mrf.mxu0
    %v3770 = vadd.f32 0.0, %v3769
    %3771 = vmatmul.bf16.gmra.mxu0 %v2625
    %v3772 = vpop.f32.mrf.mxu0
    %v3773 = vadd.f32 0.0, %v3772
    %v3774 = vpop.f32.mrf.mxu0
    %v3775 = vadd.f32 0.0, %v3774
    %3776 = vmatmul.bf16.gmra.mxu0 %v2628
    %v3777 = vpop.f32.mrf.mxu0
    %v3778 = vadd.f32 0.0, %v3777
    %v3779 = vpop.f32.mrf.mxu0
    %v3780 = vadd.f32 0.0, %v3779
    %3781 = vmatmul.bf16.gmra.mxu0 %v2631
    %v3782 = vpop.f32.mrf.mxu0
    %v3783 = vadd.f32 0.0, %v3782
    %v3784 = vpop.f32.mrf.mxu0
    %v3785 = vadd.f32 0.0, %v3784
    %3786 = vmatmul.bf16.gmra.mxu0 %v2634
    %v3787 = vpop.f32.mrf.mxu0
    %v3788 = vadd.f32 0.0, %v3787
    %v3789 = vpop.f32.mrf.mxu0
    %v3790 = vadd.f32 0.0, %v3789
    %3791 = vmatmul.bf16.gmra.mxu0 %v2637
    %v3792 = vpop.f32.mrf.mxu0
    %v3793 = vadd.f32 0.0, %v3792
    %v3794 = vpop.f32.mrf.mxu0
    %v3795 = vadd.f32 0.0, %v3794
    %3796 = vmatmul.bf16.gmra.mxu0 %v2640
    %v3797 = vpop.f32.mrf.mxu0
    %v3798 = vadd.f32 0.0, %v3797
    %v3799 = vpop.f32.mrf.mxu0
    %v3800 = vadd.f32 0.0, %v3799
    %3801 = vmatmul.bf16.gmra.mxu0 %v2643
    %v3802 = vpop.f32.mrf.mxu0
    %v3803 = vadd.f32 0.0, %v3802
    %v3804 = vpop.f32.mrf.mxu0
    %v3805 = vadd.f32 0.0, %v3804
    %3806 = vdwg.mxu0
    %3807 = vmatpush.bf16.msra.mxu0 %v189
    %3808 = vmatpush.bf16.msra.mxu0 %v188
    %3809 = vmatpush.bf16.msra.mxu0 %v187
    %3810 = vmatpush.bf16.msra.mxu0 %v186
    %3811 = vmatpush.bf16.msra.mxu0 %v185
    %3812 = vmatpush.bf16.msra.mxu0 %v184
    %3813 = vmatpush.bf16.msra.mxu0 %v183
    %3814 = vmatpush.bf16.msra.mxu0 %v182
    %3815 = vmatmul.bf16.gmra.mxu0 %v2215
    %v3816 = vpop.f32.mrf.mxu0
    %v3817 = vadd.f32 %v3088, %v3816
    %v3818 = vpop.f32.mrf.mxu0
    %v3819 = vadd.f32 %v3090, %v3818
    %3820 = vmatmul.bf16.gmra.mxu0 %v2218
    %v3821 = vpop.f32.mrf.mxu0
    %v3822 = vadd.f32 %v3093, %v3821
    %v3823 = vpop.f32.mrf.mxu0
    %v3824 = vadd.f32 %v3095, %v3823
    %3825 = vmatmul.bf16.gmra.mxu0 %v2221
    %v3826 = vpop.f32.mrf.mxu0
    %v3827 = vadd.f32 %v3098, %v3826
    %v3828 = vpop.f32.mrf.mxu0
    %v3829 = vadd.f32 %v3100, %v3828
    %3830 = vmatmul.bf16.gmra.mxu0 %v2224
    %v3831 = vpop.f32.mrf.mxu0
    %v3832 = vadd.f32 %v3103, %v3831
    %v3833 = vpop.f32.mrf.mxu0
    %v3834 = vadd.f32 %v3105, %v3833
    %3835 = vmatmul.bf16.gmra.mxu0 %v2227
    %v3836 = vpop.f32.mrf.mxu0
    %v3837 = vadd.f32 %v3108, %v3836
    %v3838 = vpop.f32.mrf.mxu0
    %v3839 = vadd.f32 %v3110, %v3838
    %3840 = vmatmul.bf16.gmra.mxu0 %v2230
    %v3841 = vpop.f32.mrf.mxu0
    %v3842 = vadd.f32 %v3113, %v3841
    %v3843 = vpop.f32.mrf.mxu0
    %v3844 = vadd.f32 %v3115, %v3843
    %3845 = vmatmul.bf16.gmra.mxu0 %v2233
    %v3846 = vpop.f32.mrf.mxu0
    %v3847 = vadd.f32 %v3118, %v3846
    %v3848 = vpop.f32.mrf.mxu0
    %v3849 = vadd.f32 %v3120, %v3848
    %3850 = vmatmul.bf16.gmra.mxu0 %v2236
    %v3851 = vpop.f32.mrf.mxu0
    %v3852 = vadd.f32 %v3123, %v3851
    %v3853 = vpop.f32.mrf.mxu0
    %v3854 = vadd.f32 %v3125, %v3853
    %3855 = vmatmul.bf16.gmra.mxu0 %v2239
    %v3856 = vpop.f32.mrf.mxu0
    %v3857 = vadd.f32 %v3128, %v3856
    %v3858 = vpop.f32.mrf.mxu0
    %v3859 = vadd.f32 %v3130, %v3858
    %3860 = vmatmul.bf16.gmra.mxu0 %v2242
    %v3861 = vpop.f32.mrf.mxu0
    %v3862 = vadd.f32 %v3133, %v3861
    %v3863 = vpop.f32.mrf.mxu0
    %v3864 = vadd.f32 %v3135, %v3863
    %3865 = vmatmul.bf16.gmra.mxu0 %v2245
    %v3866 = vpop.f32.mrf.mxu0
    %v3867 = vadd.f32 %v3138, %v3866
    %v3868 = vpop.f32.mrf.mxu0
    %v3869 = vadd.f32 %v3140, %v3868
    %3870 = vmatmul.bf16.gmra.mxu0 %v2248
    %v3871 = vpop.f32.mrf.mxu0
    %v3872 = vadd.f32 %v3143, %v3871
    %v3873 = vpop.f32.mrf.mxu0
    %v3874 = vadd.f32 %v3145, %v3873
    %3875 = vmatmul.bf16.gmra.mxu0 %v2251
    %v3876 = vpop.f32.mrf.mxu0
    %v3877 = vadd.f32 %v3148, %v3876
    %v3878 = vpop.f32.mrf.mxu0
    %v3879 = vadd.f32 %v3150, %v3878
    %3880 = vmatmul.bf16.gmra.mxu0 %v2254
    %v3881 = vpop.f32.mrf.mxu0
    %v3882 = vadd.f32 %v3153, %v3881
    %v3883 = vpop.f32.mrf.mxu0
    %v3884 = vadd.f32 %v3155, %v3883
    %3885 = vmatmul.bf16.gmra.mxu0 %v2257
    %v3886 = vpop.f32.mrf.mxu0
    %v3887 = vadd.f32 %v3158, %v3886
    %v3888 = vpop.f32.mrf.mxu0
    %v3889 = vadd.f32 %v3160, %v3888
    %3890 = vmatmul.bf16.gmra.mxu0 %v2260
    %v3891 = vpop.f32.mrf.mxu0
    %v3892 = vadd.f32 %v3163, %v3891
    %v3893 = vpop.f32.mrf.mxu0
    %v3894 = vadd.f32 %v3165, %v3893
    %3895 = vmatmul.bf16.gmra.mxu0 %v2263
    %v3896 = vpop.f32.mrf.mxu0
    %v3897 = vadd.f32 %v3168, %v3896
    %v3898 = vpop.f32.mrf.mxu0
    %v3899 = vadd.f32 %v3170, %v3898
    %3900 = vmatmul.bf16.gmra.mxu0 %v2266
    %v3901 = vpop.f32.mrf.mxu0
    %v3902 = vadd.f32 %v3173, %v3901
    %v3903 = vpop.f32.mrf.mxu0
    %v3904 = vadd.f32 %v3175, %v3903
    %3905 = vmatmul.bf16.gmra.mxu0 %v2269
    %v3906 = vpop.f32.mrf.mxu0
    %v3907 = vadd.f32 %v3178, %v3906
    %v3908 = vpop.f32.mrf.mxu0
    %v3909 = vadd.f32 %v3180, %v3908
    %3910 = vmatmul.bf16.gmra.mxu0 %v2272
    %v3911 = vpop.f32.mrf.mxu0
    %v3912 = vadd.f32 %v3183, %v3911
    %v3913 = vpop.f32.mrf.mxu0
    %v3914 = vadd.f32 %v3185, %v3913
    %3915 = vmatmul.bf16.gmra.mxu0 %v2275
    %v3916 = vpop.f32.mrf.mxu0
    %v3917 = vadd.f32 %v3188, %v3916
    %v3918 = vpop.f32.mrf.mxu0
    %v3919 = vadd.f32 %v3190, %v3918
    %3920 = vmatmul.bf16.gmra.mxu0 %v2278
    %v3921 = vpop.f32.mrf.mxu0
    %v3922 = vadd.f32 %v3193, %v3921
    %v3923 = vpop.f32.mrf.mxu0
    %v3924 = vadd.f32 %v3195, %v3923
    %3925 = vmatmul.bf16.gmra.mxu0 %v2281
    %v3926 = vpop.f32.mrf.mxu0
    %v3927 = vadd.f32 %v3198, %v3926
    %v3928 = vpop.f32.mrf.mxu0
    %v3929 = vadd.f32 %v3200, %v3928
    %3930 = vmatmul.bf16.gmra.mxu0 %v2284
    %v3931 = vpop.f32.mrf.mxu0
    %v3932 = vadd.f32 %v3203, %v3931
    %v3933 = vpop.f32.mrf.mxu0
    %v3934 = vadd.f32 %v3205, %v3933
    %3935 = vmatmul.bf16.gmra.mxu0 %v2287
    %v3936 = vpop.f32.mrf.mxu0
    %v3937 = vadd.f32 %v3208, %v3936
    %v3938 = vpop.f32.mrf.mxu0
    %v3939 = vadd.f32 %v3210, %v3938
    %3940 = vmatmul.bf16.gmra.mxu0 %v2290
    %v3941 = vpop.f32.mrf.mxu0
    %v3942 = vadd.f32 %v3213, %v3941
    %v3943 = vpop.f32.mrf.mxu0
    %v3944 = vadd.f32 %v3215, %v3943
    %3945 = vmatmul.bf16.gmra.mxu0 %v2293
    %v3946 = vpop.f32.mrf.mxu0
    %v3947 = vadd.f32 %v3218, %v3946
    %v3948 = vpop.f32.mrf.mxu0
    %v3949 = vadd.f32 %v3220, %v3948
    %3950 = vmatmul.bf16.gmra.mxu0 %v2296
    %v3951 = vpop.f32.mrf.mxu0
    %v3952 = vadd.f32 %v3223, %v3951
    %v3953 = vpop.f32.mrf.mxu0
    %v3954 = vadd.f32 %v3225, %v3953
    %3955 = vmatmul.bf16.gmra.mxu0 %v2299
    %v3956 = vpop.f32.mrf.mxu0
    %v3957 = vadd.f32 %v3228, %v3956
    %v3958 = vpop.f32.mrf.mxu0
    %v3959 = vadd.f32 %v3230, %v3958
    %3960 = vmatmul.bf16.gmra.mxu0 %v2302
    %v3961 = vpop.f32.mrf.mxu0
    %v3962 = vadd.f32 %v3233, %v3961
    %v3963 = vpop.f32.mrf.mxu0
    %v3964 = vadd.f32 %v3235, %v3963
    %3965 = vmatmul.bf16.gmra.mxu0 %v2305
    %v3966 = vpop.f32.mrf.mxu0
    %v3967 = vadd.f32 %v3238, %v3966
    %v3968 = vpop.f32.mrf.mxu0
    %v3969 = vadd.f32 %v3240, %v3968
    %3970 = vmatmul.bf16.gmra.mxu0 %v2308
    %v3971 = vpop.f32.mrf.mxu0
    %v3972 = vadd.f32 %v3243, %v3971
    %v3973 = vpop.f32.mrf.mxu0
    %v3974 = vadd.f32 %v3245, %v3973
    %3975 = vmatmul.bf16.gmra.mxu0 %v2311
    %v3976 = vpop.f32.mrf.mxu0
    %v3977 = vadd.f32 %v3248, %v3976
    %v3978 = vpop.f32.mrf.mxu0
    %v3979 = vadd.f32 %v3250, %v3978
    %3980 = vmatmul.bf16.gmra.mxu0 %v2314
    %v3981 = vpop.f32.mrf.mxu0
    %v3982 = vadd.f32 %v3253, %v3981
    %v3983 = vpop.f32.mrf.mxu0
    %v3984 = vadd.f32 %v3255, %v3983
    %3985 = vmatmul.bf16.gmra.mxu0 %v2317
    %v3986 = vpop.f32.mrf.mxu0
    %v3987 = vadd.f32 %v3258, %v3986
    %v3988 = vpop.f32.mrf.mxu0
    %v3989 = vadd.f32 %v3260, %v3988
    %3990 = vmatmul.bf16.gmra.mxu0 %v2320
    %v3991 = vpop.f32.mrf.mxu0
    %v3992 = vadd.f32 %v3263, %v3991
    %v3993 = vpop.f32.mrf.mxu0
    %v3994 = vadd.f32 %v3265, %v3993
    %3995 = vmatmul.bf16.gmra.mxu0 %v2323
    %v3996 = vpop.f32.mrf.mxu0
    %v3997 = vadd.f32 %v3268, %v3996
    %v3998 = vpop.f32.mrf.mxu0
    %v3999 = vadd.f32 %v3270, %v3998
    %4000 = vmatmul.bf16.gmra.mxu0 %v2326
    %v4001 = vpop.f32.mrf.mxu0
    %v4002 = vadd.f32 %v3273, %v4001
    %v4003 = vpop.f32.mrf.mxu0
    %v4004 = vadd.f32 %v3275, %v4003
    %4005 = vmatmul.bf16.gmra.mxu0 %v2329
    %v4006 = vpop.f32.mrf.mxu0
    %v4007 = vadd.f32 %v3278, %v4006
    %v4008 = vpop.f32.mrf.mxu0
    %v4009 = vadd.f32 %v3280, %v4008
    %4010 = vmatmul.bf16.gmra.mxu0 %v2332
    %v4011 = vpop.f32.mrf.mxu0
    %v4012 = vadd.f32 %v3283, %v4011
    %v4013 = vpop.f32.mrf.mxu0
    %v4014 = vadd.f32 %v3285, %v4013
    %4015 = vmatmul.bf16.gmra.mxu0 %v2335
    %v4016 = vpop.f32.mrf.mxu0
    %v4017 = vadd.f32 %v3288, %v4016
    %v4018 = vpop.f32.mrf.mxu0
    %v4019 = vadd.f32 %v3290, %v4018
    %4020 = vmatmul.bf16.gmra.mxu0 %v2338
    %v4021 = vpop.f32.mrf.mxu0
    %v4022 = vadd.f32 %v3293, %v4021
    %v4023 = vpop.f32.mrf.mxu0
    %v4024 = vadd.f32 %v3295, %v4023
    %4025 = vmatmul.bf16.gmra.mxu0 %v2341
    %v4026 = vpop.f32.mrf.mxu0
    %v4027 = vadd.f32 %v3298, %v4026
    %v4028 = vpop.f32.mrf.mxu0
    %v4029 = vadd.f32 %v3300, %v4028
    %4030 = vmatmul.bf16.gmra.mxu0 %v2344
    %v4031 = vpop.f32.mrf.mxu0
    %v4032 = vadd.f32 %v3303, %v4031
    %v4033 = vpop.f32.mrf.mxu0
    %v4034 = vadd.f32 %v3305, %v4033
    %4035 = vmatmul.bf16.gmra.mxu0 %v2347
    %v4036 = vpop.f32.mrf.mxu0
    %v4037 = vadd.f32 %v3308, %v4036
    %v4038 = vpop.f32.mrf.mxu0
    %v4039 = vadd.f32 %v3310, %v4038
    %4040 = vmatmul.bf16.gmra.mxu0 %v2350
    %v4041 = vpop.f32.mrf.mxu0
    %v4042 = vadd.f32 %v3313, %v4041
    %v4043 = vpop.f32.mrf.mxu0
    %v4044 = vadd.f32 %v3315, %v4043
    %4045 = vmatmul.bf16.gmra.mxu0 %v2353
    %v4046 = vpop.f32.mrf.mxu0
    %v4047 = vadd.f32 %v3318, %v4046
    %v4048 = vpop.f32.mrf.mxu0
    %v4049 = vadd.f32 %v3320, %v4048
    %4050 = vmatmul.bf16.gmra.mxu0 %v2356
    %v4051 = vpop.f32.mrf.mxu0
    %v4052 = vadd.f32 %v3323, %v4051
    %v4053 = vpop.f32.mrf.mxu0
    %v4054 = vadd.f32 %v3325, %v4053
    %4055 = vmatmul.bf16.gmra.mxu0 %v2359
    %v4056 = vpop.f32.mrf.mxu0
    %v4057 = vadd.f32 %v3328, %v4056
    %v4058 = vpop.f32.mrf.mxu0
    %v4059 = vadd.f32 %v3330, %v4058
    %4060 = vmatmul.bf16.gmra.mxu0 %v2362
    %v4061 = vpop.f32.mrf.mxu0
    %v4062 = vadd.f32 %v3333, %v4061
    %v4063 = vpop.f32.mrf.mxu0
    %v4064 = vadd.f32 %v3335, %v4063
    %4065 = vmatmul.bf16.gmra.mxu0 %v2365
    %v4066 = vpop.f32.mrf.mxu0
    %v4067 = vadd.f32 %v3338, %v4066
    %v4068 = vpop.f32.mrf.mxu0
    %v4069 = vadd.f32 %v3340, %v4068
    %4070 = vmatmul.bf16.gmra.mxu0 %v2368
    %v4071 = vpop.f32.mrf.mxu0
    %v4072 = vadd.f32 %v3343, %v4071
    %v4073 = vpop.f32.mrf.mxu0
    %v4074 = vadd.f32 %v3345, %v4073
    %4075 = vmatmul.bf16.gmra.mxu0 %v2371
    %v4076 = vpop.f32.mrf.mxu0
    %v4077 = vadd.f32 %v3348, %v4076
    %v4078 = vpop.f32.mrf.mxu0
    %v4079 = vadd.f32 %v3350, %v4078
    %4080 = vmatmul.bf16.gmra.mxu0 %v2374
    %v4081 = vpop.f32.mrf.mxu0
    %v4082 = vadd.f32 %v3353, %v4081
    %v4083 = vpop.f32.mrf.mxu0
    %v4084 = vadd.f32 %v3355, %v4083
    %4085 = vmatmul.bf16.gmra.mxu0 %v2377
    %v4086 = vpop.f32.mrf.mxu0
    %v4087 = vadd.f32 %v3358, %v4086
    %v4088 = vpop.f32.mrf.mxu0
    %v4089 = vadd.f32 %v3360, %v4088
    %4090 = vmatmul.bf16.gmra.mxu0 %v2380
    %v4091 = vpop.f32.mrf.mxu0
    %v4092 = vadd.f32 %v3363, %v4091
    %v4093 = vpop.f32.mrf.mxu0
    %v4094 = vadd.f32 %v3365, %v4093
    %4095 = vmatmul.bf16.gmra.mxu0 %v2383
    %v4096 = vpop.f32.mrf.mxu0
    %v4097 = vadd.f32 %v3368, %v4096
    %v4098 = vpop.f32.mrf.mxu0
    %v4099 = vadd.f32 %v3370, %v4098
    %4100 = vmatmul.bf16.gmra.mxu0 %v2386
    %v4101 = vpop.f32.mrf.mxu0
    %v4102 = vadd.f32 %v3373, %v4101
    %v4103 = vpop.f32.mrf.mxu0
    %v4104 = vadd.f32 %v3375, %v4103
    %4105 = vmatmul.bf16.gmra.mxu0 %v2389
    %v4106 = vpop.f32.mrf.mxu0
    %v4107 = vadd.f32 %v3378, %v4106
    %v4108 = vpop.f32.mrf.mxu0
    %v4109 = vadd.f32 %v3380, %v4108
    %4110 = vmatmul.bf16.gmra.mxu0 %v2392
    %v4111 = vpop.f32.mrf.mxu0
    %v4112 = vadd.f32 %v3383, %v4111
    %v4113 = vpop.f32.mrf.mxu0
    %v4114 = vadd.f32 %v3385, %v4113
    %4115 = vmatmul.bf16.gmra.mxu0 %v2395
    %v4116 = vpop.f32.mrf.mxu0
    %v4117 = vadd.f32 %v3388, %v4116
    %v4118 = vpop.f32.mrf.mxu0
    %v4119 = vadd.f32 %v3390, %v4118
    %4120 = vmatmul.bf16.gmra.mxu0 %v2398
    %v4121 = vpop.f32.mrf.mxu0
    %v4122 = vadd.f32 %v3393, %v4121
    %v4123 = vpop.f32.mrf.mxu0
    %v4124 = vadd.f32 %v3395, %v4123
    %4125 = vmatmul.bf16.gmra.mxu0 %v2401
    %v4126 = vpop.f32.mrf.mxu0
    %v4127 = vadd.f32 %v3398, %v4126
    %v4128 = vpop.f32.mrf.mxu0
    %v4129 = vadd.f32 %v3400, %v4128
    %4130 = vmatmul.bf16.gmra.mxu0 %v2404
    %v4131 = vpop.f32.mrf.mxu0
    %v4132 = vadd.f32 %v3403, %v4131
    %v4133 = vpop.f32.mrf.mxu0
    %v4134 = vadd.f32 %v3405, %v4133
    %4135 = vmatmul.bf16.gmra.mxu0 %v2407
    %v4136 = vpop.f32.mrf.mxu0
    %v4137 = vadd.f32 %v3408, %v4136
    %v4138 = vpop.f32.mrf.mxu0
    %v4139 = vadd.f32 %v3410, %v4138
    %4140 = vmatmul.bf16.gmra.mxu0 %v2410
    %v4141 = vpop.f32.mrf.mxu0
    %v4142 = vadd.f32 %v3413, %v4141
    %v4143 = vpop.f32.mrf.mxu0
    %v4144 = vadd.f32 %v3415, %v4143
    %4145 = vmatmul.bf16.gmra.mxu0 %v2413
    %v4146 = vpop.f32.mrf.mxu0
    %v4147 = vadd.f32 %v3418, %v4146
    %v4148 = vpop.f32.mrf.mxu0
    %v4149 = vadd.f32 %v3420, %v4148
    %4150 = vmatmul.bf16.gmra.mxu0 %v2416
    %v4151 = vpop.f32.mrf.mxu0
    %v4152 = vadd.f32 %v3423, %v4151
    %v4153 = vpop.f32.mrf.mxu0
    %v4154 = vadd.f32 %v3425, %v4153
    %4155 = vmatmul.bf16.gmra.mxu0 %v2419
    %v4156 = vpop.f32.mrf.mxu0
    %v4157 = vadd.f32 %v3428, %v4156
    %v4158 = vpop.f32.mrf.mxu0
    %v4159 = vadd.f32 %v3430, %v4158
    %4160 = vmatmul.bf16.gmra.mxu0 %v2422
    %v4161 = vpop.f32.mrf.mxu0
    %v4162 = vadd.f32 %v3433, %v4161
    %v4163 = vpop.f32.mrf.mxu0
    %v4164 = vadd.f32 %v3435, %v4163
    %4165 = vmatmul.bf16.gmra.mxu0 %v2425
    %v4166 = vpop.f32.mrf.mxu0
    %v4167 = vadd.f32 %v3438, %v4166
    %v4168 = vpop.f32.mrf.mxu0
    %v4169 = vadd.f32 %v3440, %v4168
    %4170 = vmatmul.bf16.gmra.mxu0 %v2428
    %v4171 = vpop.f32.mrf.mxu0
    %v4172 = vadd.f32 %v3443, %v4171
    %v4173 = vpop.f32.mrf.mxu0
    %v4174 = vadd.f32 %v3445, %v4173
    %4175 = vmatmul.bf16.gmra.mxu0 %v2431
    %v4176 = vpop.f32.mrf.mxu0
    %v4177 = vadd.f32 %v3448, %v4176
    %v4178 = vpop.f32.mrf.mxu0
    %v4179 = vadd.f32 %v3450, %v4178
    %4180 = vmatmul.bf16.gmra.mxu0 %v2434
    %v4181 = vpop.f32.mrf.mxu0
    %v4182 = vadd.f32 %v3453, %v4181
    %v4183 = vpop.f32.mrf.mxu0
    %v4184 = vadd.f32 %v3455, %v4183
    %4185 = vmatmul.bf16.gmra.mxu0 %v2437
    %v4186 = vpop.f32.mrf.mxu0
    %v4187 = vadd.f32 %v3458, %v4186
    %v4188 = vpop.f32.mrf.mxu0
    %v4189 = vadd.f32 %v3460, %v4188
    %4190 = vmatmul.bf16.gmra.mxu0 %v2440
    %v4191 = vpop.f32.mrf.mxu0
    %v4192 = vadd.f32 %v3463, %v4191
    %v4193 = vpop.f32.mrf.mxu0
    %v4194 = vadd.f32 %v3465, %v4193
    %4195 = vmatmul.bf16.gmra.mxu0 %v2443
    %v4196 = vpop.f32.mrf.mxu0
    %v4197 = vadd.f32 %v3468, %v4196
    %v4198 = vpop.f32.mrf.mxu0
    %v4199 = vadd.f32 %v3470, %v4198
    %4200 = vmatmul.bf16.gmra.mxu0 %v2446
    %v4201 = vpop.f32.mrf.mxu0
    %v4202 = vadd.f32 %v3473, %v4201
    %v4203 = vpop.f32.mrf.mxu0
    %v4204 = vadd.f32 %v3475, %v4203
    %4205 = vmatmul.bf16.gmra.mxu0 %v2449
    %v4206 = vpop.f32.mrf.mxu0
    %v4207 = vadd.f32 %v3478, %v4206
    %v4208 = vpop.f32.mrf.mxu0
    %v4209 = vadd.f32 %v3480, %v4208
    %4210 = vmatmul.bf16.gmra.mxu0 %v2452
    %v4211 = vpop.f32.mrf.mxu0
    %v4212 = vadd.f32 %v3483, %v4211
    %v4213 = vpop.f32.mrf.mxu0
    %v4214 = vadd.f32 %v3485, %v4213
    %4215 = vmatmul.bf16.gmra.mxu0 %v2455
    %v4216 = vpop.f32.mrf.mxu0
    %v4217 = vadd.f32 %v3488, %v4216
    %v4218 = vpop.f32.mrf.mxu0
    %v4219 = vadd.f32 %v3490, %v4218
    %4220 = vmatmul.bf16.gmra.mxu0 %v2458
    %v4221 = vpop.f32.mrf.mxu0
    %v4222 = vadd.f32 %v3493, %v4221
    %v4223 = vpop.f32.mrf.mxu0
    %v4224 = vadd.f32 %v3495, %v4223
    %4225 = vmatmul.bf16.gmra.mxu0 %v2461
    %v4226 = vpop.f32.mrf.mxu0
    %v4227 = vadd.f32 %v3498, %v4226
    %v4228 = vpop.f32.mrf.mxu0
    %v4229 = vadd.f32 %v3500, %v4228
    %4230 = vmatmul.bf16.gmra.mxu0 %v2464
    %v4231 = vpop.f32.mrf.mxu0
    %v4232 = vadd.f32 %v3503, %v4231
    %v4233 = vpop.f32.mrf.mxu0
    %v4234 = vadd.f32 %v3505, %v4233
    %4235 = vmatmul.bf16.gmra.mxu0 %v2467
    %v4236 = vpop.f32.mrf.mxu0
    %v4237 = vadd.f32 %v3508, %v4236
    %v4238 = vpop.f32.mrf.mxu0
    %v4239 = vadd.f32 %v3510, %v4238
    %4240 = vmatmul.bf16.gmra.mxu0 %v2470
    %v4241 = vpop.f32.mrf.mxu0
    %v4242 = vadd.f32 %v3513, %v4241
    %v4243 = vpop.f32.mrf.mxu0
    %v4244 = vadd.f32 %v3515, %v4243
    %4245 = vmatmul.bf16.gmra.mxu0 %v2473
    %v4246 = vpop.f32.mrf.mxu0
    %v4247 = vadd.f32 %v3518, %v4246
    %v4248 = vpop.f32.mrf.mxu0
    %v4249 = vadd.f32 %v3520, %v4248
    %4250 = vmatmul.bf16.gmra.mxu0 %v2476
    %v4251 = vpop.f32.mrf.mxu0
    %v4252 = vadd.f32 %v3523, %v4251
    %v4253 = vpop.f32.mrf.mxu0
    %v4254 = vadd.f32 %v3525, %v4253
    %4255 = vmatmul.bf16.gmra.mxu0 %v2479
    %v4256 = vpop.f32.mrf.mxu0
    %v4257 = vadd.f32 %v3528, %v4256
    %v4258 = vpop.f32.mrf.mxu0
    %v4259 = vadd.f32 %v3530, %v4258
    %4260 = vmatmul.bf16.gmra.mxu0 %v2482
    %v4261 = vpop.f32.mrf.mxu0
    %v4262 = vadd.f32 %v3533, %v4261
    %v4263 = vpop.f32.mrf.mxu0
    %v4264 = vadd.f32 %v3535, %v4263
    %4265 = vmatmul.bf16.gmra.mxu0 %v2485
    %v4266 = vpop.f32.mrf.mxu0
    %v4267 = vadd.f32 %v3538, %v4266
    %v4268 = vpop.f32.mrf.mxu0
    %v4269 = vadd.f32 %v3540, %v4268
    %4270 = vmatmul.bf16.gmra.mxu0 %v2488
    %v4271 = vpop.f32.mrf.mxu0
    %v4272 = vadd.f32 %v3543, %v4271
    %v4273 = vpop.f32.mrf.mxu0
    %v4274 = vadd.f32 %v3545, %v4273
    %4275 = vmatmul.bf16.gmra.mxu0 %v2491
    %v4276 = vpop.f32.mrf.mxu0
    %v4277 = vadd.f32 %v3548, %v4276
    %v4278 = vpop.f32.mrf.mxu0
    %v4279 = vadd.f32 %v3550, %v4278
    %4280 = vmatmul.bf16.gmra.mxu0 %v2494
    %v4281 = vpop.f32.mrf.mxu0
    %v4282 = vadd.f32 %v3553, %v4281
    %v4283 = vpop.f32.mrf.mxu0
    %v4284 = vadd.f32 %v3555, %v4283
    %4285 = vmatmul.bf16.gmra.mxu0 %v2497
    %v4286 = vpop.f32.mrf.mxu0
    %v4287 = vadd.f32 %v3558, %v4286
    %v4288 = vpop.f32.mrf.mxu0
    %v4289 = vadd.f32 %v3560, %v4288
    %4290 = vmatmul.bf16.gmra.mxu0 %v2500
    %v4291 = vpop.f32.mrf.mxu0
    %v4292 = vadd.f32 %v3563, %v4291
    %v4293 = vpop.f32.mrf.mxu0
    %v4294 = vadd.f32 %v3565, %v4293
    %4295 = vmatmul.bf16.gmra.mxu0 %v2503
    %v4296 = vpop.f32.mrf.mxu0
    %v4297 = vadd.f32 %v3568, %v4296
    %v4298 = vpop.f32.mrf.mxu0
    %v4299 = vadd.f32 %v3570, %v4298
    %4300 = vmatmul.bf16.gmra.mxu0 %v2506
    %v4301 = vpop.f32.mrf.mxu0
    %v4302 = vadd.f32 %v3573, %v4301
    %v4303 = vpop.f32.mrf.mxu0
    %v4304 = vadd.f32 %v3575, %v4303
    %4305 = vmatmul.bf16.gmra.mxu0 %v2509
    %v4306 = vpop.f32.mrf.mxu0
    %v4307 = vadd.f32 %v3578, %v4306
    %v4308 = vpop.f32.mrf.mxu0
    %v4309 = vadd.f32 %v3580, %v4308
    %4310 = vmatmul.bf16.gmra.mxu0 %v2512
    %v4311 = vpop.f32.mrf.mxu0
    %v4312 = vadd.f32 %v3583, %v4311
    %v4313 = vpop.f32.mrf.mxu0
    %v4314 = vadd.f32 %v3585, %v4313
    %4315 = vmatmul.bf16.gmra.mxu0 %v2515
    %v4316 = vpop.f32.mrf.mxu0
    %v4317 = vadd.f32 %v3588, %v4316
    %v4318 = vpop.f32.mrf.mxu0
    %v4319 = vadd.f32 %v3590, %v4318
    %4320 = vmatmul.bf16.gmra.mxu0 %v2518
    %v4321 = vpop.f32.mrf.mxu0
    %v4322 = vadd.f32 %v3593, %v4321
    %v4323 = vpop.f32.mrf.mxu0
    %v4324 = vadd.f32 %v3595, %v4323
    %4325 = vmatmul.bf16.gmra.mxu0 %v2521
    %v4326 = vpop.f32.mrf.mxu0
    %v4327 = vadd.f32 %v3598, %v4326
    %v4328 = vpop.f32.mrf.mxu0
    %v4329 = vadd.f32 %v3600, %v4328
    %4330 = vmatmul.bf16.gmra.mxu0 %v2524
    %v4331 = vpop.f32.mrf.mxu0
    %v4332 = vadd.f32 %v3603, %v4331
    %v4333 = vpop.f32.mrf.mxu0
    %v4334 = vadd.f32 %v3605, %v4333
    %4335 = vmatmul.bf16.gmra.mxu0 %v2527
    %v4336 = vpop.f32.mrf.mxu0
    %v4337 = vadd.f32 %v3608, %v4336
    %v4338 = vpop.f32.mrf.mxu0
    %v4339 = vadd.f32 %v3610, %v4338
    %4340 = vmatmul.bf16.gmra.mxu0 %v2530
    %v4341 = vpop.f32.mrf.mxu0
    %v4342 = vadd.f32 %v3613, %v4341
    %v4343 = vpop.f32.mrf.mxu0
    %v4344 = vadd.f32 %v3615, %v4343
    %4345 = vmatmul.bf16.gmra.mxu0 %v2533
    %v4346 = vpop.f32.mrf.mxu0
    %v4347 = vadd.f32 %v3618, %v4346
    %v4348 = vpop.f32.mrf.mxu0
    %v4349 = vadd.f32 %v3620, %v4348
    %4350 = vmatmul.bf16.gmra.mxu0 %v2536
    %v4351 = vpop.f32.mrf.mxu0
    %v4352 = vadd.f32 %v3623, %v4351
    %v4353 = vpop.f32.mrf.mxu0
    %v4354 = vadd.f32 %v3625, %v4353
    %4355 = vmatmul.bf16.gmra.mxu0 %v2539
    %v4356 = vpop.f32.mrf.mxu0
    %v4357 = vadd.f32 %v3628, %v4356
    %v4358 = vpop.f32.mrf.mxu0
    %v4359 = vadd.f32 %v3630, %v4358
    %4360 = vmatmul.bf16.gmra.mxu0 %v2542
    %v4361 = vpop.f32.mrf.mxu0
    %v4362 = vadd.f32 %v3633, %v4361
    %v4363 = vpop.f32.mrf.mxu0
    %v4364 = vadd.f32 %v3635, %v4363
    %4365 = vmatmul.bf16.gmra.mxu0 %v2545
    %v4366 = vpop.f32.mrf.mxu0
    %v4367 = vadd.f32 %v3638, %v4366
    %v4368 = vpop.f32.mrf.mxu0
    %v4369 = vadd.f32 %v3640, %v4368
    %4370 = vmatmul.bf16.gmra.mxu0 %v2548
    %v4371 = vpop.f32.mrf.mxu0
    %v4372 = vadd.f32 %v3643, %v4371
    %v4373 = vpop.f32.mrf.mxu0
    %v4374 = vadd.f32 %v3645, %v4373
    %4375 = vmatmul.bf16.gmra.mxu0 %v2551
    %v4376 = vpop.f32.mrf.mxu0
    %v4377 = vadd.f32 %v3648, %v4376
    %v4378 = vpop.f32.mrf.mxu0
    %v4379 = vadd.f32 %v3650, %v4378
    %4380 = vmatmul.bf16.gmra.mxu0 %v2554
    %v4381 = vpop.f32.mrf.mxu0
    %v4382 = vadd.f32 %v3653, %v4381
    %v4383 = vpop.f32.mrf.mxu0
    %v4384 = vadd.f32 %v3655, %v4383
    %4385 = vmatmul.bf16.gmra.mxu0 %v2557
    %v4386 = vpop.f32.mrf.mxu0
    %v4387 = vadd.f32 %v3658, %v4386
    %v4388 = vpop.f32.mrf.mxu0
    %v4389 = vadd.f32 %v3660, %v4388
    %4390 = vmatmul.bf16.gmra.mxu0 %v2560
    %v4391 = vpop.f32.mrf.mxu0
    %v4392 = vadd.f32 %v3663, %v4391
    %v4393 = vpop.f32.mrf.mxu0
    %v4394 = vadd.f32 %v3665, %v4393
    %4395 = vmatmul.bf16.gmra.mxu0 %v2563
    %v4396 = vpop.f32.mrf.mxu0
    %v4397 = vadd.f32 %v3668, %v4396
    %v4398 = vpop.f32.mrf.mxu0
    %v4399 = vadd.f32 %v3670, %v4398
    %4400 = vmatmul.bf16.gmra.mxu0 %v2566
    %v4401 = vpop.f32.mrf.mxu0
    %v4402 = vadd.f32 %v3673, %v4401
    %v4403 = vpop.f32.mrf.mxu0
    %v4404 = vadd.f32 %v3675, %v4403
    %4405 = vmatmul.bf16.gmra.mxu0 %v2569
    %v4406 = vpop.f32.mrf.mxu0
    %v4407 = vadd.f32 %v3678, %v4406
    %v4408 = vpop.f32.mrf.mxu0
    %v4409 = vadd.f32 %v3680, %v4408
    %4410 = vmatmul.bf16.gmra.mxu0 %v2572
    %v4411 = vpop.f32.mrf.mxu0
    %v4412 = vadd.f32 %v3683, %v4411
    %v4413 = vpop.f32.mrf.mxu0
    %v4414 = vadd.f32 %v3685, %v4413
    %4415 = vmatmul.bf16.gmra.mxu0 %v2575
    %v4416 = vpop.f32.mrf.mxu0
    %v4417 = vadd.f32 %v3688, %v4416
    %v4418 = vpop.f32.mrf.mxu0
    %v4419 = vadd.f32 %v3690, %v4418
    %4420 = vmatmul.bf16.gmra.mxu0 %v2578
    %v4421 = vpop.f32.mrf.mxu0
    %v4422 = vadd.f32 %v3693, %v4421
    %v4423 = vpop.f32.mrf.mxu0
    %v4424 = vadd.f32 %v3695, %v4423
    %4425 = vmatmul.bf16.gmra.mxu0 %v2581
    %v4426 = vpop.f32.mrf.mxu0
    %v4427 = vadd.f32 %v3698, %v4426
    %v4428 = vpop.f32.mrf.mxu0
    %v4429 = vadd.f32 %v3700, %v4428
    %4430 = vmatmul.bf16.gmra.mxu0 %v2584
    %v4431 = vpop.f32.mrf.mxu0
    %v4432 = vadd.f32 %v3703, %v4431
    %v4433 = vpop.f32.mrf.mxu0
    %v4434 = vadd.f32 %v3705, %v4433
    %4435 = vmatmul.bf16.gmra.mxu0 %v2587
    %v4436 = vpop.f32.mrf.mxu0
    %v4437 = vadd.f32 %v3708, %v4436
    %v4438 = vpop.f32.mrf.mxu0
    %v4439 = vadd.f32 %v3710, %v4438
    %4440 = vmatmul.bf16.gmra.mxu0 %v2590
    %v4441 = vpop.f32.mrf.mxu0
    %v4442 = vadd.f32 %v3713, %v4441
    %v4443 = vpop.f32.mrf.mxu0
    %v4444 = vadd.f32 %v3715, %v4443
    %4445 = vmatmul.bf16.gmra.mxu0 %v2593
    %v4446 = vpop.f32.mrf.mxu0
    %v4447 = vadd.f32 %v3718, %v4446
    %v4448 = vpop.f32.mrf.mxu0
    %v4449 = vadd.f32 %v3720, %v4448
    %4450 = vmatmul.bf16.gmra.mxu0 %v2596
    %v4451 = vpop.f32.mrf.mxu0
    %v4452 = vadd.f32 %v3723, %v4451
    %v4453 = vpop.f32.mrf.mxu0
    %v4454 = vadd.f32 %v3725, %v4453
    %4455 = vmatmul.bf16.gmra.mxu0 %v2599
    %v4456 = vpop.f32.mrf.mxu0
    %v4457 = vadd.f32 %v3728, %v4456
    %v4458 = vpop.f32.mrf.mxu0
    %v4459 = vadd.f32 %v3730, %v4458
    %4460 = vmatmul.bf16.gmra.mxu0 %v2602
    %v4461 = vpop.f32.mrf.mxu0
    %v4462 = vadd.f32 %v3733, %v4461
    %v4463 = vpop.f32.mrf.mxu0
    %v4464 = vadd.f32 %v3735, %v4463
    %4465 = vmatmul.bf16.gmra.mxu0 %v2605
    %v4466 = vpop.f32.mrf.mxu0
    %v4467 = vadd.f32 %v3738, %v4466
    %v4468 = vpop.f32.mrf.mxu0
    %v4469 = vadd.f32 %v3740, %v4468
    %4470 = vmatmul.bf16.gmra.mxu0 %v2608
    %v4471 = vpop.f32.mrf.mxu0
    %v4472 = vadd.f32 %v3743, %v4471
    %v4473 = vpop.f32.mrf.mxu0
    %v4474 = vadd.f32 %v3745, %v4473
    %4475 = vmatmul.bf16.gmra.mxu0 %v2611
    %v4476 = vpop.f32.mrf.mxu0
    %v4477 = vadd.f32 %v3748, %v4476
    %v4478 = vpop.f32.mrf.mxu0
    %v4479 = vadd.f32 %v3750, %v4478
    %4480 = vmatmul.bf16.gmra.mxu0 %v2614
    %v4481 = vpop.f32.mrf.mxu0
    %v4482 = vadd.f32 %v3753, %v4481
    %v4483 = vpop.f32.mrf.mxu0
    %v4484 = vadd.f32 %v3755, %v4483
    %4485 = vmatmul.bf16.gmra.mxu0 %v2617
    %v4486 = vpop.f32.mrf.mxu0
    %v4487 = vadd.f32 %v3758, %v4486
    %v4488 = vpop.f32.mrf.mxu0
    %v4489 = vadd.f32 %v3760, %v4488
    %4490 = vmatmul.bf16.gmra.mxu0 %v2620
    %v4491 = vpop.f32.mrf.mxu0
    %v4492 = vadd.f32 %v3763, %v4491
    %v4493 = vpop.f32.mrf.mxu0
    %v4494 = vadd.f32 %v3765, %v4493
    %4495 = vmatmul.bf16.gmra.mxu0 %v2623
    %v4496 = vpop.f32.mrf.mxu0
    %v4497 = vadd.f32 %v3768, %v4496
    %v4498 = vpop.f32.mrf.mxu0
    %v4499 = vadd.f32 %v3770, %v4498
    %4500 = vmatmul.bf16.gmra.mxu0 %v2626
    %v4501 = vpop.f32.mrf.mxu0
    %v4502 = vadd.f32 %v3773, %v4501
    %v4503 = vpop.f32.mrf.mxu0
    %v4504 = vadd.f32 %v3775, %v4503
    %4505 = vmatmul.bf16.gmra.mxu0 %v2629
    %v4506 = vpop.f32.mrf.mxu0
    %v4507 = vadd.f32 %v3778, %v4506
    %v4508 = vpop.f32.mrf.mxu0
    %v4509 = vadd.f32 %v3780, %v4508
    %4510 = vmatmul.bf16.gmra.mxu0 %v2632
    %v4511 = vpop.f32.mrf.mxu0
    %v4512 = vadd.f32 %v3783, %v4511
    %v4513 = vpop.f32.mrf.mxu0
    %v4514 = vadd.f32 %v3785, %v4513
    %4515 = vmatmul.bf16.gmra.mxu0 %v2635
    %v4516 = vpop.f32.mrf.mxu0
    %v4517 = vadd.f32 %v3788, %v4516
    %v4518 = vpop.f32.mrf.mxu0
    %v4519 = vadd.f32 %v3790, %v4518
    %4520 = vmatmul.bf16.gmra.mxu0 %v2638
    %v4521 = vpop.f32.mrf.mxu0
    %v4522 = vadd.f32 %v3793, %v4521
    %v4523 = vpop.f32.mrf.mxu0
    %v4524 = vadd.f32 %v3795, %v4523
    %4525 = vmatmul.bf16.gmra.mxu0 %v2641
    %v4526 = vpop.f32.mrf.mxu0
    %v4527 = vadd.f32 %v3798, %v4526
    %v4528 = vpop.f32.mrf.mxu0
    %v4529 = vadd.f32 %v3800, %v4528
    %4530 = vmatmul.bf16.gmra.mxu0 %v2644
    %v4531 = vpop.f32.mrf.mxu0
    %v4532 = vadd.f32 %v3803, %v4531
    %v4533 = vpop.f32.mrf.mxu0
    %v4534 = vadd.f32 %v3805, %v4533
    %4535 = vdwg.mxu0
    %4536 = vmatpush.bf16.msra.mxu0 %v197
    %4537 = vmatpush.bf16.msra.mxu0 %v196
    %4538 = vmatpush.bf16.msra.mxu0 %v195
    %4539 = vmatpush.bf16.msra.mxu0 %v194
    %4540 = vmatpush.bf16.msra.mxu0 %v193
    %4541 = vmatpush.bf16.msra.mxu0 %v192
    %4542 = vmatpush.bf16.msra.mxu0 %v191
    %4543 = vmatpush.bf16.msra.mxu0 %v190
    %4544 = vmatmul.bf16.gmra.mxu0 %v2216
    %v4545 = vpop.f32.mrf.mxu0
    %v4546 = vadd.f32 %v3817, %v4545
    %v4547 = vpop.f32.mrf.mxu0
    %v4548 = vadd.f32 %v3819, %v4547
    %4549 = vmatmul.bf16.gmra.mxu0 %v2219
    %v4550 = vpop.f32.mrf.mxu0
    %v4551 = vadd.f32 %v3822, %v4550
    %v4552 = vpop.f32.mrf.mxu0
    %v4553 = vadd.f32 %v3824, %v4552
    %4554 = vmatmul.bf16.gmra.mxu0 %v2222
    %v4555 = vpop.f32.mrf.mxu0
    %v4556 = vadd.f32 %v3827, %v4555
    %v4557 = vpop.f32.mrf.mxu0
    %v4558 = vadd.f32 %v3829, %v4557
    %4559 = vmatmul.bf16.gmra.mxu0 %v2225
    %v4560 = vpop.f32.mrf.mxu0
    %v4561 = vadd.f32 %v3832, %v4560
    %v4562 = vpop.f32.mrf.mxu0
    %v4563 = vadd.f32 %v3834, %v4562
    %4564 = vmatmul.bf16.gmra.mxu0 %v2228
    %v4565 = vpop.f32.mrf.mxu0
    %v4566 = vadd.f32 %v3837, %v4565
    %v4567 = vpop.f32.mrf.mxu0
    %v4568 = vadd.f32 %v3839, %v4567
    %4569 = vmatmul.bf16.gmra.mxu0 %v2231
    %v4570 = vpop.f32.mrf.mxu0
    %v4571 = vadd.f32 %v3842, %v4570
    %v4572 = vpop.f32.mrf.mxu0
    %v4573 = vadd.f32 %v3844, %v4572
    %4574 = vmatmul.bf16.gmra.mxu0 %v2234
    %v4575 = vpop.f32.mrf.mxu0
    %v4576 = vadd.f32 %v3847, %v4575
    %v4577 = vpop.f32.mrf.mxu0
    %v4578 = vadd.f32 %v3849, %v4577
    %4579 = vmatmul.bf16.gmra.mxu0 %v2237
    %v4580 = vpop.f32.mrf.mxu0
    %v4581 = vadd.f32 %v3852, %v4580
    %v4582 = vpop.f32.mrf.mxu0
    %v4583 = vadd.f32 %v3854, %v4582
    %4584 = vmatmul.bf16.gmra.mxu0 %v2240
    %v4585 = vpop.f32.mrf.mxu0
    %v4586 = vadd.f32 %v3857, %v4585
    %v4587 = vpop.f32.mrf.mxu0
    %v4588 = vadd.f32 %v3859, %v4587
    %4589 = vmatmul.bf16.gmra.mxu0 %v2243
    %v4590 = vpop.f32.mrf.mxu0
    %v4591 = vadd.f32 %v3862, %v4590
    %v4592 = vpop.f32.mrf.mxu0
    %v4593 = vadd.f32 %v3864, %v4592
    %4594 = vmatmul.bf16.gmra.mxu0 %v2246
    %v4595 = vpop.f32.mrf.mxu0
    %v4596 = vadd.f32 %v3867, %v4595
    %v4597 = vpop.f32.mrf.mxu0
    %v4598 = vadd.f32 %v3869, %v4597
    %4599 = vmatmul.bf16.gmra.mxu0 %v2249
    %v4600 = vpop.f32.mrf.mxu0
    %v4601 = vadd.f32 %v3872, %v4600
    %v4602 = vpop.f32.mrf.mxu0
    %v4603 = vadd.f32 %v3874, %v4602
    %4604 = vmatmul.bf16.gmra.mxu0 %v2252
    %v4605 = vpop.f32.mrf.mxu0
    %v4606 = vadd.f32 %v3877, %v4605
    %v4607 = vpop.f32.mrf.mxu0
    %v4608 = vadd.f32 %v3879, %v4607
    %4609 = vmatmul.bf16.gmra.mxu0 %v2255
    %v4610 = vpop.f32.mrf.mxu0
    %v4611 = vadd.f32 %v3882, %v4610
    %v4612 = vpop.f32.mrf.mxu0
    %v4613 = vadd.f32 %v3884, %v4612
    %4614 = vmatmul.bf16.gmra.mxu0 %v2258
    %v4615 = vpop.f32.mrf.mxu0
    %v4616 = vadd.f32 %v3887, %v4615
    %v4617 = vpop.f32.mrf.mxu0
    %v4618 = vadd.f32 %v3889, %v4617
    %4619 = vmatmul.bf16.gmra.mxu0 %v2261
    %v4620 = vpop.f32.mrf.mxu0
    %v4621 = vadd.f32 %v3892, %v4620
    %v4622 = vpop.f32.mrf.mxu0
    %v4623 = vadd.f32 %v3894, %v4622
    %4624 = vmatmul.bf16.gmra.mxu0 %v2264
    %v4625 = vpop.f32.mrf.mxu0
    %v4626 = vadd.f32 %v3897, %v4625
    %v4627 = vpop.f32.mrf.mxu0
    %v4628 = vadd.f32 %v3899, %v4627
    %4629 = vmatmul.bf16.gmra.mxu0 %v2267
    %v4630 = vpop.f32.mrf.mxu0
    %v4631 = vadd.f32 %v3902, %v4630
    %v4632 = vpop.f32.mrf.mxu0
    %v4633 = vadd.f32 %v3904, %v4632
    %4634 = vmatmul.bf16.gmra.mxu0 %v2270
    %v4635 = vpop.f32.mrf.mxu0
    %v4636 = vadd.f32 %v3907, %v4635
    %v4637 = vpop.f32.mrf.mxu0
    %v4638 = vadd.f32 %v3909, %v4637
    %4639 = vmatmul.bf16.gmra.mxu0 %v2273
    %v4640 = vpop.f32.mrf.mxu0
    %v4641 = vadd.f32 %v3912, %v4640
    %v4642 = vpop.f32.mrf.mxu0
    %v4643 = vadd.f32 %v3914, %v4642
    %4644 = vmatmul.bf16.gmra.mxu0 %v2276
    %v4645 = vpop.f32.mrf.mxu0
    %v4646 = vadd.f32 %v3917, %v4645
    %v4647 = vpop.f32.mrf.mxu0
    %v4648 = vadd.f32 %v3919, %v4647
    %4649 = vmatmul.bf16.gmra.mxu0 %v2279
    %v4650 = vpop.f32.mrf.mxu0
    %v4651 = vadd.f32 %v3922, %v4650
    %v4652 = vpop.f32.mrf.mxu0
    %v4653 = vadd.f32 %v3924, %v4652
    %4654 = vmatmul.bf16.gmra.mxu0 %v2282
    %v4655 = vpop.f32.mrf.mxu0
    %v4656 = vadd.f32 %v3927, %v4655
    %v4657 = vpop.f32.mrf.mxu0
    %v4658 = vadd.f32 %v3929, %v4657
    %4659 = vmatmul.bf16.gmra.mxu0 %v2285
    %v4660 = vpop.f32.mrf.mxu0
    %v4661 = vadd.f32 %v3932, %v4660
    %v4662 = vpop.f32.mrf.mxu0
    %v4663 = vadd.f32 %v3934, %v4662
    %4664 = vmatmul.bf16.gmra.mxu0 %v2288
    %v4665 = vpop.f32.mrf.mxu0
    %v4666 = vadd.f32 %v3937, %v4665
    %v4667 = vpop.f32.mrf.mxu0
    %v4668 = vadd.f32 %v3939, %v4667
    %4669 = vmatmul.bf16.gmra.mxu0 %v2291
    %v4670 = vpop.f32.mrf.mxu0
    %v4671 = vadd.f32 %v3942, %v4670
    %v4672 = vpop.f32.mrf.mxu0
    %v4673 = vadd.f32 %v3944, %v4672
    %4674 = vmatmul.bf16.gmra.mxu0 %v2294
    %v4675 = vpop.f32.mrf.mxu0
    %v4676 = vadd.f32 %v3947, %v4675
    %v4677 = vpop.f32.mrf.mxu0
    %v4678 = vadd.f32 %v3949, %v4677
    %4679 = vmatmul.bf16.gmra.mxu0 %v2297
    %v4680 = vpop.f32.mrf.mxu0
    %v4681 = vadd.f32 %v3952, %v4680
    %v4682 = vpop.f32.mrf.mxu0
    %v4683 = vadd.f32 %v3954, %v4682
    %4684 = vmatmul.bf16.gmra.mxu0 %v2300
    %v4685 = vpop.f32.mrf.mxu0
    %v4686 = vadd.f32 %v3957, %v4685
    %v4687 = vpop.f32.mrf.mxu0
    %v4688 = vadd.f32 %v3959, %v4687
    %4689 = vmatmul.bf16.gmra.mxu0 %v2303
    %v4690 = vpop.f32.mrf.mxu0
    %v4691 = vadd.f32 %v3962, %v4690
    %v4692 = vpop.f32.mrf.mxu0
    %v4693 = vadd.f32 %v3964, %v4692
    %4694 = vmatmul.bf16.gmra.mxu0 %v2306
    %v4695 = vpop.f32.mrf.mxu0
    %v4696 = vadd.f32 %v3967, %v4695
    %v4697 = vpop.f32.mrf.mxu0
    %v4698 = vadd.f32 %v3969, %v4697
    %4699 = vmatmul.bf16.gmra.mxu0 %v2309
    %v4700 = vpop.f32.mrf.mxu0
    %v4701 = vadd.f32 %v3972, %v4700
    %v4702 = vpop.f32.mrf.mxu0
    %v4703 = vadd.f32 %v3974, %v4702
    %4704 = vmatmul.bf16.gmra.mxu0 %v2312
    %v4705 = vpop.f32.mrf.mxu0
    %v4706 = vadd.f32 %v3977, %v4705
    %v4707 = vpop.f32.mrf.mxu0
    %v4708 = vadd.f32 %v3979, %v4707
    %4709 = vmatmul.bf16.gmra.mxu0 %v2315
    %v4710 = vpop.f32.mrf.mxu0
    %v4711 = vadd.f32 %v3982, %v4710
    %v4712 = vpop.f32.mrf.mxu0
    %v4713 = vadd.f32 %v3984, %v4712
    %4714 = vmatmul.bf16.gmra.mxu0 %v2318
    %v4715 = vpop.f32.mrf.mxu0
    %v4716 = vadd.f32 %v3987, %v4715
    %v4717 = vpop.f32.mrf.mxu0
    %v4718 = vadd.f32 %v3989, %v4717
    %4719 = vmatmul.bf16.gmra.mxu0 %v2321
    %v4720 = vpop.f32.mrf.mxu0
    %v4721 = vadd.f32 %v3992, %v4720
    %v4722 = vpop.f32.mrf.mxu0
    %v4723 = vadd.f32 %v3994, %v4722
    %4724 = vmatmul.bf16.gmra.mxu0 %v2324
    %v4725 = vpop.f32.mrf.mxu0
    %v4726 = vadd.f32 %v3997, %v4725
    %v4727 = vpop.f32.mrf.mxu0
    %v4728 = vadd.f32 %v3999, %v4727
    %4729 = vmatmul.bf16.gmra.mxu0 %v2327
    %v4730 = vpop.f32.mrf.mxu0
    %v4731 = vadd.f32 %v4002, %v4730
    %v4732 = vpop.f32.mrf.mxu0
    %v4733 = vadd.f32 %v4004, %v4732
    %4734 = vmatmul.bf16.gmra.mxu0 %v2330
    %v4735 = vpop.f32.mrf.mxu0
    %v4736 = vadd.f32 %v4007, %v4735
    %v4737 = vpop.f32.mrf.mxu0
    %v4738 = vadd.f32 %v4009, %v4737
    %4739 = vmatmul.bf16.gmra.mxu0 %v2333
    %v4740 = vpop.f32.mrf.mxu0
    %v4741 = vadd.f32 %v4012, %v4740
    %v4742 = vpop.f32.mrf.mxu0
    %v4743 = vadd.f32 %v4014, %v4742
    %4744 = vmatmul.bf16.gmra.mxu0 %v2336
    %v4745 = vpop.f32.mrf.mxu0
    %v4746 = vadd.f32 %v4017, %v4745
    %v4747 = vpop.f32.mrf.mxu0
    %v4748 = vadd.f32 %v4019, %v4747
    %4749 = vmatmul.bf16.gmra.mxu0 %v2339
    %v4750 = vpop.f32.mrf.mxu0
    %v4751 = vadd.f32 %v4022, %v4750
    %v4752 = vpop.f32.mrf.mxu0
    %v4753 = vadd.f32 %v4024, %v4752
    %4754 = vmatmul.bf16.gmra.mxu0 %v2342
    %v4755 = vpop.f32.mrf.mxu0
    %v4756 = vadd.f32 %v4027, %v4755
    %v4757 = vpop.f32.mrf.mxu0
    %v4758 = vadd.f32 %v4029, %v4757
    %4759 = vmatmul.bf16.gmra.mxu0 %v2345
    %v4760 = vpop.f32.mrf.mxu0
    %v4761 = vadd.f32 %v4032, %v4760
    %v4762 = vpop.f32.mrf.mxu0
    %v4763 = vadd.f32 %v4034, %v4762
    %4764 = vmatmul.bf16.gmra.mxu0 %v2348
    %v4765 = vpop.f32.mrf.mxu0
    %v4766 = vadd.f32 %v4037, %v4765
    %v4767 = vpop.f32.mrf.mxu0
    %v4768 = vadd.f32 %v4039, %v4767
    %4769 = vmatmul.bf16.gmra.mxu0 %v2351
    %v4770 = vpop.f32.mrf.mxu0
    %v4771 = vadd.f32 %v4042, %v4770
    %v4772 = vpop.f32.mrf.mxu0
    %v4773 = vadd.f32 %v4044, %v4772
    %4774 = vmatmul.bf16.gmra.mxu0 %v2354
    %v4775 = vpop.f32.mrf.mxu0
    %v4776 = vadd.f32 %v4047, %v4775
    %v4777 = vpop.f32.mrf.mxu0
    %v4778 = vadd.f32 %v4049, %v4777
    %4779 = vmatmul.bf16.gmra.mxu0 %v2357
    %v4780 = vpop.f32.mrf.mxu0
    %v4781 = vadd.f32 %v4052, %v4780
    %v4782 = vpop.f32.mrf.mxu0
    %v4783 = vadd.f32 %v4054, %v4782
    %4784 = vmatmul.bf16.gmra.mxu0 %v2360
    %v4785 = vpop.f32.mrf.mxu0
    %v4786 = vadd.f32 %v4057, %v4785
    %v4787 = vpop.f32.mrf.mxu0
    %v4788 = vadd.f32 %v4059, %v4787
    %4789 = vmatmul.bf16.gmra.mxu0 %v2363
    %v4790 = vpop.f32.mrf.mxu0
    %v4791 = vadd.f32 %v4062, %v4790
    %v4792 = vpop.f32.mrf.mxu0
    %v4793 = vadd.f32 %v4064, %v4792
    %4794 = vmatmul.bf16.gmra.mxu0 %v2366
    %v4795 = vpop.f32.mrf.mxu0
    %v4796 = vadd.f32 %v4067, %v4795
    %v4797 = vpop.f32.mrf.mxu0
    %v4798 = vadd.f32 %v4069, %v4797
    %4799 = vmatmul.bf16.gmra.mxu0 %v2369
    %v4800 = vpop.f32.mrf.mxu0
    %v4801 = vadd.f32 %v4072, %v4800
    %v4802 = vpop.f32.mrf.mxu0
    %v4803 = vadd.f32 %v4074, %v4802
    %4804 = vmatmul.bf16.gmra.mxu0 %v2372
    %v4805 = vpop.f32.mrf.mxu0
    %v4806 = vadd.f32 %v4077, %v4805
    %v4807 = vpop.f32.mrf.mxu0
    %v4808 = vadd.f32 %v4079, %v4807
    %4809 = vmatmul.bf16.gmra.mxu0 %v2375
    %v4810 = vpop.f32.mrf.mxu0
    %v4811 = vadd.f32 %v4082, %v4810
    %v4812 = vpop.f32.mrf.mxu0
    %v4813 = vadd.f32 %v4084, %v4812
    %4814 = vmatmul.bf16.gmra.mxu0 %v2378
    %v4815 = vpop.f32.mrf.mxu0
    %v4816 = vadd.f32 %v4087, %v4815
    %v4817 = vpop.f32.mrf.mxu0
    %v4818 = vadd.f32 %v4089, %v4817
    %4819 = vmatmul.bf16.gmra.mxu0 %v2381
    %v4820 = vpop.f32.mrf.mxu0
    %v4821 = vadd.f32 %v4092, %v4820
    %v4822 = vpop.f32.mrf.mxu0
    %v4823 = vadd.f32 %v4094, %v4822
    %4824 = vmatmul.bf16.gmra.mxu0 %v2384
    %v4825 = vpop.f32.mrf.mxu0
    %v4826 = vadd.f32 %v4097, %v4825
    %v4827 = vpop.f32.mrf.mxu0
    %v4828 = vadd.f32 %v4099, %v4827
    %4829 = vmatmul.bf16.gmra.mxu0 %v2387
    %v4830 = vpop.f32.mrf.mxu0
    %v4831 = vadd.f32 %v4102, %v4830
    %v4832 = vpop.f32.mrf.mxu0
    %v4833 = vadd.f32 %v4104, %v4832
    %4834 = vmatmul.bf16.gmra.mxu0 %v2390
    %v4835 = vpop.f32.mrf.mxu0
    %v4836 = vadd.f32 %v4107, %v4835
    %v4837 = vpop.f32.mrf.mxu0
    %v4838 = vadd.f32 %v4109, %v4837
    %4839 = vmatmul.bf16.gmra.mxu0 %v2393
    %v4840 = vpop.f32.mrf.mxu0
    %v4841 = vadd.f32 %v4112, %v4840
    %v4842 = vpop.f32.mrf.mxu0
    %v4843 = vadd.f32 %v4114, %v4842
    %4844 = vmatmul.bf16.gmra.mxu0 %v2396
    %v4845 = vpop.f32.mrf.mxu0
    %v4846 = vadd.f32 %v4117, %v4845
    %v4847 = vpop.f32.mrf.mxu0
    %v4848 = vadd.f32 %v4119, %v4847
    %4849 = vmatmul.bf16.gmra.mxu0 %v2399
    %v4850 = vpop.f32.mrf.mxu0
    %v4851 = vadd.f32 %v4122, %v4850
    %v4852 = vpop.f32.mrf.mxu0
    %v4853 = vadd.f32 %v4124, %v4852
    %4854 = vmatmul.bf16.gmra.mxu0 %v2402
    %v4855 = vpop.f32.mrf.mxu0
    %v4856 = vadd.f32 %v4127, %v4855
    %v4857 = vpop.f32.mrf.mxu0
    %v4858 = vadd.f32 %v4129, %v4857
    %4859 = vmatmul.bf16.gmra.mxu0 %v2405
    %v4860 = vpop.f32.mrf.mxu0
    %v4861 = vadd.f32 %v4132, %v4860
    %v4862 = vpop.f32.mrf.mxu0
    %v4863 = vadd.f32 %v4134, %v4862
    %4864 = vmatmul.bf16.gmra.mxu0 %v2408
    %v4865 = vpop.f32.mrf.mxu0
    %v4866 = vadd.f32 %v4137, %v4865
    %v4867 = vpop.f32.mrf.mxu0
    %v4868 = vadd.f32 %v4139, %v4867
    %4869 = vmatmul.bf16.gmra.mxu0 %v2411
    %v4870 = vpop.f32.mrf.mxu0
    %v4871 = vadd.f32 %v4142, %v4870
    %v4872 = vpop.f32.mrf.mxu0
    %v4873 = vadd.f32 %v4144, %v4872
    %4874 = vmatmul.bf16.gmra.mxu0 %v2414
    %v4875 = vpop.f32.mrf.mxu0
    %v4876 = vadd.f32 %v4147, %v4875
    %v4877 = vpop.f32.mrf.mxu0
    %v4878 = vadd.f32 %v4149, %v4877
    %4879 = vmatmul.bf16.gmra.mxu0 %v2417
    %v4880 = vpop.f32.mrf.mxu0
    %v4881 = vadd.f32 %v4152, %v4880
    %v4882 = vpop.f32.mrf.mxu0
    %v4883 = vadd.f32 %v4154, %v4882
    %4884 = vmatmul.bf16.gmra.mxu0 %v2420
    %v4885 = vpop.f32.mrf.mxu0
    %v4886 = vadd.f32 %v4157, %v4885
    %v4887 = vpop.f32.mrf.mxu0
    %v4888 = vadd.f32 %v4159, %v4887
    %4889 = vmatmul.bf16.gmra.mxu0 %v2423
    %v4890 = vpop.f32.mrf.mxu0
    %v4891 = vadd.f32 %v4162, %v4890
    %v4892 = vpop.f32.mrf.mxu0
    %v4893 = vadd.f32 %v4164, %v4892
    %4894 = vmatmul.bf16.gmra.mxu0 %v2426
    %v4895 = vpop.f32.mrf.mxu0
    %v4896 = vadd.f32 %v4167, %v4895
    %v4897 = vpop.f32.mrf.mxu0
    %v4898 = vadd.f32 %v4169, %v4897
    %4899 = vmatmul.bf16.gmra.mxu0 %v2429
    %v4900 = vpop.f32.mrf.mxu0
    %v4901 = vadd.f32 %v4172, %v4900
    %v4902 = vpop.f32.mrf.mxu0
    %v4903 = vadd.f32 %v4174, %v4902
    %4904 = vmatmul.bf16.gmra.mxu0 %v2432
    %v4905 = vpop.f32.mrf.mxu0
    %v4906 = vadd.f32 %v4177, %v4905
    %v4907 = vpop.f32.mrf.mxu0
    %v4908 = vadd.f32 %v4179, %v4907
    %4909 = vmatmul.bf16.gmra.mxu0 %v2435
    %v4910 = vpop.f32.mrf.mxu0
    %v4911 = vadd.f32 %v4182, %v4910
    %v4912 = vpop.f32.mrf.mxu0
    %v4913 = vadd.f32 %v4184, %v4912
    %4914 = vmatmul.bf16.gmra.mxu0 %v2438
    %v4915 = vpop.f32.mrf.mxu0
    %v4916 = vadd.f32 %v4187, %v4915
    %v4917 = vpop.f32.mrf.mxu0
    %v4918 = vadd.f32 %v4189, %v4917
    %4919 = vmatmul.bf16.gmra.mxu0 %v2441
    %v4920 = vpop.f32.mrf.mxu0
    %v4921 = vadd.f32 %v4192, %v4920
    %v4922 = vpop.f32.mrf.mxu0
    %v4923 = vadd.f32 %v4194, %v4922
    %4924 = vmatmul.bf16.gmra.mxu0 %v2444
    %v4925 = vpop.f32.mrf.mxu0
    %v4926 = vadd.f32 %v4197, %v4925
    %v4927 = vpop.f32.mrf.mxu0
    %v4928 = vadd.f32 %v4199, %v4927
    %4929 = vmatmul.bf16.gmra.mxu0 %v2447
    %v4930 = vpop.f32.mrf.mxu0
    %v4931 = vadd.f32 %v4202, %v4930
    %v4932 = vpop.f32.mrf.mxu0
    %v4933 = vadd.f32 %v4204, %v4932
    %4934 = vmatmul.bf16.gmra.mxu0 %v2450
    %v4935 = vpop.f32.mrf.mxu0
    %v4936 = vadd.f32 %v4207, %v4935
    %v4937 = vpop.f32.mrf.mxu0
    %v4938 = vadd.f32 %v4209, %v4937
    %4939 = vmatmul.bf16.gmra.mxu0 %v2453
    %v4940 = vpop.f32.mrf.mxu0
    %v4941 = vadd.f32 %v4212, %v4940
    %v4942 = vpop.f32.mrf.mxu0
    %v4943 = vadd.f32 %v4214, %v4942
    %4944 = vmatmul.bf16.gmra.mxu0 %v2456
    %v4945 = vpop.f32.mrf.mxu0
    %v4946 = vadd.f32 %v4217, %v4945
    %v4947 = vpop.f32.mrf.mxu0
    %v4948 = vadd.f32 %v4219, %v4947
    %4949 = vmatmul.bf16.gmra.mxu0 %v2459
    %v4950 = vpop.f32.mrf.mxu0
    %v4951 = vadd.f32 %v4222, %v4950
    %v4952 = vpop.f32.mrf.mxu0
    %v4953 = vadd.f32 %v4224, %v4952
    %4954 = vmatmul.bf16.gmra.mxu0 %v2462
    %v4955 = vpop.f32.mrf.mxu0
    %v4956 = vadd.f32 %v4227, %v4955
    %v4957 = vpop.f32.mrf.mxu0
    %v4958 = vadd.f32 %v4229, %v4957
    %4959 = vmatmul.bf16.gmra.mxu0 %v2465
    %v4960 = vpop.f32.mrf.mxu0
    %v4961 = vadd.f32 %v4232, %v4960
    %v4962 = vpop.f32.mrf.mxu0
    %v4963 = vadd.f32 %v4234, %v4962
    %4964 = vmatmul.bf16.gmra.mxu0 %v2468
    %v4965 = vpop.f32.mrf.mxu0
    %v4966 = vadd.f32 %v4237, %v4965
    %v4967 = vpop.f32.mrf.mxu0
    %v4968 = vadd.f32 %v4239, %v4967
    %4969 = vmatmul.bf16.gmra.mxu0 %v2471
    %v4970 = vpop.f32.mrf.mxu0
    %v4971 = vadd.f32 %v4242, %v4970
    %v4972 = vpop.f32.mrf.mxu0
    %v4973 = vadd.f32 %v4244, %v4972
    %4974 = vmatmul.bf16.gmra.mxu0 %v2474
    %v4975 = vpop.f32.mrf.mxu0
    %v4976 = vadd.f32 %v4247, %v4975
    %v4977 = vpop.f32.mrf.mxu0
    %v4978 = vadd.f32 %v4249, %v4977
    %4979 = vmatmul.bf16.gmra.mxu0 %v2477
    %v4980 = vpop.f32.mrf.mxu0
    %v4981 = vadd.f32 %v4252, %v4980
    %v4982 = vpop.f32.mrf.mxu0
    %v4983 = vadd.f32 %v4254, %v4982
    %4984 = vmatmul.bf16.gmra.mxu0 %v2480
    %v4985 = vpop.f32.mrf.mxu0
    %v4986 = vadd.f32 %v4257, %v4985
    %v4987 = vpop.f32.mrf.mxu0
    %v4988 = vadd.f32 %v4259, %v4987
    %4989 = vmatmul.bf16.gmra.mxu0 %v2483
    %v4990 = vpop.f32.mrf.mxu0
    %v4991 = vadd.f32 %v4262, %v4990
    %v4992 = vpop.f32.mrf.mxu0
    %v4993 = vadd.f32 %v4264, %v4992
    %4994 = vmatmul.bf16.gmra.mxu0 %v2486
    %v4995 = vpop.f32.mrf.mxu0
    %v4996 = vadd.f32 %v4267, %v4995
    %v4997 = vpop.f32.mrf.mxu0
    %v4998 = vadd.f32 %v4269, %v4997
    %4999 = vmatmul.bf16.gmra.mxu0 %v2489
    %v5000 = vpop.f32.mrf.mxu0
    %v5001 = vadd.f32 %v4272, %v5000
    %v5002 = vpop.f32.mrf.mxu0
    %v5003 = vadd.f32 %v4274, %v5002
    %5004 = vmatmul.bf16.gmra.mxu0 %v2492
    %v5005 = vpop.f32.mrf.mxu0
    %v5006 = vadd.f32 %v4277, %v5005
    %v5007 = vpop.f32.mrf.mxu0
    %v5008 = vadd.f32 %v4279, %v5007
    %5009 = vmatmul.bf16.gmra.mxu0 %v2495
    %v5010 = vpop.f32.mrf.mxu0
    %v5011 = vadd.f32 %v4282, %v5010
    %v5012 = vpop.f32.mrf.mxu0
    %v5013 = vadd.f32 %v4284, %v5012
    %5014 = vmatmul.bf16.gmra.mxu0 %v2498
    %v5015 = vpop.f32.mrf.mxu0
    %v5016 = vadd.f32 %v4287, %v5015
    %v5017 = vpop.f32.mrf.mxu0
    %v5018 = vadd.f32 %v4289, %v5017
    %5019 = vmatmul.bf16.gmra.mxu0 %v2501
    %v5020 = vpop.f32.mrf.mxu0
    %v5021 = vadd.f32 %v4292, %v5020
    %v5022 = vpop.f32.mrf.mxu0
    %v5023 = vadd.f32 %v4294, %v5022
    %5024 = vmatmul.bf16.gmra.mxu0 %v2504
    %v5025 = vpop.f32.mrf.mxu0
    %v5026 = vadd.f32 %v4297, %v5025
    %v5027 = vpop.f32.mrf.mxu0
    %v5028 = vadd.f32 %v4299, %v5027
    %5029 = vmatmul.bf16.gmra.mxu0 %v2507
    %v5030 = vpop.f32.mrf.mxu0
    %v5031 = vadd.f32 %v4302, %v5030
    %v5032 = vpop.f32.mrf.mxu0
    %v5033 = vadd.f32 %v4304, %v5032
    %5034 = vmatmul.bf16.gmra.mxu0 %v2510
    %v5035 = vpop.f32.mrf.mxu0
    %v5036 = vadd.f32 %v4307, %v5035
    %v5037 = vpop.f32.mrf.mxu0
    %v5038 = vadd.f32 %v4309, %v5037
    %5039 = vmatmul.bf16.gmra.mxu0 %v2513
    %v5040 = vpop.f32.mrf.mxu0
    %v5041 = vadd.f32 %v4312, %v5040
    %v5042 = vpop.f32.mrf.mxu0
    %v5043 = vadd.f32 %v4314, %v5042
    %5044 = vmatmul.bf16.gmra.mxu0 %v2516
    %v5045 = vpop.f32.mrf.mxu0
    %v5046 = vadd.f32 %v4317, %v5045
    %v5047 = vpop.f32.mrf.mxu0
    %v5048 = vadd.f32 %v4319, %v5047
    %5049 = vmatmul.bf16.gmra.mxu0 %v2519
    %v5050 = vpop.f32.mrf.mxu0
    %v5051 = vadd.f32 %v4322, %v5050
    %v5052 = vpop.f32.mrf.mxu0
    %v5053 = vadd.f32 %v4324, %v5052
    %5054 = vmatmul.bf16.gmra.mxu0 %v2522
    %v5055 = vpop.f32.mrf.mxu0
    %v5056 = vadd.f32 %v4327, %v5055
    %v5057 = vpop.f32.mrf.mxu0
    %v5058 = vadd.f32 %v4329, %v5057
    %5059 = vmatmul.bf16.gmra.mxu0 %v2525
    %v5060 = vpop.f32.mrf.mxu0
    %v5061 = vadd.f32 %v4332, %v5060
    %v5062 = vpop.f32.mrf.mxu0
    %v5063 = vadd.f32 %v4334, %v5062
    %5064 = vmatmul.bf16.gmra.mxu0 %v2528
    %v5065 = vpop.f32.mrf.mxu0
    %v5066 = vadd.f32 %v4337, %v5065
    %v5067 = vpop.f32.mrf.mxu0
    %v5068 = vadd.f32 %v4339, %v5067
    %5069 = vmatmul.bf16.gmra.mxu0 %v2531
    %v5070 = vpop.f32.mrf.mxu0
    %v5071 = vadd.f32 %v4342, %v5070
    %v5072 = vpop.f32.mrf.mxu0
    %v5073 = vadd.f32 %v4344, %v5072
    %5074 = vmatmul.bf16.gmra.mxu0 %v2534
    %v5075 = vpop.f32.mrf.mxu0
    %v5076 = vadd.f32 %v4347, %v5075
    %v5077 = vpop.f32.mrf.mxu0
    %v5078 = vadd.f32 %v4349, %v5077
    %5079 = vmatmul.bf16.gmra.mxu0 %v2537
    %v5080 = vpop.f32.mrf.mxu0
    %v5081 = vadd.f32 %v4352, %v5080
    %v5082 = vpop.f32.mrf.mxu0
    %v5083 = vadd.f32 %v4354, %v5082
    %5084 = vmatmul.bf16.gmra.mxu0 %v2540
    %v5085 = vpop.f32.mrf.mxu0
    %v5086 = vadd.f32 %v4357, %v5085
    %v5087 = vpop.f32.mrf.mxu0
    %v5088 = vadd.f32 %v4359, %v5087
    %5089 = vmatmul.bf16.gmra.mxu0 %v2543
    %v5090 = vpop.f32.mrf.mxu0
    %v5091 = vadd.f32 %v4362, %v5090
    %v5092 = vpop.f32.mrf.mxu0
    %v5093 = vadd.f32 %v4364, %v5092
    %5094 = vmatmul.bf16.gmra.mxu0 %v2546
    %v5095 = vpop.f32.mrf.mxu0
    %v5096 = vadd.f32 %v4367, %v5095
    %v5097 = vpop.f32.mrf.mxu0
    %v5098 = vadd.f32 %v4369, %v5097
    %5099 = vmatmul.bf16.gmra.mxu0 %v2549
    %v5100 = vpop.f32.mrf.mxu0
    %v5101 = vadd.f32 %v4372, %v5100
    %v5102 = vpop.f32.mrf.mxu0
    %v5103 = vadd.f32 %v4374, %v5102
    %5104 = vmatmul.bf16.gmra.mxu0 %v2552
    %v5105 = vpop.f32.mrf.mxu0
    %v5106 = vadd.f32 %v4377, %v5105
    %v5107 = vpop.f32.mrf.mxu0
    %v5108 = vadd.f32 %v4379, %v5107
    %5109 = vmatmul.bf16.gmra.mxu0 %v2555
    %v5110 = vpop.f32.mrf.mxu0
    %v5111 = vadd.f32 %v4382, %v5110
    %v5112 = vpop.f32.mrf.mxu0
    %v5113 = vadd.f32 %v4384, %v5112
    %5114 = vmatmul.bf16.gmra.mxu0 %v2558
    %v5115 = vpop.f32.mrf.mxu0
    %v5116 = vadd.f32 %v4387, %v5115
    %v5117 = vpop.f32.mrf.mxu0
    %v5118 = vadd.f32 %v4389, %v5117
    %5119 = vmatmul.bf16.gmra.mxu0 %v2561
    %v5120 = vpop.f32.mrf.mxu0
    %v5121 = vadd.f32 %v4392, %v5120
    %v5122 = vpop.f32.mrf.mxu0
    %v5123 = vadd.f32 %v4394, %v5122
    %5124 = vmatmul.bf16.gmra.mxu0 %v2564
    %v5125 = vpop.f32.mrf.mxu0
    %v5126 = vadd.f32 %v4397, %v5125
    %v5127 = vpop.f32.mrf.mxu0
    %v5128 = vadd.f32 %v4399, %v5127
    %5129 = vmatmul.bf16.gmra.mxu0 %v2567
    %v5130 = vpop.f32.mrf.mxu0
    %v5131 = vadd.f32 %v4402, %v5130
    %v5132 = vpop.f32.mrf.mxu0
    %v5133 = vadd.f32 %v4404, %v5132
    %5134 = vmatmul.bf16.gmra.mxu0 %v2570
    %v5135 = vpop.f32.mrf.mxu0
    %v5136 = vadd.f32 %v4407, %v5135
    %v5137 = vpop.f32.mrf.mxu0
    %v5138 = vadd.f32 %v4409, %v5137
    %5139 = vmatmul.bf16.gmra.mxu0 %v2573
    %v5140 = vpop.f32.mrf.mxu0
    %v5141 = vadd.f32 %v4412, %v5140
    %v5142 = vpop.f32.mrf.mxu0
    %v5143 = vadd.f32 %v4414, %v5142
    %5144 = vmatmul.bf16.gmra.mxu0 %v2576
    %v5145 = vpop.f32.mrf.mxu0
    %v5146 = vadd.f32 %v4417, %v5145
    %v5147 = vpop.f32.mrf.mxu0
    %v5148 = vadd.f32 %v4419, %v5147
    %5149 = vmatmul.bf16.gmra.mxu0 %v2579
    %v5150 = vpop.f32.mrf.mxu0
    %v5151 = vadd.f32 %v4422, %v5150
    %v5152 = vpop.f32.mrf.mxu0
    %v5153 = vadd.f32 %v4424, %v5152
    %5154 = vmatmul.bf16.gmra.mxu0 %v2582
    %v5155 = vpop.f32.mrf.mxu0
    %v5156 = vadd.f32 %v4427, %v5155
    %v5157 = vpop.f32.mrf.mxu0
    %v5158 = vadd.f32 %v4429, %v5157
    %5159 = vmatmul.bf16.gmra.mxu0 %v2585
    %v5160 = vpop.f32.mrf.mxu0
    %v5161 = vadd.f32 %v4432, %v5160
    %v5162 = vpop.f32.mrf.mxu0
    %v5163 = vadd.f32 %v4434, %v5162
    %5164 = vmatmul.bf16.gmra.mxu0 %v2588
    %v5165 = vpop.f32.mrf.mxu0
    %v5166 = vadd.f32 %v4437, %v5165
    %v5167 = vpop.f32.mrf.mxu0
    %v5168 = vadd.f32 %v4439, %v5167
    %5169 = vmatmul.bf16.gmra.mxu0 %v2591
    %v5170 = vpop.f32.mrf.mxu0
    %v5171 = vadd.f32 %v4442, %v5170
    %v5172 = vpop.f32.mrf.mxu0
    %v5173 = vadd.f32 %v4444, %v5172
    %5174 = vmatmul.bf16.gmra.mxu0 %v2594
    %v5175 = vpop.f32.mrf.mxu0
    %v5176 = vadd.f32 %v4447, %v5175
    %v5177 = vpop.f32.mrf.mxu0
    %v5178 = vadd.f32 %v4449, %v5177
    %5179 = vmatmul.bf16.gmra.mxu0 %v2597
    %v5180 = vpop.f32.mrf.mxu0
    %v5181 = vadd.f32 %v4452, %v5180
    %v5182 = vpop.f32.mrf.mxu0
    %v5183 = vadd.f32 %v4454, %v5182
    %5184 = vmatmul.bf16.gmra.mxu0 %v2600
    %v5185 = vpop.f32.mrf.mxu0
    %v5186 = vadd.f32 %v4457, %v5185
    %v5187 = vpop.f32.mrf.mxu0
    %v5188 = vadd.f32 %v4459, %v5187
    %5189 = vmatmul.bf16.gmra.mxu0 %v2603
    %v5190 = vpop.f32.mrf.mxu0
    %v5191 = vadd.f32 %v4462, %v5190
    %v5192 = vpop.f32.mrf.mxu0
    %v5193 = vadd.f32 %v4464, %v5192
    %5194 = vmatmul.bf16.gmra.mxu0 %v2606
    %v5195 = vpop.f32.mrf.mxu0
    %v5196 = vadd.f32 %v4467, %v5195
    %v5197 = vpop.f32.mrf.mxu0
    %v5198 = vadd.f32 %v4469, %v5197
    %5199 = vmatmul.bf16.gmra.mxu0 %v2609
    %v5200 = vpop.f32.mrf.mxu0
    %v5201 = vadd.f32 %v4472, %v5200
    %v5202 = vpop.f32.mrf.mxu0
    %v5203 = vadd.f32 %v4474, %v5202
    %5204 = vmatmul.bf16.gmra.mxu0 %v2612
    %v5205 = vpop.f32.mrf.mxu0
    %v5206 = vadd.f32 %v4477, %v5205
    %v5207 = vpop.f32.mrf.mxu0
    %v5208 = vadd.f32 %v4479, %v5207
    %5209 = vmatmul.bf16.gmra.mxu0 %v2615
    %v5210 = vpop.f32.mrf.mxu0
    %v5211 = vadd.f32 %v4482, %v5210
    %v5212 = vpop.f32.mrf.mxu0
    %v5213 = vadd.f32 %v4484, %v5212
    %5214 = vmatmul.bf16.gmra.mxu0 %v2618
    %v5215 = vpop.f32.mrf.mxu0
    %v5216 = vadd.f32 %v4487, %v5215
    %v5217 = vpop.f32.mrf.mxu0
    %v5218 = vadd.f32 %v4489, %v5217
    %5219 = vmatmul.bf16.gmra.mxu0 %v2621
    %v5220 = vpop.f32.mrf.mxu0
    %v5221 = vadd.f32 %v4492, %v5220
    %v5222 = vpop.f32.mrf.mxu0
    %v5223 = vadd.f32 %v4494, %v5222
    %5224 = vmatmul.bf16.gmra.mxu0 %v2624
    %v5225 = vpop.f32.mrf.mxu0
    %v5226 = vadd.f32 %v4497, %v5225
    %v5227 = vpop.f32.mrf.mxu0
    %v5228 = vadd.f32 %v4499, %v5227
    %5229 = vmatmul.bf16.gmra.mxu0 %v2627
    %v5230 = vpop.f32.mrf.mxu0
    %v5231 = vadd.f32 %v4502, %v5230
    %v5232 = vpop.f32.mrf.mxu0
    %v5233 = vadd.f32 %v4504, %v5232
    %5234 = vmatmul.bf16.gmra.mxu0 %v2630
    %v5235 = vpop.f32.mrf.mxu0
    %v5236 = vadd.f32 %v4507, %v5235
    %v5237 = vpop.f32.mrf.mxu0
    %v5238 = vadd.f32 %v4509, %v5237
    %5239 = vmatmul.bf16.gmra.mxu0 %v2633
    %v5240 = vpop.f32.mrf.mxu0
    %v5241 = vadd.f32 %v4512, %v5240
    %v5242 = vpop.f32.mrf.mxu0
    %v5243 = vadd.f32 %v4514, %v5242
    %5244 = vmatmul.bf16.gmra.mxu0 %v2636
    %v5245 = vpop.f32.mrf.mxu0
    %v5246 = vadd.f32 %v4517, %v5245
    %v5247 = vpop.f32.mrf.mxu0
    %v5248 = vadd.f32 %v4519, %v5247
    %5249 = vmatmul.bf16.gmra.mxu0 %v2639
    %v5250 = vpop.f32.mrf.mxu0
    %v5251 = vadd.f32 %v4522, %v5250
    %v5252 = vpop.f32.mrf.mxu0
    %v5253 = vadd.f32 %v4524, %v5252
    %5254 = vmatmul.bf16.gmra.mxu0 %v2642
    %v5255 = vpop.f32.mrf.mxu0
    %v5256 = vadd.f32 %v4527, %v5255
    %v5257 = vpop.f32.mrf.mxu0
    %v5258 = vadd.f32 %v4529, %v5257
    %5259 = vmatmul.bf16.gmra.mxu0 %v2645
    %v5260 = vpop.f32.mrf.mxu0
    %v5261 = vadd.f32 %v4532, %v5260
    %v5262 = vpop.f32.mrf.mxu0
    %v5263 = vadd.f32 %v4534, %v5262
    %5264 = vdwg.mxu0
    %vm5265 = vcmask 400384
    %5266 = vst.msk [vmem:[%s3] sm:$0xff] %vm5265, %v4546
    %5267 = vst.msk [vmem:[%s3 + $0x8] sm:$0xff] %vm5265, %v4548
    %5268 = vst.msk [vmem:[%s3 + $0x10] sm:$0xff] %vm5265, %v4551
    %5269 = vst.msk [vmem:[%s3 + $0x18] sm:$0xff] %vm5265, %v4553
    %5270 = vst.msk [vmem:[%s3 + $0x20] sm:$0xff] %vm5265, %v4556
    %5271 = vst.msk [vmem:[%s3 + $0x28] sm:$0xff] %vm5265, %v4558
    %5272 = vst.msk [vmem:[%s3 + $0x30] sm:$0xff] %vm5265, %v4561
    %5273 = vst.msk [vmem:[%s3 + $0x38] sm:$0xff] %vm5265, %v4563
    %5274 = vst.msk [vmem:[%s3 + $0x40] sm:$0xff] %vm5265, %v4566
    %5275 = vst.msk [vmem:[%s3 + $0x48] sm:$0xff] %vm5265, %v4568
    %5276 = vst.msk [vmem:[%s3 + $0x50] sm:$0xff] %vm5265, %v4571
    %5277 = vst.msk [vmem:[%s3 + $0x58] sm:$0xff] %vm5265, %v4573
    %5278 = vst.msk [vmem:[%s3 + $0x60] sm:$0xff] %vm5265, %v4576
    %5279 = vst.msk [vmem:[%s3 + $0x68] sm:$0xff] %vm5265, %v4578
    %5280 = vst.msk [vmem:[%s3 + $0x70] sm:$0xff] %vm5265, %v4581
    %5281 = vst.msk [vmem:[%s3 + $0x78] sm:$0xff] %vm5265, %v4583
    %5282 = vst.msk [vmem:[%s3 + $0x80] sm:$0xff] %vm5265, %v4586
    %5283 = vst.msk [vmem:[%s3 + $0x88] sm:$0xff] %vm5265, %v4588
    %5284 = vst.msk [vmem:[%s3 + $0x90] sm:$0xff] %vm5265, %v4591
    %5285 = vst.msk [vmem:[%s3 + $0x98] sm:$0xff] %vm5265, %v4593
    %5286 = vst.msk [vmem:[%s3 + $0xa0] sm:$0xff] %vm5265, %v4596
    %5287 = vst.msk [vmem:[%s3 + $0xa8] sm:$0xff] %vm5265, %v4598
    %5288 = vst.msk [vmem:[%s3 + $0xb0] sm:$0xff] %vm5265, %v4601
    %5289 = vst.msk [vmem:[%s3 + $0xb8] sm:$0xff] %vm5265, %v4603
    %5290 = vst.msk [vmem:[%s3 + $0xc0] sm:$0xff] %vm5265, %v4606
    %5291 = vst.msk [vmem:[%s3 + $0xc8] sm:$0xff] %vm5265, %v4608
    %5292 = vst.msk [vmem:[%s3 + $0xd0] sm:$0xff] %vm5265, %v4611
    %5293 = vst.msk [vmem:[%s3 + $0xd8] sm:$0xff] %vm5265, %v4613
    %5294 = vst.msk [vmem:[%s3 + $0xe0] sm:$0xff] %vm5265, %v4616
    %5295 = vst.msk [vmem:[%s3 + $0xe8] sm:$0xff] %vm5265, %v4618
    %5296 = vst.msk [vmem:[%s3 + $0xf0] sm:$0xff] %vm5265, %v4621
    %5297 = vst.msk [vmem:[%s3 + $0xf8] sm:$0xff] %vm5265, %v4623
    %5298 = vst.msk [vmem:[%s3 + $0x100] sm:$0xff] %vm5265, %v4626
    %5299 = vst.msk [vmem:[%s3 + $0x108] sm:$0xff] %vm5265, %v4628
    %5300 = vst.msk [vmem:[%s3 + $0x110] sm:$0xff] %vm5265, %v4631
    %5301 = vst.msk [vmem:[%s3 + $0x118] sm:$0xff] %vm5265, %v4633
    %5302 = vst.msk [vmem:[%s3 + $0x120] sm:$0xff] %vm5265, %v4636
    %5303 = vst.msk [vmem:[%s3 + $0x128] sm:$0xff] %vm5265, %v4638
    %5304 = vst.msk [vmem:[%s3 + $0x130] sm:$0xff] %vm5265, %v4641
    %5305 = vst.msk [vmem:[%s3 + $0x138] sm:$0xff] %vm5265, %v4643
    %5306 = vst.msk [vmem:[%s3 + $0x140] sm:$0xff] %vm5265, %v4646
    %5307 = vst.msk [vmem:[%s3 + $0x148] sm:$0xff] %vm5265, %v4648
    %5308 = vst.msk [vmem:[%s3 + $0x150] sm:$0xff] %vm5265, %v4651
    %5309 = vst.msk [vmem:[%s3 + $0x158] sm:$0xff] %vm5265, %v4653
    %5310 = vst.msk [vmem:[%s3 + $0x160] sm:$0xff] %vm5265, %v4656
    %5311 = vst.msk [vmem:[%s3 + $0x168] sm:$0xff] %vm5265, %v4658
    %5312 = vst.msk [vmem:[%s3 + $0x170] sm:$0xff] %vm5265, %v4661
    %5313 = vst.msk [vmem:[%s3 + $0x178] sm:$0xff] %vm5265, %v4663
    %5314 = vst.msk [vmem:[%s3 + $0x180] sm:$0xff] %vm5265, %v4666
    %5315 = vst.msk [vmem:[%s3 + $0x188] sm:$0xff] %vm5265, %v4668
    %5316 = vst.msk [vmem:[%s3 + $0x190] sm:$0xff] %vm5265, %v4671
    %5317 = vst.msk [vmem:[%s3 + $0x198] sm:$0xff] %vm5265, %v4673
    %5318 = vst.msk [vmem:[%s3 + $0x1a0] sm:$0xff] %vm5265, %v4676
    %5319 = vst.msk [vmem:[%s3 + $0x1a8] sm:$0xff] %vm5265, %v4678
    %5320 = vst.msk [vmem:[%s3 + $0x1b0] sm:$0xff] %vm5265, %v4681
    %5321 = vst.msk [vmem:[%s3 + $0x1b8] sm:$0xff] %vm5265, %v4683
    %5322 = vst.msk [vmem:[%s3 + $0x1c0] sm:$0xff] %vm5265, %v4686
    %5323 = vst.msk [vmem:[%s3 + $0x1c8] sm:$0xff] %vm5265, %v4688
    %5324 = vst.msk [vmem:[%s3 + $0x1d0] sm:$0xff] %vm5265, %v4691
    %5325 = vst.msk [vmem:[%s3 + $0x1d8] sm:$0xff] %vm5265, %v4693
    %5326 = vst.msk [vmem:[%s3 + $0x1e0] sm:$0xff] %vm5265, %v4696
    %5327 = vst.msk [vmem:[%s3 + $0x1e8] sm:$0xff] %vm5265, %v4698
    %5328 = vst.msk [vmem:[%s3 + $0x1f0] sm:$0xff] %vm5265, %v4701
    %5329 = vst.msk [vmem:[%s3 + $0x1f8] sm:$0xff] %vm5265, %v4703
    %5330 = vst.msk [vmem:[%s3 + $0x200] sm:$0xff] %vm5265, %v4706
    %5331 = vst.msk [vmem:[%s3 + $0x208] sm:$0xff] %vm5265, %v4708
    %5332 = vst.msk [vmem:[%s3 + $0x210] sm:$0xff] %vm5265, %v4711
    %5333 = vst.msk [vmem:[%s3 + $0x218] sm:$0xff] %vm5265, %v4713
    %5334 = vst.msk [vmem:[%s3 + $0x220] sm:$0xff] %vm5265, %v4716
    %5335 = vst.msk [vmem:[%s3 + $0x228] sm:$0xff] %vm5265, %v4718
    %5336 = vst.msk [vmem:[%s3 + $0x230] sm:$0xff] %vm5265, %v4721
    %5337 = vst.msk [vmem:[%s3 + $0x238] sm:$0xff] %vm5265, %v4723
    %5338 = vst.msk [vmem:[%s3 + $0x240] sm:$0xff] %vm5265, %v4726
    %5339 = vst.msk [vmem:[%s3 + $0x248] sm:$0xff] %vm5265, %v4728
    %5340 = vst.msk [vmem:[%s3 + $0x250] sm:$0xff] %vm5265, %v4731
    %5341 = vst.msk [vmem:[%s3 + $0x258] sm:$0xff] %vm5265, %v4733
    %5342 = vst.msk [vmem:[%s3 + $0x260] sm:$0xff] %vm5265, %v4736
    %5343 = vst.msk [vmem:[%s3 + $0x268] sm:$0xff] %vm5265, %v4738
    %5344 = vst.msk [vmem:[%s3 + $0x270] sm:$0xff] %vm5265, %v4741
    %5345 = vst.msk [vmem:[%s3 + $0x278] sm:$0xff] %vm5265, %v4743
    %5346 = vst.msk [vmem:[%s3 + $0x280] sm:$0xff] %vm5265, %v4746
    %5347 = vst.msk [vmem:[%s3 + $0x288] sm:$0xff] %vm5265, %v4748
    %5348 = vst.msk [vmem:[%s3 + $0x290] sm:$0xff] %vm5265, %v4751
    %5349 = vst.msk [vmem:[%s3 + $0x298] sm:$0xff] %vm5265, %v4753
    %5350 = vst.msk [vmem:[%s3 + $0x2a0] sm:$0xff] %vm5265, %v4756
    %5351 = vst.msk [vmem:[%s3 + $0x2a8] sm:$0xff] %vm5265, %v4758
    %5352 = vst.msk [vmem:[%s3 + $0x2b0] sm:$0xff] %vm5265, %v4761
    %5353 = vst.msk [vmem:[%s3 + $0x2b8] sm:$0xff] %vm5265, %v4763
    %5354 = vst.msk [vmem:[%s3 + $0x2c0] sm:$0xff] %vm5265, %v4766
    %5355 = vst.msk [vmem:[%s3 + $0x2c8] sm:$0xff] %vm5265, %v4768
    %5356 = vst.msk [vmem:[%s3 + $0x2d0] sm:$0xff] %vm5265, %v4771
    %5357 = vst.msk [vmem:[%s3 + $0x2d8] sm:$0xff] %vm5265, %v4773
    %5358 = vst.msk [vmem:[%s3 + $0x2e0] sm:$0xff] %vm5265, %v4776
    %5359 = vst.msk [vmem:[%s3 + $0x2e8] sm:$0xff] %vm5265, %v4778
    %5360 = vst.msk [vmem:[%s3 + $0x2f0] sm:$0xff] %vm5265, %v4781
    %5361 = vst.msk [vmem:[%s3 + $0x2f8] sm:$0xff] %vm5265, %v4783
    %5362 = vst.msk [vmem:[%s3 + $0x300] sm:$0xff] %vm5265, %v4786
    %5363 = vst.msk [vmem:[%s3 + $0x308] sm:$0xff] %vm5265, %v4788
    %5364 = vst.msk [vmem:[%s3 + $0x310] sm:$0xff] %vm5265, %v4791
    %5365 = vst.msk [vmem:[%s3 + $0x318] sm:$0xff] %vm5265, %v4793
    %5366 = vst.msk [vmem:[%s3 + $0x320] sm:$0xff] %vm5265, %v4796
    %5367 = vst.msk [vmem:[%s3 + $0x328] sm:$0xff] %vm5265, %v4798
    %5368 = vst.msk [vmem:[%s3 + $0x330] sm:$0xff] %vm5265, %v4801
    %5369 = vst.msk [vmem:[%s3 + $0x338] sm:$0xff] %vm5265, %v4803
    %5370 = vst.msk [vmem:[%s3 + $0x340] sm:$0xff] %vm5265, %v4806
    %5371 = vst.msk [vmem:[%s3 + $0x348] sm:$0xff] %vm5265, %v4808
    %5372 = vst.msk [vmem:[%s3 + $0x350] sm:$0xff] %vm5265, %v4811
    %5373 = vst.msk [vmem:[%s3 + $0x358] sm:$0xff] %vm5265, %v4813
    %5374 = vst.msk [vmem:[%s3 + $0x360] sm:$0xff] %vm5265, %v4816
    %5375 = vst.msk [vmem:[%s3 + $0x368] sm:$0xff] %vm5265, %v4818
    %5376 = vst.msk [vmem:[%s3 + $0x370] sm:$0xff] %vm5265, %v4821
    %5377 = vst.msk [vmem:[%s3 + $0x378] sm:$0xff] %vm5265, %v4823
    %5378 = vst.msk [vmem:[%s3 + $0x380] sm:$0xff] %vm5265, %v4826
    %5379 = vst.msk [vmem:[%s3 + $0x388] sm:$0xff] %vm5265, %v4828
    %5380 = vst.msk [vmem:[%s3 + $0x390] sm:$0xff] %vm5265, %v4831
    %5381 = vst.msk [vmem:[%s3 + $0x398] sm:$0xff] %vm5265, %v4833
    %5382 = vst.msk [vmem:[%s3 + $0x3a0] sm:$0xff] %vm5265, %v4836
    %5383 = vst.msk [vmem:[%s3 + $0x3a8] sm:$0xff] %vm5265, %v4838
    %5384 = vst.msk [vmem:[%s3 + $0x3b0] sm:$0xff] %vm5265, %v4841
    %5385 = vst.msk [vmem:[%s3 + $0x3b8] sm:$0xff] %vm5265, %v4843
    %5386 = vst.msk [vmem:[%s3 + $0x3c0] sm:$0xff] %vm5265, %v4846
    %5387 = vst.msk [vmem:[%s3 + $0x3c8] sm:$0xff] %vm5265, %v4848
    %5388 = vst.msk [vmem:[%s3 + $0x3d0] sm:$0xff] %vm5265, %v4851
    %5389 = vst.msk [vmem:[%s3 + $0x3d8] sm:$0xff] %vm5265, %v4853
    %5390 = vst.msk [vmem:[%s3 + $0x3e0] sm:$0xff] %vm5265, %v4856
    %5391 = vst.msk [vmem:[%s3 + $0x3e8] sm:$0xff] %vm5265, %v4858
    %5392 = vst.msk [vmem:[%s3 + $0x3f0] sm:$0xff] %vm5265, %v4861
    %5393 = vst.msk [vmem:[%s3 + $0x3f8] sm:$0xff] %vm5265, %v4863
    %5394 = vst.msk [vmem:[%s3 + $0x400] sm:$0xff] %vm5265, %v4866
    %5395 = vst.msk [vmem:[%s3 + $0x408] sm:$0xff] %vm5265, %v4868
    %5396 = vst.msk [vmem:[%s3 + $0x410] sm:$0xff] %vm5265, %v4871
    %5397 = vst.msk [vmem:[%s3 + $0x418] sm:$0xff] %vm5265, %v4873
    %5398 = vst.msk [vmem:[%s3 + $0x420] sm:$0xff] %vm5265, %v4876
    %5399 = vst.msk [vmem:[%s3 + $0x428] sm:$0xff] %vm5265, %v4878
    %5400 = vst.msk [vmem:[%s3 + $0x430] sm:$0xff] %vm5265, %v4881
    %5401 = vst.msk [vmem:[%s3 + $0x438] sm:$0xff] %vm5265, %v4883
    %5402 = vst.msk [vmem:[%s3 + $0x440] sm:$0xff] %vm5265, %v4886
    %5403 = vst.msk [vmem:[%s3 + $0x448] sm:$0xff] %vm5265, %v4888
    %5404 = vst.msk [vmem:[%s3 + $0x450] sm:$0xff] %vm5265, %v4891
    %5405 = vst.msk [vmem:[%s3 + $0x458] sm:$0xff] %vm5265, %v4893
    %5406 = vst.msk [vmem:[%s3 + $0x460] sm:$0xff] %vm5265, %v4896
    %5407 = vst.msk [vmem:[%s3 + $0x468] sm:$0xff] %vm5265, %v4898
    %5408 = vst.msk [vmem:[%s3 + $0x470] sm:$0xff] %vm5265, %v4901
    %5409 = vst.msk [vmem:[%s3 + $0x478] sm:$0xff] %vm5265, %v4903
    %5410 = vst.msk [vmem:[%s3 + $0x480] sm:$0xff] %vm5265, %v4906
    %5411 = vst.msk [vmem:[%s3 + $0x488] sm:$0xff] %vm5265, %v4908
    %5412 = vst.msk [vmem:[%s3 + $0x490] sm:$0xff] %vm5265, %v4911
    %5413 = vst.msk [vmem:[%s3 + $0x498] sm:$0xff] %vm5265, %v4913
    %5414 = vst.msk [vmem:[%s3 + $0x4a0] sm:$0xff] %vm5265, %v4916
    %5415 = vst.msk [vmem:[%s3 + $0x4a8] sm:$0xff] %vm5265, %v4918
    %5416 = vst.msk [vmem:[%s3 + $0x4b0] sm:$0xff] %vm5265, %v4921
    %5417 = vst.msk [vmem:[%s3 + $0x4b8] sm:$0xff] %vm5265, %v4923
    %5418 = vst.msk [vmem:[%s3 + $0x4c0] sm:$0xff] %vm5265, %v4926
    %5419 = vst.msk [vmem:[%s3 + $0x4c8] sm:$0xff] %vm5265, %v4928
    %5420 = vst.msk [vmem:[%s3 + $0x4d0] sm:$0xff] %vm5265, %v4931
    %5421 = vst.msk [vmem:[%s3 + $0x4d8] sm:$0xff] %vm5265, %v4933
    %5422 = vst.msk [vmem:[%s3 + $0x4e0] sm:$0xff] %vm5265, %v4936
    %5423 = vst.msk [vmem:[%s3 + $0x4e8] sm:$0xff] %vm5265, %v4938
    %5424 = vst.msk [vmem:[%s3 + $0x4f0] sm:$0xff] %vm5265, %v4941
    %5425 = vst.msk [vmem:[%s3 + $0x4f8] sm:$0xff] %vm5265, %v4943
    %5426 = vst.msk [vmem:[%s3 + $0x500] sm:$0xff] %vm5265, %v4946
    %5427 = vst.msk [vmem:[%s3 + $0x508] sm:$0xff] %vm5265, %v4948
    %5428 = vst.msk [vmem:[%s3 + $0x510] sm:$0xff] %vm5265, %v4951
    %5429 = vst.msk [vmem:[%s3 + $0x518] sm:$0xff] %vm5265, %v4953
    %5430 = vst.msk [vmem:[%s3 + $0x520] sm:$0xff] %vm5265, %v4956
    %5431 = vst.msk [vmem:[%s3 + $0x528] sm:$0xff] %vm5265, %v4958
    %5432 = vst.msk [vmem:[%s3 + $0x530] sm:$0xff] %vm5265, %v4961
    %5433 = vst.msk [vmem:[%s3 + $0x538] sm:$0xff] %vm5265, %v4963
    %5434 = vst.msk [vmem:[%s3 + $0x540] sm:$0xff] %vm5265, %v4966
    %5435 = vst.msk [vmem:[%s3 + $0x548] sm:$0xff] %vm5265, %v4968
    %5436 = vst.msk [vmem:[%s3 + $0x550] sm:$0xff] %vm5265, %v4971
    %5437 = vst.msk [vmem:[%s3 + $0x558] sm:$0xff] %vm5265, %v4973
    %5438 = vst.msk [vmem:[%s3 + $0x560] sm:$0xff] %vm5265, %v4976
    %5439 = vst.msk [vmem:[%s3 + $0x568] sm:$0xff] %vm5265, %v4978
    %5440 = vst.msk [vmem:[%s3 + $0x570] sm:$0xff] %vm5265, %v4981
    %5441 = vst.msk [vmem:[%s3 + $0x578] sm:$0xff] %vm5265, %v4983
    %5442 = vst.msk [vmem:[%s3 + $0x580] sm:$0xff] %vm5265, %v4986
    %5443 = vst.msk [vmem:[%s3 + $0x588] sm:$0xff] %vm5265, %v4988
    %5444 = vst.msk [vmem:[%s3 + $0x590] sm:$0xff] %vm5265, %v4991
    %5445 = vst.msk [vmem:[%s3 + $0x598] sm:$0xff] %vm5265, %v4993
    %5446 = vst.msk [vmem:[%s3 + $0x5a0] sm:$0xff] %vm5265, %v4996
    %5447 = vst.msk [vmem:[%s3 + $0x5a8] sm:$0xff] %vm5265, %v4998
    %5448 = vst.msk [vmem:[%s3 + $0x5b0] sm:$0xff] %vm5265, %v5001
    %5449 = vst.msk [vmem:[%s3 + $0x5b8] sm:$0xff] %vm5265, %v5003
    %5450 = vst.msk [vmem:[%s3 + $0x5c0] sm:$0xff] %vm5265, %v5006
    %5451 = vst.msk [vmem:[%s3 + $0x5c8] sm:$0xff] %vm5265, %v5008
    %5452 = vst.msk [vmem:[%s3 + $0x5d0] sm:$0xff] %vm5265, %v5011
    %5453 = vst.msk [vmem:[%s3 + $0x5d8] sm:$0xff] %vm5265, %v5013
    %5454 = vst.msk [vmem:[%s3 + $0x5e0] sm:$0xff] %vm5265, %v5016
    %5455 = vst.msk [vmem:[%s3 + $0x5e8] sm:$0xff] %vm5265, %v5018
    %5456 = vst.msk [vmem:[%s3 + $0x5f0] sm:$0xff] %vm5265, %v5021
    %5457 = vst.msk [vmem:[%s3 + $0x5f8] sm:$0xff] %vm5265, %v5023
    %5458 = vst.msk [vmem:[%s3 + $0x600] sm:$0xff] %vm5265, %v5026
    %5459 = vst.msk [vmem:[%s3 + $0x608] sm:$0xff] %vm5265, %v5028
    %5460 = vst.msk [vmem:[%s3 + $0x610] sm:$0xff] %vm5265, %v5031
    %5461 = vst.msk [vmem:[%s3 + $0x618] sm:$0xff] %vm5265, %v5033
    %5462 = vst.msk [vmem:[%s3 + $0x620] sm:$0xff] %vm5265, %v5036
    %5463 = vst.msk [vmem:[%s3 + $0x628] sm:$0xff] %vm5265, %v5038
    %5464 = vst.msk [vmem:[%s3 + $0x630] sm:$0xff] %vm5265, %v5041
    %5465 = vst.msk [vmem:[%s3 + $0x638] sm:$0xff] %vm5265, %v5043
    %5466 = vst.msk [vmem:[%s3 + $0x640] sm:$0xff] %vm5265, %v5046
    %5467 = vst.msk [vmem:[%s3 + $0x648] sm:$0xff] %vm5265, %v5048
    %5468 = vst.msk [vmem:[%s3 + $0x650] sm:$0xff] %vm5265, %v5051
    %5469 = vst.msk [vmem:[%s3 + $0x658] sm:$0xff] %vm5265, %v5053
    %5470 = vst.msk [vmem:[%s3 + $0x660] sm:$0xff] %vm5265, %v5056
    %5471 = vst.msk [vmem:[%s3 + $0x668] sm:$0xff] %vm5265, %v5058
    %5472 = vst.msk [vmem:[%s3 + $0x670] sm:$0xff] %vm5265, %v5061
    %5473 = vst.msk [vmem:[%s3 + $0x678] sm:$0xff] %vm5265, %v5063
    %5474 = vst.msk [vmem:[%s3 + $0x680] sm:$0xff] %vm5265, %v5066
    %5475 = vst.msk [vmem:[%s3 + $0x688] sm:$0xff] %vm5265, %v5068
    %5476 = vst.msk [vmem:[%s3 + $0x690] sm:$0xff] %vm5265, %v5071
    %5477 = vst.msk [vmem:[%s3 + $0x698] sm:$0xff] %vm5265, %v5073
    %5478 = vst.msk [vmem:[%s3 + $0x6a0] sm:$0xff] %vm5265, %v5076
    %5479 = vst.msk [vmem:[%s3 + $0x6a8] sm:$0xff] %vm5265, %v5078
    %5480 = vst.msk [vmem:[%s3 + $0x6b0] sm:$0xff] %vm5265, %v5081
    %5481 = vst.msk [vmem:[%s3 + $0x6b8] sm:$0xff] %vm5265, %v5083
    %5482 = vst.msk [vmem:[%s3 + $0x6c0] sm:$0xff] %vm5265, %v5086
    %5483 = vst.msk [vmem:[%s3 + $0x6c8] sm:$0xff] %vm5265, %v5088
    %5484 = vst.msk [vmem:[%s3 + $0x6d0] sm:$0xff] %vm5265, %v5091
    %5485 = vst.msk [vmem:[%s3 + $0x6d8] sm:$0xff] %vm5265, %v5093
    %5486 = vst.msk [vmem:[%s3 + $0x6e0] sm:$0xff] %vm5265, %v5096
    %5487 = vst.msk [vmem:[%s3 + $0x6e8] sm:$0xff] %vm5265, %v5098
    %5488 = vst.msk [vmem:[%s3 + $0x6f0] sm:$0xff] %vm5265, %v5101
    %5489 = vst.msk [vmem:[%s3 + $0x6f8] sm:$0xff] %vm5265, %v5103
    %5490 = vst.msk [vmem:[%s3 + $0x700] sm:$0xff] %vm5265, %v5106
    %5491 = vst.msk [vmem:[%s3 + $0x708] sm:$0xff] %vm5265, %v5108
    %5492 = vst.msk [vmem:[%s3 + $0x710] sm:$0xff] %vm5265, %v5111
    %5493 = vst.msk [vmem:[%s3 + $0x718] sm:$0xff] %vm5265, %v5113
    %5494 = vst.msk [vmem:[%s3 + $0x720] sm:$0xff] %vm5265, %v5116
    %5495 = vst.msk [vmem:[%s3 + $0x728] sm:$0xff] %vm5265, %v5118
    %5496 = vst.msk [vmem:[%s3 + $0x730] sm:$0xff] %vm5265, %v5121
    %5497 = vst.msk [vmem:[%s3 + $0x738] sm:$0xff] %vm5265, %v5123
    %5498 = vst.msk [vmem:[%s3 + $0x740] sm:$0xff] %vm5265, %v5126
    %5499 = vst.msk [vmem:[%s3 + $0x748] sm:$0xff] %vm5265, %v5128
    %5500 = vst.msk [vmem:[%s3 + $0x750] sm:$0xff] %vm5265, %v5131
    %5501 = vst.msk [vmem:[%s3 + $0x758] sm:$0xff] %vm5265, %v5133
    %5502 = vst.msk [vmem:[%s3 + $0x760] sm:$0xff] %vm5265, %v5136
    %5503 = vst.msk [vmem:[%s3 + $0x768] sm:$0xff] %vm5265, %v5138
    %5504 = vst.msk [vmem:[%s3 + $0x770] sm:$0xff] %vm5265, %v5141
    %5505 = vst.msk [vmem:[%s3 + $0x778] sm:$0xff] %vm5265, %v5143
    %5506 = vst.msk [vmem:[%s3 + $0x780] sm:$0xff] %vm5265, %v5146
    %5507 = vst.msk [vmem:[%s3 + $0x788] sm:$0xff] %vm5265, %v5148
    %5508 = vst.msk [vmem:[%s3 + $0x790] sm:$0xff] %vm5265, %v5151
    %5509 = vst.msk [vmem:[%s3 + $0x798] sm:$0xff] %vm5265, %v5153
    %5510 = vst.msk [vmem:[%s3 + $0x7a0] sm:$0xff] %vm5265, %v5156
    %5511 = vst.msk [vmem:[%s3 + $0x7a8] sm:$0xff] %vm5265, %v5158
    %5512 = vst.msk [vmem:[%s3 + $0x7b0] sm:$0xff] %vm5265, %v5161
    %5513 = vst.msk [vmem:[%s3 + $0x7b8] sm:$0xff] %vm5265, %v5163
    %5514 = vst.msk [vmem:[%s3 + $0x7c0] sm:$0xff] %vm5265, %v5166
    %5515 = vst.msk [vmem:[%s3 + $0x7c8] sm:$0xff] %vm5265, %v5168
    %5516 = vst.msk [vmem:[%s3 + $0x7d0] sm:$0xff] %vm5265, %v5171
    %5517 = vst.msk [vmem:[%s3 + $0x7d8] sm:$0xff] %vm5265, %v5173
    %5518 = vst.msk [vmem:[%s3 + $0x7e0] sm:$0xff] %vm5265, %v5176
    %5519 = vst.msk [vmem:[%s3 + $0x7e8] sm:$0xff] %vm5265, %v5178
    %5520 = vst.msk [vmem:[%s3 + $0x7f0] sm:$0xff] %vm5265, %v5181
    %5521 = vst.msk [vmem:[%s3 + $0x7f8] sm:$0xff] %vm5265, %v5183
    %5522 = vst.msk [vmem:[%s3 + $0x800] sm:$0xff] %vm5265, %v5186
    %5523 = vst.msk [vmem:[%s3 + $0x808] sm:$0xff] %vm5265, %v5188
    %5524 = vst.msk [vmem:[%s3 + $0x810] sm:$0xff] %vm5265, %v5191
    %5525 = vst.msk [vmem:[%s3 + $0x818] sm:$0xff] %vm5265, %v5193
    %5526 = vst.msk [vmem:[%s3 + $0x820] sm:$0xff] %vm5265, %v5196
    %5527 = vst.msk [vmem:[%s3 + $0x828] sm:$0xff] %vm5265, %v5198
    %5528 = vst.msk [vmem:[%s3 + $0x830] sm:$0xff] %vm5265, %v5201
    %5529 = vst.msk [vmem:[%s3 + $0x838] sm:$0xff] %vm5265, %v5203
    %5530 = vst.msk [vmem:[%s3 + $0x840] sm:$0xff] %vm5265, %v5206
    %5531 = vst.msk [vmem:[%s3 + $0x848] sm:$0xff] %vm5265, %v5208
    %5532 = vst.msk [vmem:[%s3 + $0x850] sm:$0xff] %vm5265, %v5211
    %5533 = vst.msk [vmem:[%s3 + $0x858] sm:$0xff] %vm5265, %v5213
    %5534 = vst.msk [vmem:[%s3 + $0x860] sm:$0xff] %vm5265, %v5216
    %5535 = vst.msk [vmem:[%s3 + $0x868] sm:$0xff] %vm5265, %v5218
    %5536 = vst.msk [vmem:[%s3 + $0x870] sm:$0xff] %vm5265, %v5221
    %5537 = vst.msk [vmem:[%s3 + $0x878] sm:$0xff] %vm5265, %v5223
    %5538 = vst.msk [vmem:[%s3 + $0x880] sm:$0xff] %vm5265, %v5226
    %5539 = vst.msk [vmem:[%s3 + $0x888] sm:$0xff] %vm5265, %v5228
    %5540 = vst.msk [vmem:[%s3 + $0x890] sm:$0xff] %vm5265, %v5231
    %5541 = vst.msk [vmem:[%s3 + $0x898] sm:$0xff] %vm5265, %v5233
    %5542 = vst.msk [vmem:[%s3 + $0x8a0] sm:$0xff] %vm5265, %v5236
    %5543 = vst.msk [vmem:[%s3 + $0x8a8] sm:$0xff] %vm5265, %v5238
    %5544 = vst.msk [vmem:[%s3 + $0x8b0] sm:$0xff] %vm5265, %v5241
    %5545 = vst.msk [vmem:[%s3 + $0x8b8] sm:$0xff] %vm5265, %v5243
    %5546 = vst.msk [vmem:[%s3 + $0x8c0] sm:$0xff] %vm5265, %v5246
    %5547 = vst.msk [vmem:[%s3 + $0x8c8] sm:$0xff] %vm5265, %v5248
    %5548 = vst.msk [vmem:[%s3 + $0x8d0] sm:$0xff] %vm5265, %v5251
    %5549 = vst.msk [vmem:[%s3 + $0x8d8] sm:$0xff] %vm5265, %v5253
    %5550 = vst.msk [vmem:[%s3 + $0x8e0] sm:$0xff] %vm5265, %v5256
    %5551 = vst.msk [vmem:[%s3 + $0x8e8] sm:$0xff] %vm5265, %v5258
    %5552 = vst.msk [vmem:[%s3 + $0x8f0] sm:$0xff] %vm5265, %v5261
    %5553 = vst.msk [vmem:[%s3 + $0x8f8] sm:$0xff] %vm5265, %v5263
    // Predicated region
    $region18: #{tpu_custom_call.1} parent=1 // pred_check
      _
    $region19: #{tpu_custom_call.1} parent=1 // pred_check_branch
      %5555 = sbr.rel (0) target = $region21
    $region20: #{tpu_custom_call.1} parent=1 // pred_region
      _
    $region21: #{tpu_custom_call.1} parent=1 // pred_fallthru
      _
    // Predicated region
    $region22: #{tpu_custom_call.1} parent=1 // pred_check
      _
    $region23: #{tpu_custom_call.1} parent=1 // pred_check_branch
      %5557 = sbr.rel (0) target = $region25
    $region24: #{tpu_custom_call.1} parent=1 // pred_region
      _
    $region25: #{tpu_custom_call.1} parent=1 // pred_fallthru
      _
    %5558 = vsyncpa [#allocation3], 1

</llo_original>
